<compile_context>
chip_gen: v6e
topology: v6e:2x2x1
jax: 0.10.0
libtpu: 0.0.40
codegen_flags: <defaults>
</compile_context>

<pallas_src>
import functools

import jax
import jax.numpy as jnp
from jax.experimental import pallas as pl
from jax.experimental.pallas import tpu as pltpu


def _hyper_attn_kernel(x_ref, bw_ref, qh_ref, g_ref, b_ref, wk_ref, wv_ref,
                       wo_ref, bo_ref, o_ref, *, heads, head_dim,
                       batch_per_step):
    """One batch chunk per grid step.

    x_ref  : (bpb, N, Ci)    input tokens (also the attention context)
    bw_ref : (L, Co)         base weight (shared across batch)
    qh_ref : (heads, L, d)   precomputed per-head queries (base_weight @ Wq^T)
    g_ref  : (1, Ci)         LayerNorm gamma
    b_ref  : (1, Ci)         LayerNorm beta
    wk_ref : (heads, Ci, d)  per-head K projection (contraction-major)
    wv_ref : (heads, Ci, d)  per-head V projection (contraction-major)
    wo_ref : (heads, d, Co)  per-head output projection (contraction-major)
    bo_ref : (1, Co)         to_out bias
    o_ref  : (bpb, N, Co)    output
    """
    bpb = batch_per_step
    N = x_ref.shape[1]
    Ci = x_ref.shape[2]

    bw = bw_ref[...].astype(jnp.float32)            # (L, Co)
    qh = qh_ref[...].astype(jnp.float32)            # (h, L, d)
    wk = wk_ref[...].astype(jnp.float32)            # (h, Ci, d)
    wv = wv_ref[...].astype(jnp.float32)            # (h, Ci, d)
    wo = wo_ref[...].astype(jnp.float32)            # (h, d, Co)
    bo = bo_ref[...].astype(jnp.float32)            # (1, Co)

    # Whole-chunk LayerNorm over the feature (lane) dim.
    x2 = x_ref[...].astype(jnp.float32).reshape(bpb * N, Ci)   # (bpb*N, Ci)
    mean = jnp.mean(x2, axis=-1, keepdims=True)
    var = jnp.mean((x2 - mean) * (x2 - mean), axis=-1, keepdims=True)
    xn2 = (x2 - mean) * jax.lax.rsqrt(var + 1e-5) * g_ref[...] + b_ref[...]

    scale = 1.0 / (head_dim ** 0.5)

    for b in range(bpb):                            # static; bpb is 1 or tiny
        xb = x2[b * N:(b + 1) * N, :]               # (N, Ci) original tokens
        xnb = xn2[b * N:(b + 1) * N, :]             # (N, Ci) normed context
        xnh = jnp.broadcast_to(xnb[None], (heads, N, Ci))

        # Per-head K/V produced directly in (h, N, d) layout: no lane slicing,
        # no reshape of a (N, HD) tensor.
        kh = jnp.einsum('hnc,hcd->hnd', xnh, wk,
                        preferred_element_type=jnp.float32)      # (h, N, d)
        vh = jnp.einsum('hnc,hcd->hnd', xnh, wv,
                        preferred_element_type=jnp.float32)      # (h, N, d)

        # Head-batched attention (flash-style batched contractions).
        s = jnp.einsum('hld,hnd->hln', qh, kh,
                       preferred_element_type=jnp.float32) * scale   # (h, L, N)
        s = s - jnp.max(s, axis=-1, keepdims=True)
        p = jnp.exp(s)
        denom = jnp.sum(p, axis=-1, keepdims=True)                   # (h, L, 1)
        oh = jnp.einsum('hln,hnd->hld', p, vh,
                        preferred_element_type=jnp.float32)          # (h, L, d)
        # Normalization folded after P@V. Division/reciprocal is EUP-bound
        # (free slot); kept exact here for a strict numeric check.
        oh = oh * pl.reciprocal(denom, approx=False)

        # to_out as a head-batched projection + head-sum; avoids an in-kernel
        # (h, L, d) -> (L, HD) transpose/lane-merge.
        proj_h = jnp.einsum('hld,hdo->hlo', oh, wo,
                            preferred_element_type=jnp.float32)      # (h, L, Co)
        proj = jnp.sum(proj_h, axis=0) + bo                          # (L, Co)

        # hyper-weight = base + attention output; apply as the linear layer.
        layer = bw + proj                                            # (L, Co)
        out_b = jnp.dot(xb, layer, preferred_element_type=jnp.float32)  # (N, Co)
        o_ref[b] = out_b.astype(o_ref.dtype)


def hyper_attention_linear(x, params, heads):
    B, N, Ci = x.shape
    bw = params["base_weight"][0]               # (L, Co), L == Ci
    L, Co = bw.shape
    wq = params["wq"]                           # (HD, Co)
    HD = wq.shape[0]
    d = HD // heads

    # ---- batch-invariant precompute, hoisted out of the kernel (XLA side) ----
    # Queries depend only on base_weight and Wq: compute once, pre-split per
    # head -> (heads, L, d). Kernel never touches Wq.
    qh = jnp.dot(bw, wq.T).reshape(L, heads, d).transpose(1, 0, 2)

    # Pre-transpose & pre-split the KV / output projections into
    # contraction-major per-head slabs, so every in-kernel matmul is a plain
    # batched A@B (no `.T`, no kv[:, :HD] lane split, no wo[:, lo:hi] slices).
    wkv_t = params["wkv"].T                                        # (Ci, 2*HD)
    wk = wkv_t[:, :HD].reshape(Ci, heads, d).transpose(1, 0, 2)    # (h, Ci, d)
    wv = wkv_t[:, HD:].reshape(Ci, heads, d).transpose(1, 0, 2)    # (h, Ci, d)
    wo = params["wo"].T.reshape(heads, d, Co)                      # (h, d, Co)

    gamma = params["ln_g"].reshape(1, Ci)
    beta = params["ln_b"].reshape(1, Ci)
    bo = params["bo"].reshape(1, Co)

    # Grid: two parallel steps when the batch splits evenly -> one chunk per
    # TensorCore on dual-TC v7x; on single-TC v5e/v6e the extra step costs
    # only ~0.35 us at these sizes. Each step handles B//steps batch elements.
    steps = 2 if (B >= 2 and B % 2 == 0) else 1
    bpb = B // steps

    kernel = functools.partial(_hyper_attn_kernel, heads=heads, head_dim=d,
                               batch_per_step=bpb)

    # TODO(synk): if N/Ci/Co grow, tile N in the grid (weights stay resident)
    # and budget VMEM explicitly for v7x's 64 MiB (vmem_limit_bytes).
    return pl.pallas_call(
        kernel,
        out_shape=jax.ShapeDtypeStruct((B, N, Co), x.dtype),
        grid=(steps,),
        in_specs=[
            pl.BlockSpec((bpb, N, Ci), lambda s: (s, 0, 0)),    # x (per chunk)
            pl.BlockSpec((L, Co), lambda s: (0, 0)),            # base_weight
            pl.BlockSpec((heads, L, d), lambda s: (0, 0, 0)),   # per-head q
            pl.BlockSpec((1, Ci), lambda s: (0, 0)),            # LN gamma
            pl.BlockSpec((1, Ci), lambda s: (0, 0)),            # LN beta
            pl.BlockSpec((heads, Ci, d), lambda s: (0, 0, 0)),  # per-head Wk
            pl.BlockSpec((heads, Ci, d), lambda s: (0, 0, 0)),  # per-head Wv
            pl.BlockSpec((heads, d, Co), lambda s: (0, 0, 0)),  # per-head Wo
            pl.BlockSpec((1, Co), lambda s: (0, 0)),            # to_out bias
        ],
        out_specs=pl.BlockSpec((bpb, N, Co), lambda s: (s, 0, 0)),
        compiler_params=pltpu.CompilerParams(
            dimension_semantics=("parallel",)),
    )(x, bw, qh, gamma, beta, wk, wv, wo, bo)


def _reference(x, params, heads):
    """Pure-JAX reference matching the PyTorch forward pass."""
    B, N, Ci = x.shape
    bw = jnp.broadcast_to(params["base_weight"],
                          (B,) + params["base_weight"].shape[1:])
    L, Co = bw.shape[1:]
    HD = params["wq"].shape[0]
    dh = HD // heads

    q = jnp.einsum("blc,hc->blh", bw, params["wq"])                  # (B, L, HD)
    mean = jnp.mean(x, axis=-1, keepdims=True)
    var = jnp.mean((x - mean) ** 2, axis=-1, keepdims=True)
    xn = (x - mean) / jnp.sqrt(var + 1e-5) * params["ln_g"] + params["ln_b"]
    kv = jnp.einsum("bnc,hc->bnh", xn, params["wkv"])                # (B, N, 2*HD)
    k, v = kv[..., :HD], kv[..., HD:]

    def split(t, S):
        return t.reshape(B, S, heads, dh).transpose(0, 2, 1, 3)

    qh, kh, vh = split(q, L), split(k, N), split(v, N)
    s = jnp.einsum("bhld,bhnd->bhln", qh, kh) / jnp.sqrt(dh)
    p = jax.nn.softmax(s, axis=-1)
    o = jnp.einsum("bhln,bhnd->bhld", p, vh)
    attn = o.transpose(0, 2, 1, 3).reshape(B, L, HD)
    attn = jnp.einsum("blh,oh->blo", attn, params["wo"]) + params["bo"]
    layer = bw + attn
    return jnp.einsum("bnd,bdr->bnr", x, layer)


if __name__ == "__main__":
    # Module hyperparameters (small, consistent with the forward pass):
    B, N = 2, 8
    x_dim_in, x_dim_out = 32, 32        # L = x_dim_in, Co = x_dim_out
    hidden_attn_dim, heads = 64, 8      # head_dim = 8
    kv_dim = x_dim_in                   # context = x

    key = jax.random.PRNGKey(0)
    ks = jax.random.split(key, 7)
    params = {
        # kaiming-uniform-ish deterministic init
        "base_weight": jax.random.uniform(ks[0], (1, x_dim_in, x_dim_out),
                                          jnp.float32, -1.0, 1.0) * (6.0 / x_dim_in) ** 0.5,
        "wq": jax.random.uniform(ks[1], (hidden_attn_dim, x_dim_out),
                                 jnp.float32, -1.0, 1.0) / (x_dim_out ** 0.5),
        "ln_g": jnp.ones((kv_dim,), jnp.float32),
        "ln_b": jnp.zeros((kv_dim,), jnp.float32),
        "wkv": jax.random.uniform(ks[2], (hidden_attn_dim * 2, kv_dim),
                                  jnp.float32, -1.0, 1.0) / (kv_dim ** 0.5),
        "wo": jax.random.uniform(ks[3], (x_dim_out, hidden_attn_dim),
                                 jnp.float32, -1.0, 1.0) / (hidden_attn_dim ** 0.5),
        "bo": jax.random.uniform(ks[4], (x_dim_out,),
                                 jnp.float32, -1.0, 1.0) / (hidden_attn_dim ** 0.5),
    }

    x = jax.random.normal(ks[5], (B, N, x_dim_in), jnp.float32)

    out = hyper_attention_linear(x, params, heads)
    out = jax.block_until_ready(out)

    ref = _reference(x, params, heads)
    assert out.shape == (B, N, x_dim_out)
    assert jnp.allclose(out, ref, atol=1e-4, rtol=1e-4), \
        f"max abs diff {jnp.max(jnp.abs(out - ref))}"

    print("KERNEL_OK")
</pallas_src>

<mosaic_0001>
module attributes {stable_mosaic.version = 11 : i64} {
  func.func @_hyper_attn_kernel(%arg0: i32, %arg1: memref<1x8x32xf32, #tpu.memory_space<vmem>>, %arg2: memref<32x32xf32, #tpu.memory_space<vmem>>, %arg3: memref<8x32x8xf32, #tpu.memory_space<vmem>>, %arg4: memref<1x32xf32, #tpu.memory_space<vmem>>, %arg5: memref<1x32xf32, #tpu.memory_space<vmem>>, %arg6: memref<8x32x8xf32, #tpu.memory_space<vmem>>, %arg7: memref<8x32x8xf32, #tpu.memory_space<vmem>>, %arg8: memref<8x8x32xf32, #tpu.memory_space<vmem>>, %arg9: memref<1x32xf32, #tpu.memory_space<vmem>>, %arg10: memref<1x8x32xf32, #tpu.memory_space<vmem>>) attributes {dimension_semantics = [#tpu.dimension_semantics<parallel>], iteration_bounds = array<i64: 2>, scalar_prefetch = 0 : i64, scratch_operands = 0 : i64, tpu.core_type = #tpu.core_type<tc>, window_params = [{transform_indices = @transform_0, window_bounds = array<i64: 1, 8, 32>}, {pipeline_mode = #tpu.pipeline_mode<synchronous>, transform_indices = @transform_1, window_bounds = array<i64: 32, 32>}, {pipeline_mode = #tpu.pipeline_mode<synchronous>, transform_indices = @transform_2, window_bounds = array<i64: 8, 32, 8>}, {pipeline_mode = #tpu.pipeline_mode<synchronous>, transform_indices = @transform_3, window_bounds = array<i64: 1, 32>}, {pipeline_mode = #tpu.pipeline_mode<synchronous>, transform_indices = @transform_4, window_bounds = array<i64: 1, 32>}, {pipeline_mode = #tpu.pipeline_mode<synchronous>, transform_indices = @transform_5, window_bounds = array<i64: 8, 32, 8>}, {pipeline_mode = #tpu.pipeline_mode<synchronous>, transform_indices = @transform_6, window_bounds = array<i64: 8, 32, 8>}, {pipeline_mode = #tpu.pipeline_mode<synchronous>, transform_indices = @transform_7, window_bounds = array<i64: 8, 8, 32>}, {pipeline_mode = #tpu.pipeline_mode<synchronous>, transform_indices = @transform_8, window_bounds = array<i64: 1, 32>}, {transform_indices = @transform_9, window_bounds = array<i64: 1, 8, 32>}]} {
    %c0 = arith.constant 0 : index
    %c0_0 = arith.constant 0 : index
    %0 = vector.load %arg2[%c0, %c0_0] : memref<32x32xf32, #tpu.memory_space<vmem>>, vector<32x32xf32>
    %c0_1 = arith.constant 0 : index
    %c0_2 = arith.constant 0 : index
    %c0_3 = arith.constant 0 : index
    %1 = vector.load %arg3[%c0_1, %c0_2, %c0_3] : memref<8x32x8xf32, #tpu.memory_space<vmem>>, vector<8x32x8xf32>
    %c0_4 = arith.constant 0 : index
    %c0_5 = arith.constant 0 : index
    %c0_6 = arith.constant 0 : index
    %2 = vector.load %arg6[%c0_4, %c0_5, %c0_6] : memref<8x32x8xf32, #tpu.memory_space<vmem>>, vector<8x32x8xf32>
    %c0_7 = arith.constant 0 : index
    %c0_8 = arith.constant 0 : index
    %c0_9 = arith.constant 0 : index
    %3 = vector.load %arg7[%c0_7, %c0_8, %c0_9] : memref<8x32x8xf32, #tpu.memory_space<vmem>>, vector<8x32x8xf32>
    %c0_10 = arith.constant 0 : index
    %c0_11 = arith.constant 0 : index
    %c0_12 = arith.constant 0 : index
    %4 = vector.load %arg8[%c0_10, %c0_11, %c0_12] : memref<8x8x32xf32, #tpu.memory_space<vmem>>, vector<8x8x32xf32>
    %c0_13 = arith.constant 0 : index
    %c0_14 = arith.constant 0 : index
    %5 = vector.load %arg9[%c0_13, %c0_14] : memref<1x32xf32, #tpu.memory_space<vmem>>, vector<1x32xf32>
    %c0_15 = arith.constant 0 : index
    %c0_16 = arith.constant 0 : index
    %c0_17 = arith.constant 0 : index
    %6 = vector.load %arg1[%c0_15, %c0_16, %c0_17] : memref<1x8x32xf32, #tpu.memory_space<vmem>>, vector<1x8x32xf32>
    %7 = vector.shape_cast %6 : vector<1x8x32xf32> to vector<8x32xf32>
    %cst = arith.constant dense<0.000000e+00> : vector<8xf32>
    %8 = vector.multi_reduction <add>, %7, %cst [1] : vector<8x32xf32> to vector<8xf32>
    %9 = vector.shape_cast %8 : vector<8xf32> to vector<8x1xf32>
    %cst_18 = arith.constant 3.200000e+01 : f32
    %10 = vector.broadcast %cst_18 : f32 to vector<8x1xf32>
    %11 = arith.divf %9, %10 : vector<8x1xf32>
    %12 = vector.broadcast %11 : vector<8x1xf32> to vector<8x32xf32>
    %13 = arith.subf %7, %12 : vector<8x32xf32>
    %14 = vector.broadcast %11 : vector<8x1xf32> to vector<8x32xf32>
    %15 = arith.subf %7, %14 : vector<8x32xf32>
    %16 = arith.mulf %13, %15 : vector<8x32xf32>
    %cst_19 = arith.constant dense<0.000000e+00> : vector<8xf32>
    %17 = vector.multi_reduction <add>, %16, %cst_19 [1] : vector<8x32xf32> to vector<8xf32>
    %18 = vector.shape_cast %17 : vector<8xf32> to vector<8x1xf32>
    %cst_20 = arith.constant 3.200000e+01 : f32
    %19 = vector.broadcast %cst_20 : f32 to vector<8x1xf32>
    %20 = arith.divf %18, %19 : vector<8x1xf32>
    %21 = vector.broadcast %11 : vector<8x1xf32> to vector<8x32xf32>
    %22 = arith.subf %7, %21 : vector<8x32xf32>
    %cst_21 = arith.constant 9.99999974E-6 : f32
    %23 = vector.broadcast %cst_21 : f32 to vector<8x1xf32>
    %24 = arith.addf %20, %23 : vector<8x1xf32>
    %25 = math.rsqrt %24 : vector<8x1xf32>
    %26 = vector.broadcast %25 : vector<8x1xf32> to vector<8x32xf32>
    %27 = arith.mulf %22, %26 : vector<8x32xf32>
    %c0_22 = arith.constant 0 : index
    %c0_23 = arith.constant 0 : index
    %28 = vector.load %arg4[%c0_22, %c0_23] : memref<1x32xf32, #tpu.memory_space<vmem>>, vector<1x32xf32>
    %29 = vector.broadcast %28 : vector<1x32xf32> to vector<8x32xf32>
    %30 = arith.mulf %27, %29 : vector<8x32xf32>
    %c0_24 = arith.constant 0 : index
    %c0_25 = arith.constant 0 : index
    %31 = vector.load %arg5[%c0_24, %c0_25] : memref<1x32xf32, #tpu.memory_space<vmem>>, vector<1x32xf32>
    %32 = vector.broadcast %31 : vector<1x32xf32> to vector<8x32xf32>
    %33 = arith.addf %30, %32 : vector<8x32xf32>
    %34 = vector.shape_cast %33 : vector<8x32xf32> to vector<1x8x32xf32>
    %35 = vector.shape_cast %34 : vector<1x8x32xf32> to vector<1x8x32xf32>
    %36 = vector.broadcast %35 : vector<1x8x32xf32> to vector<8x8x32xf32>
    "tpu.trace_start"() <{level = 10 : i32, message = "hnc,hcd->hnd"}> : () -> ()
    %cst_26 = arith.constant dense<0.000000e+00> : vector<8x8x8xf32>
    %37 = tpu.matmul %36, %2, %cst_26 {dimension_numbers = #tpu.dot_dimension_numbers<[2], [1], [1], [2], [0, 0, 0, 1, 1, 2], [0], [0]>} : vector<8x8x32xf32>, vector<8x32x8xf32>, vector<8x8x8xf32> -> vector<8x8x8xf32>
    %cst_27 = arith.constant dense<0.000000e+00> : vector<8x8x8xf32>
    %38 = tpu.matmul %36, %3, %cst_27 {dimension_numbers = #tpu.dot_dimension_numbers<[2], [1], [1], [2], [0, 0, 0, 1, 1, 2], [0], [0]>} : vector<8x8x32xf32>, vector<8x32x8xf32>, vector<8x8x8xf32> -> vector<8x8x8xf32>
    "tpu.trace_stop"() : () -> ()
    "tpu.trace_start"() <{level = 10 : i32, message = "hld,hnd->hln"}> : () -> ()
    %cst_28 = arith.constant dense<0.000000e+00> : vector<8x32x8xf32>
    %39 = tpu.matmul %1, %37, %cst_28 {dimension_numbers = #tpu.dot_dimension_numbers<[2], [2], [1], [1], [0, 0, 0, 1, 1, 1], [0], [0]>} : vector<8x32x8xf32>, vector<8x8x8xf32>, vector<8x32x8xf32> -> vector<8x32x8xf32>
    "tpu.trace_stop"() : () -> ()
    %cst_29 = arith.constant 0.353553385 : f32
    %40 = vector.broadcast %cst_29 : f32 to vector<8x32x8xf32>
    %41 = arith.mulf %39, %40 : vector<8x32x8xf32>
    %cst_30 = arith.constant dense<0xFF800000> : vector<8x32xf32>
    %42 = vector.multi_reduction <maximumf>, %41, %cst_30 [2] : vector<8x32x8xf32> to vector<8x32xf32>
    %43 = vector.shape_cast %42 : vector<8x32xf32> to vector<8x32x1xf32>
    %44 = vector.broadcast %43 : vector<8x32x1xf32> to vector<8x32x8xf32>
    %45 = arith.subf %41, %44 : vector<8x32x8xf32>
    %46 = math.exp %45 : vector<8x32x8xf32>
    %cst_31 = arith.constant dense<0.000000e+00> : vector<8x32xf32>
    %47 = vector.multi_reduction <add>, %46, %cst_31 [2] : vector<8x32x8xf32> to vector<8x32xf32>
    %48 = vector.shape_cast %47 : vector<8x32xf32> to vector<8x32x1xf32>
    "tpu.trace_start"() <{level = 10 : i32, message = "hln,hnd->hld"}> : () -> ()
    %cst_32 = arith.constant dense<0.000000e+00> : vector<8x32x8xf32>
    %49 = tpu.matmul %46, %38, %cst_32 {dimension_numbers = #tpu.dot_dimension_numbers<[2], [1], [1], [2], [0, 0, 0, 1, 1, 2], [0], [0]>} : vector<8x32x8xf32>, vector<8x8x8xf32>, vector<8x32x8xf32> -> vector<8x32x8xf32>
    "tpu.trace_stop"() : () -> ()
    %50 = tpu.reciprocal %48 : vector<8x32x1xf32> -> vector<8x32x1xf32>
    %51 = vector.broadcast %50 : vector<8x32x1xf32> to vector<8x32x8xf32>
    %52 = arith.mulf %49, %51 : vector<8x32x8xf32>
    "tpu.trace_start"() <{level = 10 : i32, message = "hld,hdo->hlo"}> : () -> ()
    %cst_33 = arith.constant dense<0.000000e+00> : vector<8x32x32xf32>
    %53 = tpu.matmul %52, %4, %cst_33 {dimension_numbers = #tpu.dot_dimension_numbers<[2], [1], [1], [2], [0, 0, 0, 1, 1, 2], [0], [0]>} : vector<8x32x8xf32>, vector<8x8x32xf32>, vector<8x32x32xf32> -> vector<8x32x32xf32>
    "tpu.trace_stop"() : () -> ()
    %cst_34 = arith.constant dense<0.000000e+00> : vector<32x32xf32>
    %54 = vector.multi_reduction <add>, %53, %cst_34 [0] : vector<8x32x32xf32> to vector<32x32xf32>
    %55 = vector.broadcast %5 : vector<1x32xf32> to vector<32x32xf32>
    %56 = arith.addf %54, %55 : vector<32x32xf32>
    %57 = arith.addf %0, %56 : vector<32x32xf32>
    %cst_35 = arith.constant dense<0.000000e+00> : vector<8x32xf32>
    %58 = tpu.matmul %7, %57, %cst_35 {dimension_numbers = #tpu.dot_dimension_numbers<[1], [0], [0], [1], [0, 0, 1, 1], [], []>} : vector<8x32xf32>, vector<32x32xf32>, vector<8x32xf32> -> vector<8x32xf32>
    %c0_36 = arith.constant 0 : index
    %c0_37 = arith.constant 0 : index
    %c0_38 = arith.constant 0 : index
    %59 = vector.load %arg10[%c0_36, %c0_37, %c0_38] : memref<1x8x32xf32, #tpu.memory_space<vmem>>, vector<1x8x32xf32>
    %60 = vector.shape_cast %59 : vector<1x8x32xf32> to vector<8x32xf32>
    %61 = vector.shape_cast %58 : vector<8x32xf32> to vector<1x8x32xf32>
    tpu.vector_store %arg10[%c0_36, %c0_37, %c0_38], %61 {strides = array<i32>} : memref<1x8x32xf32, #tpu.memory_space<vmem>>, vector<1x8x32xf32>,
    return
  }
  func.func @transform_0(%arg0: i32) -> (i32, i32, i32) {
    %c0_i32 = arith.constant 0 : i32
    %c0_i32_0 = arith.constant 0 : i32
    %c0_i32_1 = arith.constant 0 : i32
    return %arg0, %c0_i32, %c0_i32_0 : i32, i32, i32
  }
  func.func @transform_1(%arg0: i32) -> (i32, i32) {
    %c0_i32 = arith.constant 0 : i32
    %c0_i32_0 = arith.constant 0 : i32
    %c0_i32_1 = arith.constant 0 : i32
    return %c0_i32, %c0_i32_0 : i32, i32
  }
  func.func @transform_2(%arg0: i32) -> (i32, i32, i32) {
    %c0_i32 = arith.constant 0 : i32
    %c0_i32_0 = arith.constant 0 : i32
    %c0_i32_1 = arith.constant 0 : i32
    %c0_i32_2 = arith.constant 0 : i32
    return %c0_i32, %c0_i32_0, %c0_i32_1 : i32, i32, i32
  }
  func.func @transform_3(%arg0: i32) -> (i32, i32) {
    %c0_i32 = arith.constant 0 : i32
    %c0_i32_0 = arith.constant 0 : i32
    %c0_i32_1 = arith.constant 0 : i32
    return %c0_i32, %c0_i32_0 : i32, i32
  }
  func.func @transform_4(%arg0: i32) -> (i32, i32) {
    %c0_i32 = arith.constant 0 : i32
    %c0_i32_0 = arith.constant 0 : i32
    %c0_i32_1 = arith.constant 0 : i32
    return %c0_i32, %c0_i32_0 : i32, i32
  }
  func.func @transform_5(%arg0: i32) -> (i32, i32, i32) {
    %c0_i32 = arith.constant 0 : i32
    %c0_i32_0 = arith.constant 0 : i32
    %c0_i32_1 = arith.constant 0 : i32
    %c0_i32_2 = arith.constant 0 : i32
    return %c0_i32, %c0_i32_0, %c0_i32_1 : i32, i32, i32
  }
  func.func @transform_6(%arg0: i32) -> (i32, i32, i32) {
    %c0_i32 = arith.constant 0 : i32
    %c0_i32_0 = arith.constant 0 : i32
    %c0_i32_1 = arith.constant 0 : i32
    %c0_i32_2 = arith.constant 0 : i32
    return %c0_i32, %c0_i32_0, %c0_i32_1 : i32, i32, i32
  }
  func.func @transform_7(%arg0: i32) -> (i32, i32, i32) {
    %c0_i32 = arith.constant 0 : i32
    %c0_i32_0 = arith.constant 0 : i32
    %c0_i32_1 = arith.constant 0 : i32
    %c0_i32_2 = arith.constant 0 : i32
    return %c0_i32, %c0_i32_0, %c0_i32_1 : i32, i32, i32
  }
  func.func @transform_8(%arg0: i32) -> (i32, i32) {
    %c0_i32 = arith.constant 0 : i32
    %c0_i32_0 = arith.constant 0 : i32
    %c0_i32_1 = arith.constant 0 : i32
    return %c0_i32, %c0_i32_0 : i32, i32
  }
  func.func @transform_9(%arg0: i32) -> (i32, i32, i32) {
    %c0_i32 = arith.constant 0 : i32
    %c0_i32_0 = arith.constant 0 : i32
    %c0_i32_1 = arith.constant 0 : i32
    return %arg0, %c0_i32, %c0_i32_0 : i32, i32, i32
  }
}

</mosaic_0001>

<llo_original>
// kernel: tpu_custom_call.1
$region0: #{tpu_custom_call.1}
  #allocation0 [shape = 'u32[]', space=smem, size = 0x4, offset = 0x4, fixed_abs, tag = 'smem constant byte address 0x4 - core index']
  #allocation1 [shape = 'u32[144,128]{1,0:T(1,128)}', space=vmem, size = 0x12000, scoped, tag = 'internal scratch']
  %s0 = inlined_call_operand.vmem [shape: f32[2,8,32], index: 0, kind: input, shape index: {}]
  %s1 = inlined_call_operand.vmem [shape: f32[32,32], index: 1, kind: input, shape index: {}]
  %s2 = inlined_call_operand.vmem [shape: f32[8,32,8], index: 2, kind: input, shape index: {}]
  %s3 = inlined_call_operand.vmem [shape: f32[1,32], index: 3, kind: input, shape index: {}]
  %s4 = inlined_call_operand.vmem [shape: f32[1,32], index: 4, kind: input, shape index: {}]
  %s5 = inlined_call_operand.vmem [shape: f32[8,32,8], index: 5, kind: input, shape index: {}]
  %s6 = inlined_call_operand.vmem [shape: f32[8,32,8], index: 6, kind: input, shape index: {}]
  %s7 = inlined_call_operand.vmem [shape: f32[8,8,32], index: 7, kind: input, shape index: {}]
  %s8 = inlined_call_operand.vmem [shape: f32[1,32], index: 8, kind: input, shape index: {}]
  %s9 = inlined_call_operand.hbm [shape: f32[2,8,32], index: 9, kind: output, shape index: {}]
  %s10 = sld [smem:[#allocation0]]
  $region69: #{tpu_custom_call.1} parent=0
    _
  %s12 = ssub.s32 1, %s10
  %s13 = scalar_select 0, %s12, %s10
  $region1: #{tpu_custom_call.1} parent=0
    #allocation2 [shape = 'u8[8192]{0}', space=vmem, size = 0x2000, scoped, tag = 'output window, operand 0']
    #allocation3 [shape = 's32[2]{0}', space=sflag, size = 0x8, scoped, tag = 'scoped memory for tpu_custom_call.1']
    %14 = vsyncpa [#allocation3], 0
    %s15 = scalar_lea.sflag [#allocation3], 1
    %16 = vsyncpa %s15, 0
    loop: start=0, step=1, limit=4
    $region2: #{tpu_custom_call.1} parent=1 // loop_pre_header
      _
    $region3: #{tpu_custom_call.1} parent=1 // loop_header
      %s18 = sphi 0, %s22
      %p19 = scmp.ge.s32.totalorder %s18, 4
      %s28 = sphi 0, %s30
      %s31 = sphi 0, %s28
      %s32 = sphi 0, %s31
      %s48 = sphi 0, %s32
      %s52 = sphi 0, %s52
      %s54 = sphi 0, %s52
      %s55 = sphi 0, %s54
      %s69 = sphi 0, %s55
      %s73 = sphi 0, %s73
      %s75 = sphi 0, %s73
      %s76 = sphi 0, %s75
      %s90 = sphi 0, %s76
      %s94 = sphi 0, %s94
      %s96 = sphi 0, %s94
      %s97 = sphi 0, %s96
      %s111 = sphi 0, %s97
      %s115 = sphi 0, %s115
      %s117 = sphi 0, %s115
      %s118 = sphi 0, %s117
      %s132 = sphi 0, %s118
      %s136 = sphi 0, %s136
      %s138 = sphi 0, %s136
      %s139 = sphi 0, %s138
      %s153 = sphi 0, %s139
      %s157 = sphi 0, %s157
      %s159 = sphi 0, %s157
      %s160 = sphi 0, %s159
      %s174 = sphi 0, %s160
      %s178 = sphi 0, %s178
      %s180 = sphi 0, %s178
      %s181 = sphi 0, %s180
      %s195 = sphi 0, %s181
      %s199 = sphi 0, %s199
      %s201 = sphi 0, %s199
      %s202 = sphi 0, %s201
      %s216 = sphi 0, %s202
      %s222 = sphi 0, %s224
      %s225 = sphi 0, %s222
      %s226 = sphi 0, %s225
      %s242 = sphi 0, %s226
    $region4: #{tpu_custom_call.1} parent=1 // loop_header_branch
      %21 = sbr.rel (%p19) target = $region8
    $region5: #{tpu_custom_call.1} parent=1 // loop_body
      %s23 = ssub.s32 %s18, 1
      %s24 = ssub.s32 %s18, 2
      %s25 = sadd.s32 %s18, 1
      %s26 = ssub.s32 %s18, %s25
      %p27 = scmp.eq.s32.totalorder %s26, 0
      %s29 = sadd.s32 %s28, 1
      %s30 = scalar_select %p27, %s28, %s29
      %p33 = pneg %p27
      %p34 = scmp.eq.s32.totalorder %s18, 1
      %p35 = por %p33, %p34
      %p36 = scmp.ne.s32.totalorder %s28, %s31
      %p37 = scmp.eq.s32.totalorder %s18, 0
      %p38 = por %p36, %p37
      %p39 = scmp.ne.s32.totalorder %s28, %s31
      %p40 = scmp.eq.s32.totalorder %s23, 1
      %p41 = por %p39, %p40
      %p42 = scmp.ne.s32.totalorder %s31, %s32
      %p43 = scmp.eq.s32.totalorder %s23, 0
      %p44 = por %p42, %p43
      %p45 = scmp.ne.s32.totalorder %s31, %s32
      %p46 = scmp.eq.s32.totalorder %s24, 1
      %p47 = por %p45, %p46
      %p49 = scmp.ne.s32.totalorder %s32, %s48
      %p50 = scmp.eq.s32.totalorder %s24, 0
      %p51 = por %p49, %p50
      %s53 = sadd.s32 %s52, 1
      %p56 = scmp.eq.s32.totalorder %s18, 1
      %p57 = scmp.ne.s32.totalorder %s52, %s54
      %p58 = scmp.eq.s32.totalorder %s18, 0
      %p59 = por %p57, %p58
      %p60 = scmp.ne.s32.totalorder %s52, %s54
      %p61 = scmp.eq.s32.totalorder %s23, 1
      %p62 = por %p60, %p61
      %p63 = scmp.ne.s32.totalorder %s54, %s55
      %p64 = scmp.eq.s32.totalorder %s23, 0
      %p65 = por %p63, %p64
      %p66 = scmp.ne.s32.totalorder %s54, %s55
      %p67 = scmp.eq.s32.totalorder %s24, 1
      %p68 = por %p66, %p67
      %p70 = scmp.ne.s32.totalorder %s55, %s69
      %p71 = scmp.eq.s32.totalorder %s24, 0
      %p72 = por %p70, %p71
      %s74 = sadd.s32 %s73, 1
      %p77 = scmp.eq.s32.totalorder %s18, 1
      %p78 = scmp.ne.s32.totalorder %s73, %s75
      %p79 = scmp.eq.s32.totalorder %s18, 0
      %p80 = por %p78, %p79
      %p81 = scmp.ne.s32.totalorder %s73, %s75
      %p82 = scmp.eq.s32.totalorder %s23, 1
      %p83 = por %p81, %p82
      %p84 = scmp.ne.s32.totalorder %s75, %s76
      %p85 = scmp.eq.s32.totalorder %s23, 0
      %p86 = por %p84, %p85
      %p87 = scmp.ne.s32.totalorder %s75, %s76
      %p88 = scmp.eq.s32.totalorder %s24, 1
      %p89 = por %p87, %p88
      %p91 = scmp.ne.s32.totalorder %s76, %s90
      %p92 = scmp.eq.s32.totalorder %s24, 0
      %p93 = por %p91, %p92
      %s95 = sadd.s32 %s94, 1
      %p98 = scmp.eq.s32.totalorder %s18, 1
      %p99 = scmp.ne.s32.totalorder %s94, %s96
      %p100 = scmp.eq.s32.totalorder %s18, 0
      %p101 = por %p99, %p100
      %p102 = scmp.ne.s32.totalorder %s94, %s96
      %p103 = scmp.eq.s32.totalorder %s23, 1
      %p104 = por %p102, %p103
      %p105 = scmp.ne.s32.totalorder %s96, %s97
      %p106 = scmp.eq.s32.totalorder %s23, 0
      %p107 = por %p105, %p106
      %p108 = scmp.ne.s32.totalorder %s96, %s97
      %p109 = scmp.eq.s32.totalorder %s24, 1
      %p110 = por %p108, %p109
      %p112 = scmp.ne.s32.totalorder %s97, %s111
      %p113 = scmp.eq.s32.totalorder %s24, 0
      %p114 = por %p112, %p113
      %s116 = sadd.s32 %s115, 1
      %p119 = scmp.eq.s32.totalorder %s18, 1
      %p120 = scmp.ne.s32.totalorder %s115, %s117
      %p121 = scmp.eq.s32.totalorder %s18, 0
      %p122 = por %p120, %p121
      %p123 = scmp.ne.s32.totalorder %s115, %s117
      %p124 = scmp.eq.s32.totalorder %s23, 1
      %p125 = por %p123, %p124
      %p126 = scmp.ne.s32.totalorder %s117, %s118
      %p127 = scmp.eq.s32.totalorder %s23, 0
      %p128 = por %p126, %p127
      %p129 = scmp.ne.s32.totalorder %s117, %s118
      %p130 = scmp.eq.s32.totalorder %s24, 1
      %p131 = por %p129, %p130
      %p133 = scmp.ne.s32.totalorder %s118, %s132
      %p134 = scmp.eq.s32.totalorder %s24, 0
      %p135 = por %p133, %p134
      %s137 = sadd.s32 %s136, 1
      %p140 = scmp.eq.s32.totalorder %s18, 1
      %p141 = scmp.ne.s32.totalorder %s136, %s138
      %p142 = scmp.eq.s32.totalorder %s18, 0
      %p143 = por %p141, %p142
      %p144 = scmp.ne.s32.totalorder %s136, %s138
      %p145 = scmp.eq.s32.totalorder %s23, 1
      %p146 = por %p144, %p145
      %p147 = scmp.ne.s32.totalorder %s138, %s139
      %p148 = scmp.eq.s32.totalorder %s23, 0
      %p149 = por %p147, %p148
      %p150 = scmp.ne.s32.totalorder %s138, %s139
      %p151 = scmp.eq.s32.totalorder %s24, 1
      %p152 = por %p150, %p151
      %p154 = scmp.ne.s32.totalorder %s139, %s153
      %p155 = scmp.eq.s32.totalorder %s24, 0
      %p156 = por %p154, %p155
      %s158 = sadd.s32 %s157, 1
      %p161 = scmp.eq.s32.totalorder %s18, 1
      %p162 = scmp.ne.s32.totalorder %s157, %s159
      %p163 = scmp.eq.s32.totalorder %s18, 0
      %p164 = por %p162, %p163
      %p165 = scmp.ne.s32.totalorder %s157, %s159
      %p166 = scmp.eq.s32.totalorder %s23, 1
      %p167 = por %p165, %p166
      %p168 = scmp.ne.s32.totalorder %s159, %s160
      %p169 = scmp.eq.s32.totalorder %s23, 0
      %p170 = por %p168, %p169
      %p171 = scmp.ne.s32.totalorder %s159, %s160
      %p172 = scmp.eq.s32.totalorder %s24, 1
      %p173 = por %p171, %p172
      %p175 = scmp.ne.s32.totalorder %s160, %s174
      %p176 = scmp.eq.s32.totalorder %s24, 0
      %p177 = por %p175, %p176
      %s179 = sadd.s32 %s178, 1
      %p182 = scmp.eq.s32.totalorder %s18, 1
      %p183 = scmp.ne.s32.totalorder %s178, %s180
      %p184 = scmp.eq.s32.totalorder %s18, 0
      %p185 = por %p183, %p184
      %p186 = scmp.ne.s32.totalorder %s178, %s180
      %p187 = scmp.eq.s32.totalorder %s23, 1
      %p188 = por %p186, %p187
      %p189 = scmp.ne.s32.totalorder %s180, %s181
      %p190 = scmp.eq.s32.totalorder %s23, 0
      %p191 = por %p189, %p190
      %p192 = scmp.ne.s32.totalorder %s180, %s181
      %p193 = scmp.eq.s32.totalorder %s24, 1
      %p194 = por %p192, %p193
      %p196 = scmp.ne.s32.totalorder %s181, %s195
      %p197 = scmp.eq.s32.totalorder %s24, 0
      %p198 = por %p196, %p197
      %s200 = sadd.s32 %s199, 1
      %p203 = scmp.eq.s32.totalorder %s18, 1
      %p204 = scmp.ne.s32.totalorder %s199, %s201
      %p205 = scmp.eq.s32.totalorder %s18, 0
      %p206 = por %p204, %p205
      %p207 = scmp.ne.s32.totalorder %s199, %s201
      %p208 = scmp.eq.s32.totalorder %s23, 1
      %p209 = por %p207, %p208
      %p210 = scmp.ne.s32.totalorder %s201, %s202
      %p211 = scmp.eq.s32.totalorder %s23, 0
      %p212 = por %p210, %p211
      %p213 = scmp.ne.s32.totalorder %s201, %s202
      %p214 = scmp.eq.s32.totalorder %s24, 1
      %p215 = por %p213, %p214
      %p217 = scmp.ne.s32.totalorder %s202, %s216
      %p218 = scmp.eq.s32.totalorder %s24, 0
      %p219 = por %p217, %p218
      %s220 = ssub.s32 %s18, %s25
      %p221 = scmp.eq.s32.totalorder %s220, 0
      %s223 = sadd.s32 %s222, 1
      %s224 = scalar_select %p221, %s222, %s223
      %p227 = pneg %p221
      %p228 = scmp.eq.s32.totalorder %s18, 1
      %p229 = por %p227, %p228
      %p230 = scmp.ne.s32.totalorder %s222, %s225
      %p231 = scmp.eq.s32.totalorder %s18, 0
      %p232 = por %p230, %p231
      %p233 = scmp.ne.s32.totalorder %s222, %s225
      %p234 = scmp.eq.s32.totalorder %s23, 1
      %p235 = por %p233, %p234
      %p236 = scmp.ne.s32.totalorder %s225, %s226
      %p237 = scmp.eq.s32.totalorder %s23, 0
      %p238 = por %p236, %p237
      %p239 = scmp.ne.s32.totalorder %s225, %s226
      %p240 = scmp.eq.s32.totalorder %s24, 1
      %p241 = por %p239, %p240
      %p243 = scmp.ne.s32.totalorder %s226, %s242
      %p244 = scmp.eq.s32.totalorder %s24, 0
      %p245 = por %p243, %p244
      %p246 = scmp.le.s32.totalorder 1, %s18
      %p247 = scmp.lt.s32.totalorder %s18, 3
      %p248 = pnand %p246, %p247
      %p249 = pneg %p248
      // Predicated region
      $region9: #{tpu_custom_call.1} parent=5 // pred_check
        _
      $region10: #{tpu_custom_call.1} parent=5 // pred_check_branch
        %251 = sbr.rel (%p248) target = $region12
      $region11: #{tpu_custom_call.1} parent=5 // pred_region
        %s252 = ssub.s32 %s18, 1
        // Predicated region
        $region13: #{tpu_custom_call.1} parent=11 // pred_check
          %p253 = pneg %p65
        $region14: #{tpu_custom_call.1} parent=11 // pred_check_branch
          %255 = sbr.rel (%p253) target = $region16
        $region15: #{tpu_custom_call.1} parent=11 // pred_region
          _
        $region16: #{tpu_custom_call.1} parent=11 // pred_fallthru
          _
        // Predicated region
        $region17: #{tpu_custom_call.1} parent=11 // pred_check
          %p256 = pneg %p86
        $region18: #{tpu_custom_call.1} parent=11 // pred_check_branch
          %258 = sbr.rel (%p256) target = $region20
        $region19: #{tpu_custom_call.1} parent=11 // pred_region
          _
        $region20: #{tpu_custom_call.1} parent=11 // pred_fallthru
          _
        // Predicated region
        $region21: #{tpu_custom_call.1} parent=11 // pred_check
          %p259 = pneg %p107
        $region22: #{tpu_custom_call.1} parent=11 // pred_check_branch
          %261 = sbr.rel (%p259) target = $region24
        $region23: #{tpu_custom_call.1} parent=11 // pred_region
          _
        $region24: #{tpu_custom_call.1} parent=11 // pred_fallthru
          _
        // Predicated region
        $region25: #{tpu_custom_call.1} parent=11 // pred_check
          %p262 = pneg %p128
        $region26: #{tpu_custom_call.1} parent=11 // pred_check_branch
          %264 = sbr.rel (%p262) target = $region28
        $region27: #{tpu_custom_call.1} parent=11 // pred_region
          _
        $region28: #{tpu_custom_call.1} parent=11 // pred_fallthru
          _
        // Predicated region
        $region29: #{tpu_custom_call.1} parent=11 // pred_check
          %p265 = pneg %p149
        $region30: #{tpu_custom_call.1} parent=11 // pred_check_branch
          %267 = sbr.rel (%p265) target = $region32
        $region31: #{tpu_custom_call.1} parent=11 // pred_region
          _
        $region32: #{tpu_custom_call.1} parent=11 // pred_fallthru
          _
        // Predicated region
        $region33: #{tpu_custom_call.1} parent=11 // pred_check
          %p268 = pneg %p170
        $region34: #{tpu_custom_call.1} parent=11 // pred_check_branch
          %270 = sbr.rel (%p268) target = $region36
        $region35: #{tpu_custom_call.1} parent=11 // pred_region
          _
        $region36: #{tpu_custom_call.1} parent=11 // pred_fallthru
          _
        // Predicated region
        $region37: #{tpu_custom_call.1} parent=11 // pred_check
          %p271 = pneg %p191
        $region38: #{tpu_custom_call.1} parent=11 // pred_check_branch
          %273 = sbr.rel (%p271) target = $region40
        $region39: #{tpu_custom_call.1} parent=11 // pred_region
          _
        $region40: #{tpu_custom_call.1} parent=11 // pred_fallthru
          _
        // Predicated region
        $region41: #{tpu_custom_call.1} parent=11 // pred_check
          %p274 = pneg %p212
        $region42: #{tpu_custom_call.1} parent=11 // pred_check_branch
          %276 = sbr.rel (%p274) target = $region44
        $region43: #{tpu_custom_call.1} parent=11 // pred_region
          _
        $region44: #{tpu_custom_call.1} parent=11 // pred_fallthru
          _
      $region12: #{tpu_custom_call.1} parent=5 // pred_fallthru
        _
      %p277 = scmp.lt.s32.totalorder %s18, 2
      // Predicated region
      $region45: #{tpu_custom_call.1} parent=5 // pred_check
        %p278 = pneg %p277
      $region46: #{tpu_custom_call.1} parent=5 // pred_check_branch
        %280 = sbr.rel (%p278) target = $region48
      $region47: #{tpu_custom_call.1} parent=5 // pred_region
        // Predicated region
        $region49: #{tpu_custom_call.1} parent=47 // pred_check
          %p281 = pneg %p38
        $region50: #{tpu_custom_call.1} parent=47 // pred_check_branch
          %283 = sbr.rel (%p281) target = $region52
        $region51: #{tpu_custom_call.1} parent=47 // pred_region
          %p284 = scmp.lt.s32.totalorder %s18, 1
          %s285 = scalar_select %p284, %s18, 1
          %s286 = smul.addr %s285, 8
          %s287 = scalar_lea.vmem %s0, %s286
        $region52: #{tpu_custom_call.1} parent=47 // pred_fallthru
          _
      $region48: #{tpu_custom_call.1} parent=5 // pred_fallthru
        _
      %p288 = scmp.le.s32.totalorder 1, %s18
      %p289 = scmp.lt.s32.totalorder %s18, 3
      %p290 = pnand %p288, %p289
      %p291 = pneg %p290
      // Predicated region
      $region53: #{tpu_custom_call.1} parent=5 // pred_check
        _
      $region54: #{tpu_custom_call.1} parent=5 // pred_check_branch
        %293 = sbr.rel (%p290) target = $region56
      $region55: #{tpu_custom_call.1} parent=5 // pred_region
        %s294 = ssub.s32 %s18, 1
        %p295 = scmp.lt.s32.totalorder %s23, 1
        %s296 = scalar_select %p295, %s23, 1
        %s297 = smul.addr %s296, 8
        %s298 = scalar_lea.vmem %s0, %s297
        %p299 = pneg %p44
        %p300 = pneg %p41
        %p301 = pneg %p65
        %p302 = pneg %p62
        %p303 = pneg %p86
        %p304 = pneg %p83
        %p305 = pneg %p107
        %p306 = pneg %p104
        %p307 = pneg %p128
        %p308 = pneg %p125
        %p309 = pneg %p149
        %p310 = pneg %p146
        %p311 = pneg %p170
        %p312 = pneg %p167
        %p313 = pneg %p191
        %p314 = pneg %p188
        %p315 = pneg %p212
        %p316 = pneg %p209
        %p317 = pneg %p238
        %p318 = pneg %p235
        %s319 = sand.u32 %s225, 1
        %s320 = scalar_lea.sflag [#allocation3], %s319
        %s321 = sand.u32 %s225, 1
        %s322 = smul.addr %s321, 8
        %s323 = scalar_lea.vmem [#allocation2], %s322
        %p324 = scmp.lt.s32.totalorder %s23, 1
        %s325 = scalar_select %p324, %s23, 1
        %s326 = smul.addr %s325, 8
        %s327 = scalar_lea.vmem %s0, %s326
        %v328 = vld [vmem:[%s1] sm:$0xff]
        %v329 = vld [vmem:[%s1 + $0x8] sm:$0xff]
        %v330 = vld [vmem:[%s1 + $0x10] sm:$0xff]
        %v331 = vld [vmem:[%s1 + $0x18] sm:$0xff]
        %v332 = vld [vmem:[%s2] sm:$0xff]
        %v333 = vld [vmem:[%s2 + $0x8] sm:$0xff]
        %v334 = vld [vmem:[%s2 + $0x10] sm:$0xff]
        %v335 = vld [vmem:[%s2 + $0x18] sm:$0xff]
        %v336 = vld [vmem:[%s2 + $0x20] sm:$0xff]
        %v337 = vld [vmem:[%s2 + $0x28] sm:$0xff]
        %v338 = vld [vmem:[%s2 + $0x30] sm:$0xff]
        %v339 = vld [vmem:[%s2 + $0x38] sm:$0xff]
        %v340 = vld [vmem:[%s2 + $0x40] sm:$0xff]
        %v341 = vld [vmem:[%s2 + $0x48] sm:$0xff]
        %v342 = vld [vmem:[%s2 + $0x50] sm:$0xff]
        %v343 = vld [vmem:[%s2 + $0x58] sm:$0xff]
        %v344 = vld [vmem:[%s2 + $0x60] sm:$0xff]
        %v345 = vld [vmem:[%s2 + $0x68] sm:$0xff]
        %v346 = vld [vmem:[%s2 + $0x70] sm:$0xff]
        %v347 = vld [vmem:[%s2 + $0x78] sm:$0xff]
        %v348 = vld [vmem:[%s2 + $0x80] sm:$0xff]
        %v349 = vld [vmem:[%s2 + $0x88] sm:$0xff]
        %v350 = vld [vmem:[%s2 + $0x90] sm:$0xff]
        %v351 = vld [vmem:[%s2 + $0x98] sm:$0xff]
        %v352 = vld [vmem:[%s2 + $0xa0] sm:$0xff]
        %v353 = vld [vmem:[%s2 + $0xa8] sm:$0xff]
        %v354 = vld [vmem:[%s2 + $0xb0] sm:$0xff]
        %v355 = vld [vmem:[%s2 + $0xb8] sm:$0xff]
        %v356 = vld [vmem:[%s2 + $0xc0] sm:$0xff]
        %v357 = vld [vmem:[%s2 + $0xc8] sm:$0xff]
        %v358 = vld [vmem:[%s2 + $0xd0] sm:$0xff]
        %v359 = vld [vmem:[%s2 + $0xd8] sm:$0xff]
        %v360 = vld [vmem:[%s2 + $0xe0] sm:$0xff]
        %v361 = vld [vmem:[%s2 + $0xe8] sm:$0xff]
        %v362 = vld [vmem:[%s2 + $0xf0] sm:$0xff]
        %v363 = vld [vmem:[%s2 + $0xf8] sm:$0xff]
        %v364 = vld [vmem:[%s5] sm:$0xff]
        %v365 = vld [vmem:[%s5 + $0x8] sm:$0xff]
        %v366 = vld [vmem:[%s5 + $0x10] sm:$0xff]
        %v367 = vld [vmem:[%s5 + $0x18] sm:$0xff]
        %v368 = vld [vmem:[%s5 + $0x20] sm:$0xff]
        %v369 = vld [vmem:[%s5 + $0x28] sm:$0xff]
        %v370 = vld [vmem:[%s5 + $0x30] sm:$0xff]
        %v371 = vld [vmem:[%s5 + $0x38] sm:$0xff]
        %v372 = vld [vmem:[%s5 + $0x40] sm:$0xff]
        %v373 = vld [vmem:[%s5 + $0x48] sm:$0xff]
        %v374 = vld [vmem:[%s5 + $0x50] sm:$0xff]
        %v375 = vld [vmem:[%s5 + $0x58] sm:$0xff]
        %v376 = vld [vmem:[%s5 + $0x60] sm:$0xff]
        %v377 = vld [vmem:[%s5 + $0x68] sm:$0xff]
        %v378 = vld [vmem:[%s5 + $0x70] sm:$0xff]
        %v379 = vld [vmem:[%s5 + $0x78] sm:$0xff]
        %v380 = vld [vmem:[%s5 + $0x80] sm:$0xff]
        %v381 = vld [vmem:[%s5 + $0x88] sm:$0xff]
        %v382 = vld [vmem:[%s5 + $0x90] sm:$0xff]
        %v383 = vld [vmem:[%s5 + $0x98] sm:$0xff]
        %v384 = vld [vmem:[%s5 + $0xa0] sm:$0xff]
        %v385 = vld [vmem:[%s5 + $0xa8] sm:$0xff]
        %v386 = vld [vmem:[%s5 + $0xb0] sm:$0xff]
        %v387 = vld [vmem:[%s5 + $0xb8] sm:$0xff]
        %v388 = vld [vmem:[%s5 + $0xc0] sm:$0xff]
        %v389 = vld [vmem:[%s5 + $0xc8] sm:$0xff]
        %v390 = vld [vmem:[%s5 + $0xd0] sm:$0xff]
        %v391 = vld [vmem:[%s5 + $0xd8] sm:$0xff]
        %v392 = vld [vmem:[%s5 + $0xe0] sm:$0xff]
        %v393 = vld [vmem:[%s5 + $0xe8] sm:$0xff]
        %v394 = vld [vmem:[%s5 + $0xf0] sm:$0xff]
        %v395 = vld [vmem:[%s5 + $0xf8] sm:$0xff]
        %v396 = vld [vmem:[%s6] sm:$0xff]
        %v397 = vld [vmem:[%s6 + $0x8] sm:$0xff]
        %v398 = vld [vmem:[%s6 + $0x10] sm:$0xff]
        %v399 = vld [vmem:[%s6 + $0x18] sm:$0xff]
        %v400 = vld [vmem:[%s6 + $0x20] sm:$0xff]
        %v401 = vld [vmem:[%s6 + $0x28] sm:$0xff]
        %v402 = vld [vmem:[%s6 + $0x30] sm:$0xff]
        %v403 = vld [vmem:[%s6 + $0x38] sm:$0xff]
        %v404 = vld [vmem:[%s6 + $0x40] sm:$0xff]
        %v405 = vld [vmem:[%s6 + $0x48] sm:$0xff]
        %v406 = vld [vmem:[%s6 + $0x50] sm:$0xff]
        %v407 = vld [vmem:[%s6 + $0x58] sm:$0xff]
        %v408 = vld [vmem:[%s6 + $0x60] sm:$0xff]
        %v409 = vld [vmem:[%s6 + $0x68] sm:$0xff]
        %v410 = vld [vmem:[%s6 + $0x70] sm:$0xff]
        %v411 = vld [vmem:[%s6 + $0x78] sm:$0xff]
        %v412 = vld [vmem:[%s6 + $0x80] sm:$0xff]
        %v413 = vld [vmem:[%s6 + $0x88] sm:$0xff]
        %v414 = vld [vmem:[%s6 + $0x90] sm:$0xff]
        %v415 = vld [vmem:[%s6 + $0x98] sm:$0xff]
        %v416 = vld [vmem:[%s6 + $0xa0] sm:$0xff]
        %v417 = vld [vmem:[%s6 + $0xa8] sm:$0xff]
        %v418 = vld [vmem:[%s6 + $0xb0] sm:$0xff]
        %v419 = vld [vmem:[%s6 + $0xb8] sm:$0xff]
        %v420 = vld [vmem:[%s6 + $0xc0] sm:$0xff]
        %v421 = vld [vmem:[%s6 + $0xc8] sm:$0xff]
        %v422 = vld [vmem:[%s6 + $0xd0] sm:$0xff]
        %v423 = vld [vmem:[%s6 + $0xd8] sm:$0xff]
        %v424 = vld [vmem:[%s6 + $0xe0] sm:$0xff]
        %v425 = vld [vmem:[%s6 + $0xe8] sm:$0xff]
        %v426 = vld [vmem:[%s6 + $0xf0] sm:$0xff]
        %v427 = vld [vmem:[%s6 + $0xf8] sm:$0xff]
        %v428 = vld [vmem:[%s7] sm:$0xff]
        %v429 = vld [vmem:[%s7 + $0x8] sm:$0xff]
        %v430 = vld [vmem:[%s7 + $0x10] sm:$0xff]
        %v431 = vld [vmem:[%s7 + $0x18] sm:$0xff]
        %v432 = vld [vmem:[%s7 + $0x20] sm:$0xff]
        %v433 = vld [vmem:[%s7 + $0x28] sm:$0xff]
        %v434 = vld [vmem:[%s7 + $0x30] sm:$0xff]
        %v435 = vld [vmem:[%s7 + $0x38] sm:$0xff]
        %v436 = vld [vmem:[%s8] sm:$0x1]
        %v437 = vld [vmem:[%s327] sm:$0xff]
        %vm438 = vcmask 261120
        %v439 = vsel %vm438, %v437, 0.0
        %440 = vadd.xlane.f32.xlu0 %v439
        %v441 = vpop.xlane.xlu0 %440
        %v442 = vrcp.pop 32.0
        %v443 = vmul.f32 %v441, %v442
        %v444 = vsub.f32 %v437, %v443
        %v445 = vmul.f32 %v444, %v444
        %v446 = vsel %vm438, %v445, 0.0
        %447 = vadd.xlane.f32.xlu0 %v446
        %v448 = vpop.xlane.xlu0 %447
        %v449 = vmul.f32 %v448, %v442
        %v450 = vadd.f32 %v449, 1e-05
        %v451 = vrsqrt.pop %v450
        %v452 = vmul.f32 %v444, %v451
        %v453 = vld [vmem:[%s3] sm:$0x1]
        %v455 = vlaneseq
        %v456 = vshrl.u32 %v455, 7
        %v457 = vsub.s32 0, %v456
        %v458 = vrot.slane %v453, %v457
        %v460 = vmul.f32 %v452, %v458
        %v461 = vld [vmem:[%s4] sm:$0x1]
        %v463 = vlaneseq
        %v464 = vshrl.u32 %v463, 7
        %v465 = vsub.s32 0, %v464
        %v466 = vrot.slane %v461, %v465
        %v468 = vadd.f32 %v460, %v466
        %v470 = vsel %vm438, %v468, 0
        %472 = vmatprep.subr.mxu0 0.0
        %473 = vmatpush1.msra.mxu0 0.0
        %474 = vmatprep.subr.mxu0 0.0
        %475 = vmatpush1.msra.mxu0 0.0
        %476 = vmatprep.subr.mxu0 0.0
        %477 = vmatpush1.msra.mxu0 0.0
        %478 = vmatprep.subr.mxu0 0.0
        %479 = vmatpush1.msra.mxu0 0.0
        %480 = vmatprep.subr.mxu0 0.0
        %481 = vmatpush1.msra.mxu0 0.0
        %482 = vmatprep.subr.mxu0 0.0
        %483 = vmatpush1.msra.mxu0 0.0
        %484 = vmatprep.subr.mxu0 0.0
        %485 = vmatpush1.msra.mxu0 0.0
        %486 = vmatprep.subr.mxu0 0.0
        %487 = vmatpush1.msra.mxu0 0.0
        %488 = vmatprep.subr.mxu0 0.0
        %489 = vmatpush1.msra.mxu0 0.0
        %490 = vmatprep.subr.mxu0 0.0
        %491 = vmatpush1.msra.mxu0 0.0
        %492 = vmatprep.subr.mxu0 0.0
        %493 = vmatpush1.msra.mxu0 0.0
        %494 = vmatprep.subr.mxu0 0.0
        %495 = vmatpush1.msra.mxu0 0.0
        %496 = vmatprep.subr.mxu0 0.0
        %497 = vmatpush1.msra.mxu0 %v367
        %498 = vmatprep.subr.mxu0 0.0
        %499 = vmatpush1.msra.mxu0 %v366
        %500 = vmatprep.subr.mxu0 0.0
        %501 = vmatpush1.msra.mxu0 %v365
        %502 = vmatprep.subr.mxu0 0.0
        %503 = vmatpush1.msra.mxu0 %v364
        %504 = vmatprep.subr.mxu0 0.0
        %505 = vmatpush2.msra.mxu0 0.0
        %506 = vmatprep.subr.mxu0 0.0
        %507 = vmatpush2.msra.mxu0 0.0
        %508 = vmatprep.subr.mxu0 0.0
        %509 = vmatpush2.msra.mxu0 0.0
        %510 = vmatprep.subr.mxu0 0.0
        %511 = vmatpush2.msra.mxu0 0.0
        %512 = vmatprep.subr.mxu0 0.0
        %513 = vmatpush2.msra.mxu0 0.0
        %514 = vmatprep.subr.mxu0 0.0
        %515 = vmatpush2.msra.mxu0 0.0
        %516 = vmatprep.subr.mxu0 0.0
        %517 = vmatpush2.msra.mxu0 0.0
        %518 = vmatprep.subr.mxu0 0.0
        %519 = vmatpush2.msra.mxu0 0.0
        %520 = vmatprep.subr.mxu0 0.0
        %521 = vmatpush2.msra.mxu0 0.0
        %522 = vmatprep.subr.mxu0 0.0
        %523 = vmatpush2.msra.mxu0 0.0
        %524 = vmatprep.subr.mxu0 0.0
        %525 = vmatpush2.msra.mxu0 0.0
        %526 = vmatprep.subr.mxu0 0.0
        %527 = vmatpush2.msra.mxu0 0.0
        %528 = vmatprep.subr.mxu0 0.0
        %529 = vmatpush2.msra.mxu0 0.0
        %530 = vmatprep.subr.mxu0 0.0
        %531 = vmatpush2.msra.mxu0 0.0
        %532 = vmatprep.subr.mxu0 0.0
        %533 = vmatpush2.msra.mxu0 0.0
        %534 = vmatprep.subr.mxu0 0.0
        %535 = vmatpush2.msra.mxu0 0.0
        %536 = vmatprep.mubr.f32.mxu0 0.0
        %537 = vmatmul.mubr.f32.gmra.mxu0 %v470
        %v538 = vpop.f32.mrf.mxu0
        %v539 = vadd.f32 0.0, %v538
        %v540 = vpop.f32.mrf.mxu0
        %541 = vdwg.mxu0
        %542 = vmatprep.subr.mxu0 0.0
        %543 = vmatpush1.msra.mxu0 0.0
        %544 = vmatprep.subr.mxu0 0.0
        %545 = vmatpush1.msra.mxu0 0.0
        %546 = vmatprep.subr.mxu0 0.0
        %547 = vmatpush1.msra.mxu0 0.0
        %548 = vmatprep.subr.mxu0 0.0
        %549 = vmatpush1.msra.mxu0 0.0
        %550 = vmatprep.subr.mxu0 0.0
        %551 = vmatpush1.msra.mxu0 0.0
        %552 = vmatprep.subr.mxu0 0.0
        %553 = vmatpush1.msra.mxu0 0.0
        %554 = vmatprep.subr.mxu0 0.0
        %555 = vmatpush1.msra.mxu0 0.0
        %556 = vmatprep.subr.mxu0 0.0
        %557 = vmatpush1.msra.mxu0 0.0
        %558 = vmatprep.subr.mxu0 0.0
        %559 = vmatpush1.msra.mxu0 0.0
        %560 = vmatprep.subr.mxu0 0.0
        %561 = vmatpush1.msra.mxu0 0.0
        %562 = vmatprep.subr.mxu0 0.0
        %563 = vmatpush1.msra.mxu0 0.0
        %564 = vmatprep.subr.mxu0 0.0
        %565 = vmatpush1.msra.mxu0 0.0
        %566 = vmatprep.subr.mxu0 0.0
        %567 = vmatpush1.msra.mxu0 %v371
        %568 = vmatprep.subr.mxu0 0.0
        %569 = vmatpush1.msra.mxu0 %v370
        %570 = vmatprep.subr.mxu0 0.0
        %571 = vmatpush1.msra.mxu0 %v369
        %572 = vmatprep.subr.mxu0 0.0
        %573 = vmatpush1.msra.mxu0 %v368
        %574 = vmatprep.subr.mxu0 0.0
        %575 = vmatpush2.msra.mxu0 0.0
        %576 = vmatprep.subr.mxu0 0.0
        %577 = vmatpush2.msra.mxu0 0.0
        %578 = vmatprep.subr.mxu0 0.0
        %579 = vmatpush2.msra.mxu0 0.0
        %580 = vmatprep.subr.mxu0 0.0
        %581 = vmatpush2.msra.mxu0 0.0
        %582 = vmatprep.subr.mxu0 0.0
        %583 = vmatpush2.msra.mxu0 0.0
        %584 = vmatprep.subr.mxu0 0.0
        %585 = vmatpush2.msra.mxu0 0.0
        %586 = vmatprep.subr.mxu0 0.0
        %587 = vmatpush2.msra.mxu0 0.0
        %588 = vmatprep.subr.mxu0 0.0
        %589 = vmatpush2.msra.mxu0 0.0
        %590 = vmatprep.subr.mxu0 0.0
        %591 = vmatpush2.msra.mxu0 0.0
        %592 = vmatprep.subr.mxu0 0.0
        %593 = vmatpush2.msra.mxu0 0.0
        %594 = vmatprep.subr.mxu0 0.0
        %595 = vmatpush2.msra.mxu0 0.0
        %596 = vmatprep.subr.mxu0 0.0
        %597 = vmatpush2.msra.mxu0 0.0
        %598 = vmatprep.subr.mxu0 0.0
        %599 = vmatpush2.msra.mxu0 0.0
        %600 = vmatprep.subr.mxu0 0.0
        %601 = vmatpush2.msra.mxu0 0.0
        %602 = vmatprep.subr.mxu0 0.0
        %603 = vmatpush2.msra.mxu0 0.0
        %604 = vmatprep.subr.mxu0 0.0
        %605 = vmatpush2.msra.mxu0 0.0
        %606 = vmatprep.mubr.f32.mxu0 0.0
        %607 = vmatmul.mubr.f32.gmra.mxu0 %v470
        %v608 = vpop.f32.mrf.mxu0
        %v609 = vadd.f32 0.0, %v608
        %v610 = vpop.f32.mrf.mxu0
        %611 = vdwg.mxu0
        %612 = vmatprep.subr.mxu0 0.0
        %613 = vmatpush1.msra.mxu0 0.0
        %614 = vmatprep.subr.mxu0 0.0
        %615 = vmatpush1.msra.mxu0 0.0
        %616 = vmatprep.subr.mxu0 0.0
        %617 = vmatpush1.msra.mxu0 0.0
        %618 = vmatprep.subr.mxu0 0.0
        %619 = vmatpush1.msra.mxu0 0.0
        %620 = vmatprep.subr.mxu0 0.0
        %621 = vmatpush1.msra.mxu0 0.0
        %622 = vmatprep.subr.mxu0 0.0
        %623 = vmatpush1.msra.mxu0 0.0
        %624 = vmatprep.subr.mxu0 0.0
        %625 = vmatpush1.msra.mxu0 0.0
        %626 = vmatprep.subr.mxu0 0.0
        %627 = vmatpush1.msra.mxu0 0.0
        %628 = vmatprep.subr.mxu0 0.0
        %629 = vmatpush1.msra.mxu0 0.0
        %630 = vmatprep.subr.mxu0 0.0
        %631 = vmatpush1.msra.mxu0 0.0
        %632 = vmatprep.subr.mxu0 0.0
        %633 = vmatpush1.msra.mxu0 0.0
        %634 = vmatprep.subr.mxu0 0.0
        %635 = vmatpush1.msra.mxu0 0.0
        %636 = vmatprep.subr.mxu0 0.0
        %637 = vmatpush1.msra.mxu0 %v375
        %638 = vmatprep.subr.mxu0 0.0
        %639 = vmatpush1.msra.mxu0 %v374
        %640 = vmatprep.subr.mxu0 0.0
        %641 = vmatpush1.msra.mxu0 %v373
        %642 = vmatprep.subr.mxu0 0.0
        %643 = vmatpush1.msra.mxu0 %v372
        %644 = vmatprep.subr.mxu0 0.0
        %645 = vmatpush2.msra.mxu0 0.0
        %646 = vmatprep.subr.mxu0 0.0
        %647 = vmatpush2.msra.mxu0 0.0
        %648 = vmatprep.subr.mxu0 0.0
        %649 = vmatpush2.msra.mxu0 0.0
        %650 = vmatprep.subr.mxu0 0.0
        %651 = vmatpush2.msra.mxu0 0.0
        %652 = vmatprep.subr.mxu0 0.0
        %653 = vmatpush2.msra.mxu0 0.0
        %654 = vmatprep.subr.mxu0 0.0
        %655 = vmatpush2.msra.mxu0 0.0
        %656 = vmatprep.subr.mxu0 0.0
        %657 = vmatpush2.msra.mxu0 0.0
        %658 = vmatprep.subr.mxu0 0.0
        %659 = vmatpush2.msra.mxu0 0.0
        %660 = vmatprep.subr.mxu0 0.0
        %661 = vmatpush2.msra.mxu0 0.0
        %662 = vmatprep.subr.mxu0 0.0
        %663 = vmatpush2.msra.mxu0 0.0
        %664 = vmatprep.subr.mxu0 0.0
        %665 = vmatpush2.msra.mxu0 0.0
        %666 = vmatprep.subr.mxu0 0.0
        %667 = vmatpush2.msra.mxu0 0.0
        %668 = vmatprep.subr.mxu0 0.0
        %669 = vmatpush2.msra.mxu0 0.0
        %670 = vmatprep.subr.mxu0 0.0
        %671 = vmatpush2.msra.mxu0 0.0
        %672 = vmatprep.subr.mxu0 0.0
        %673 = vmatpush2.msra.mxu0 0.0
        %674 = vmatprep.subr.mxu0 0.0
        %675 = vmatpush2.msra.mxu0 0.0
        %676 = vmatprep.mubr.f32.mxu0 0.0
        %677 = vmatmul.mubr.f32.gmra.mxu0 %v470
        %v678 = vpop.f32.mrf.mxu0
        %v679 = vadd.f32 0.0, %v678
        %v680 = vpop.f32.mrf.mxu0
        %681 = vdwg.mxu0
        %682 = vmatprep.subr.mxu0 0.0
        %683 = vmatpush1.msra.mxu0 0.0
        %684 = vmatprep.subr.mxu0 0.0
        %685 = vmatpush1.msra.mxu0 0.0
        %686 = vmatprep.subr.mxu0 0.0
        %687 = vmatpush1.msra.mxu0 0.0
        %688 = vmatprep.subr.mxu0 0.0
        %689 = vmatpush1.msra.mxu0 0.0
        %690 = vmatprep.subr.mxu0 0.0
        %691 = vmatpush1.msra.mxu0 0.0
        %692 = vmatprep.subr.mxu0 0.0
        %693 = vmatpush1.msra.mxu0 0.0
        %694 = vmatprep.subr.mxu0 0.0
        %695 = vmatpush1.msra.mxu0 0.0
        %696 = vmatprep.subr.mxu0 0.0
        %697 = vmatpush1.msra.mxu0 0.0
        %698 = vmatprep.subr.mxu0 0.0
        %699 = vmatpush1.msra.mxu0 0.0
        %700 = vmatprep.subr.mxu0 0.0
        %701 = vmatpush1.msra.mxu0 0.0
        %702 = vmatprep.subr.mxu0 0.0
        %703 = vmatpush1.msra.mxu0 0.0
        %704 = vmatprep.subr.mxu0 0.0
        %705 = vmatpush1.msra.mxu0 0.0
        %706 = vmatprep.subr.mxu0 0.0
        %707 = vmatpush1.msra.mxu0 %v379
        %708 = vmatprep.subr.mxu0 0.0
        %709 = vmatpush1.msra.mxu0 %v378
        %710 = vmatprep.subr.mxu0 0.0
        %711 = vmatpush1.msra.mxu0 %v377
        %712 = vmatprep.subr.mxu0 0.0
        %713 = vmatpush1.msra.mxu0 %v376
        %714 = vmatprep.subr.mxu0 0.0
        %715 = vmatpush2.msra.mxu0 0.0
        %716 = vmatprep.subr.mxu0 0.0
        %717 = vmatpush2.msra.mxu0 0.0
        %718 = vmatprep.subr.mxu0 0.0
        %719 = vmatpush2.msra.mxu0 0.0
        %720 = vmatprep.subr.mxu0 0.0
        %721 = vmatpush2.msra.mxu0 0.0
        %722 = vmatprep.subr.mxu0 0.0
        %723 = vmatpush2.msra.mxu0 0.0
        %724 = vmatprep.subr.mxu0 0.0
        %725 = vmatpush2.msra.mxu0 0.0
        %726 = vmatprep.subr.mxu0 0.0
        %727 = vmatpush2.msra.mxu0 0.0
        %728 = vmatprep.subr.mxu0 0.0
        %729 = vmatpush2.msra.mxu0 0.0
        %730 = vmatprep.subr.mxu0 0.0
        %731 = vmatpush2.msra.mxu0 0.0
        %732 = vmatprep.subr.mxu0 0.0
        %733 = vmatpush2.msra.mxu0 0.0
        %734 = vmatprep.subr.mxu0 0.0
        %735 = vmatpush2.msra.mxu0 0.0
        %736 = vmatprep.subr.mxu0 0.0
        %737 = vmatpush2.msra.mxu0 0.0
        %738 = vmatprep.subr.mxu0 0.0
        %739 = vmatpush2.msra.mxu0 0.0
        %740 = vmatprep.subr.mxu0 0.0
        %741 = vmatpush2.msra.mxu0 0.0
        %742 = vmatprep.subr.mxu0 0.0
        %743 = vmatpush2.msra.mxu0 0.0
        %744 = vmatprep.subr.mxu0 0.0
        %745 = vmatpush2.msra.mxu0 0.0
        %746 = vmatprep.mubr.f32.mxu0 0.0
        %747 = vmatmul.mubr.f32.gmra.mxu0 %v470
        %v748 = vpop.f32.mrf.mxu0
        %v749 = vadd.f32 0.0, %v748
        %v750 = vpop.f32.mrf.mxu0
        %751 = vdwg.mxu0
        %752 = vmatprep.subr.mxu0 0.0
        %753 = vmatpush1.msra.mxu0 0.0
        %754 = vmatprep.subr.mxu0 0.0
        %755 = vmatpush1.msra.mxu0 0.0
        %756 = vmatprep.subr.mxu0 0.0
        %757 = vmatpush1.msra.mxu0 0.0
        %758 = vmatprep.subr.mxu0 0.0
        %759 = vmatpush1.msra.mxu0 0.0
        %760 = vmatprep.subr.mxu0 0.0
        %761 = vmatpush1.msra.mxu0 0.0
        %762 = vmatprep.subr.mxu0 0.0
        %763 = vmatpush1.msra.mxu0 0.0
        %764 = vmatprep.subr.mxu0 0.0
        %765 = vmatpush1.msra.mxu0 0.0
        %766 = vmatprep.subr.mxu0 0.0
        %767 = vmatpush1.msra.mxu0 0.0
        %768 = vmatprep.subr.mxu0 0.0
        %769 = vmatpush1.msra.mxu0 0.0
        %770 = vmatprep.subr.mxu0 0.0
        %771 = vmatpush1.msra.mxu0 0.0
        %772 = vmatprep.subr.mxu0 0.0
        %773 = vmatpush1.msra.mxu0 0.0
        %774 = vmatprep.subr.mxu0 0.0
        %775 = vmatpush1.msra.mxu0 0.0
        %776 = vmatprep.subr.mxu0 0.0
        %777 = vmatpush1.msra.mxu0 %v383
        %778 = vmatprep.subr.mxu0 0.0
        %779 = vmatpush1.msra.mxu0 %v382
        %780 = vmatprep.subr.mxu0 0.0
        %781 = vmatpush1.msra.mxu0 %v381
        %782 = vmatprep.subr.mxu0 0.0
        %783 = vmatpush1.msra.mxu0 %v380
        %784 = vmatprep.subr.mxu0 0.0
        %785 = vmatpush2.msra.mxu0 0.0
        %786 = vmatprep.subr.mxu0 0.0
        %787 = vmatpush2.msra.mxu0 0.0
        %788 = vmatprep.subr.mxu0 0.0
        %789 = vmatpush2.msra.mxu0 0.0
        %790 = vmatprep.subr.mxu0 0.0
        %791 = vmatpush2.msra.mxu0 0.0
        %792 = vmatprep.subr.mxu0 0.0
        %793 = vmatpush2.msra.mxu0 0.0
        %794 = vmatprep.subr.mxu0 0.0
        %795 = vmatpush2.msra.mxu0 0.0
        %796 = vmatprep.subr.mxu0 0.0
        %797 = vmatpush2.msra.mxu0 0.0
        %798 = vmatprep.subr.mxu0 0.0
        %799 = vmatpush2.msra.mxu0 0.0
        %800 = vmatprep.subr.mxu0 0.0
        %801 = vmatpush2.msra.mxu0 0.0
        %802 = vmatprep.subr.mxu0 0.0
        %803 = vmatpush2.msra.mxu0 0.0
        %804 = vmatprep.subr.mxu0 0.0
        %805 = vmatpush2.msra.mxu0 0.0
        %806 = vmatprep.subr.mxu0 0.0
        %807 = vmatpush2.msra.mxu0 0.0
        %808 = vmatprep.subr.mxu0 0.0
        %809 = vmatpush2.msra.mxu0 0.0
        %810 = vmatprep.subr.mxu0 0.0
        %811 = vmatpush2.msra.mxu0 0.0
        %812 = vmatprep.subr.mxu0 0.0
        %813 = vmatpush2.msra.mxu0 0.0
        %814 = vmatprep.subr.mxu0 0.0
        %815 = vmatpush2.msra.mxu0 0.0
        %816 = vmatprep.mubr.f32.mxu0 0.0
        %817 = vmatmul.mubr.f32.gmra.mxu0 %v470
        %v818 = vpop.f32.mrf.mxu0
        %v819 = vadd.f32 0.0, %v818
        %v820 = vpop.f32.mrf.mxu0
        %821 = vdwg.mxu0
        %822 = vmatprep.subr.mxu0 0.0
        %823 = vmatpush1.msra.mxu0 0.0
        %824 = vmatprep.subr.mxu0 0.0
        %825 = vmatpush1.msra.mxu0 0.0
        %826 = vmatprep.subr.mxu0 0.0
        %827 = vmatpush1.msra.mxu0 0.0
        %828 = vmatprep.subr.mxu0 0.0
        %829 = vmatpush1.msra.mxu0 0.0
        %830 = vmatprep.subr.mxu0 0.0
        %831 = vmatpush1.msra.mxu0 0.0
        %832 = vmatprep.subr.mxu0 0.0
        %833 = vmatpush1.msra.mxu0 0.0
        %834 = vmatprep.subr.mxu0 0.0
        %835 = vmatpush1.msra.mxu0 0.0
        %836 = vmatprep.subr.mxu0 0.0
        %837 = vmatpush1.msra.mxu0 0.0
        %838 = vmatprep.subr.mxu0 0.0
        %839 = vmatpush1.msra.mxu0 0.0
        %840 = vmatprep.subr.mxu0 0.0
        %841 = vmatpush1.msra.mxu0 0.0
        %842 = vmatprep.subr.mxu0 0.0
        %843 = vmatpush1.msra.mxu0 0.0
        %844 = vmatprep.subr.mxu0 0.0
        %845 = vmatpush1.msra.mxu0 0.0
        %846 = vmatprep.subr.mxu0 0.0
        %847 = vmatpush1.msra.mxu0 %v387
        %848 = vmatprep.subr.mxu0 0.0
        %849 = vmatpush1.msra.mxu0 %v386
        %850 = vmatprep.subr.mxu0 0.0
        %851 = vmatpush1.msra.mxu0 %v385
        %852 = vmatprep.subr.mxu0 0.0
        %853 = vmatpush1.msra.mxu0 %v384
        %854 = vmatprep.subr.mxu0 0.0
        %855 = vmatpush2.msra.mxu0 0.0
        %856 = vmatprep.subr.mxu0 0.0
        %857 = vmatpush2.msra.mxu0 0.0
        %858 = vmatprep.subr.mxu0 0.0
        %859 = vmatpush2.msra.mxu0 0.0
        %860 = vmatprep.subr.mxu0 0.0
        %861 = vmatpush2.msra.mxu0 0.0
        %862 = vmatprep.subr.mxu0 0.0
        %863 = vmatpush2.msra.mxu0 0.0
        %864 = vmatprep.subr.mxu0 0.0
        %865 = vmatpush2.msra.mxu0 0.0
        %866 = vmatprep.subr.mxu0 0.0
        %867 = vmatpush2.msra.mxu0 0.0
        %868 = vmatprep.subr.mxu0 0.0
        %869 = vmatpush2.msra.mxu0 0.0
        %870 = vmatprep.subr.mxu0 0.0
        %871 = vmatpush2.msra.mxu0 0.0
        %872 = vmatprep.subr.mxu0 0.0
        %873 = vmatpush2.msra.mxu0 0.0
        %874 = vmatprep.subr.mxu0 0.0
        %875 = vmatpush2.msra.mxu0 0.0
        %876 = vmatprep.subr.mxu0 0.0
        %877 = vmatpush2.msra.mxu0 0.0
        %878 = vmatprep.subr.mxu0 0.0
        %879 = vmatpush2.msra.mxu0 0.0
        %880 = vmatprep.subr.mxu0 0.0
        %881 = vmatpush2.msra.mxu0 0.0
        %882 = vmatprep.subr.mxu0 0.0
        %883 = vmatpush2.msra.mxu0 0.0
        %884 = vmatprep.subr.mxu0 0.0
        %885 = vmatpush2.msra.mxu0 0.0
        %886 = vmatprep.mubr.f32.mxu0 0.0
        %887 = vmatmul.mubr.f32.gmra.mxu0 %v470
        %v888 = vpop.f32.mrf.mxu0
        %v889 = vadd.f32 0.0, %v888
        %v890 = vpop.f32.mrf.mxu0
        %891 = vdwg.mxu0
        %892 = vmatprep.subr.mxu0 0.0
        %893 = vmatpush1.msra.mxu0 0.0
        %894 = vmatprep.subr.mxu0 0.0
        %895 = vmatpush1.msra.mxu0 0.0
        %896 = vmatprep.subr.mxu0 0.0
        %897 = vmatpush1.msra.mxu0 0.0
        %898 = vmatprep.subr.mxu0 0.0
        %899 = vmatpush1.msra.mxu0 0.0
        %900 = vmatprep.subr.mxu0 0.0
        %901 = vmatpush1.msra.mxu0 0.0
        %902 = vmatprep.subr.mxu0 0.0
        %903 = vmatpush1.msra.mxu0 0.0
        %904 = vmatprep.subr.mxu0 0.0
        %905 = vmatpush1.msra.mxu0 0.0
        %906 = vmatprep.subr.mxu0 0.0
        %907 = vmatpush1.msra.mxu0 0.0
        %908 = vmatprep.subr.mxu0 0.0
        %909 = vmatpush1.msra.mxu0 0.0
        %910 = vmatprep.subr.mxu0 0.0
        %911 = vmatpush1.msra.mxu0 0.0
        %912 = vmatprep.subr.mxu0 0.0
        %913 = vmatpush1.msra.mxu0 0.0
        %914 = vmatprep.subr.mxu0 0.0
        %915 = vmatpush1.msra.mxu0 0.0
        %916 = vmatprep.subr.mxu0 0.0
        %917 = vmatpush1.msra.mxu0 %v391
        %918 = vmatprep.subr.mxu0 0.0
        %919 = vmatpush1.msra.mxu0 %v390
        %920 = vmatprep.subr.mxu0 0.0
        %921 = vmatpush1.msra.mxu0 %v389
        %922 = vmatprep.subr.mxu0 0.0
        %923 = vmatpush1.msra.mxu0 %v388
        %924 = vmatprep.subr.mxu0 0.0
        %925 = vmatpush2.msra.mxu0 0.0
        %926 = vmatprep.subr.mxu0 0.0
        %927 = vmatpush2.msra.mxu0 0.0
        %928 = vmatprep.subr.mxu0 0.0
        %929 = vmatpush2.msra.mxu0 0.0
        %930 = vmatprep.subr.mxu0 0.0
        %931 = vmatpush2.msra.mxu0 0.0
        %932 = vmatprep.subr.mxu0 0.0
        %933 = vmatpush2.msra.mxu0 0.0
        %934 = vmatprep.subr.mxu0 0.0
        %935 = vmatpush2.msra.mxu0 0.0
        %936 = vmatprep.subr.mxu0 0.0
        %937 = vmatpush2.msra.mxu0 0.0
        %938 = vmatprep.subr.mxu0 0.0
        %939 = vmatpush2.msra.mxu0 0.0
        %940 = vmatprep.subr.mxu0 0.0
        %941 = vmatpush2.msra.mxu0 0.0
        %942 = vmatprep.subr.mxu0 0.0
        %943 = vmatpush2.msra.mxu0 0.0
        %944 = vmatprep.subr.mxu0 0.0
        %945 = vmatpush2.msra.mxu0 0.0
        %946 = vmatprep.subr.mxu0 0.0
        %947 = vmatpush2.msra.mxu0 0.0
        %948 = vmatprep.subr.mxu0 0.0
        %949 = vmatpush2.msra.mxu0 0.0
        %950 = vmatprep.subr.mxu0 0.0
        %951 = vmatpush2.msra.mxu0 0.0
        %952 = vmatprep.subr.mxu0 0.0
        %953 = vmatpush2.msra.mxu0 0.0
        %954 = vmatprep.subr.mxu0 0.0
        %955 = vmatpush2.msra.mxu0 0.0
        %956 = vmatprep.mubr.f32.mxu0 0.0
        %957 = vmatmul.mubr.f32.gmra.mxu0 %v470
        %v958 = vpop.f32.mrf.mxu0
        %v959 = vadd.f32 0.0, %v958
        %v960 = vpop.f32.mrf.mxu0
        %961 = vdwg.mxu0
        %962 = vmatprep.subr.mxu0 0.0
        %963 = vmatpush1.msra.mxu0 0.0
        %964 = vmatprep.subr.mxu0 0.0
        %965 = vmatpush1.msra.mxu0 0.0
        %966 = vmatprep.subr.mxu0 0.0
        %967 = vmatpush1.msra.mxu0 0.0
        %968 = vmatprep.subr.mxu0 0.0
        %969 = vmatpush1.msra.mxu0 0.0
        %970 = vmatprep.subr.mxu0 0.0
        %971 = vmatpush1.msra.mxu0 0.0
        %972 = vmatprep.subr.mxu0 0.0
        %973 = vmatpush1.msra.mxu0 0.0
        %974 = vmatprep.subr.mxu0 0.0
        %975 = vmatpush1.msra.mxu0 0.0
        %976 = vmatprep.subr.mxu0 0.0
        %977 = vmatpush1.msra.mxu0 0.0
        %978 = vmatprep.subr.mxu0 0.0
        %979 = vmatpush1.msra.mxu0 0.0
        %980 = vmatprep.subr.mxu0 0.0
        %981 = vmatpush1.msra.mxu0 0.0
        %982 = vmatprep.subr.mxu0 0.0
        %983 = vmatpush1.msra.mxu0 0.0
        %984 = vmatprep.subr.mxu0 0.0
        %985 = vmatpush1.msra.mxu0 0.0
        %986 = vmatprep.subr.mxu0 0.0
        %987 = vmatpush1.msra.mxu0 %v395
        %988 = vmatprep.subr.mxu0 0.0
        %989 = vmatpush1.msra.mxu0 %v394
        %990 = vmatprep.subr.mxu0 0.0
        %991 = vmatpush1.msra.mxu0 %v393
        %992 = vmatprep.subr.mxu0 0.0
        %993 = vmatpush1.msra.mxu0 %v392
        %994 = vmatprep.subr.mxu0 0.0
        %995 = vmatpush2.msra.mxu0 0.0
        %996 = vmatprep.subr.mxu0 0.0
        %997 = vmatpush2.msra.mxu0 0.0
        %998 = vmatprep.subr.mxu0 0.0
        %999 = vmatpush2.msra.mxu0 0.0
        %1000 = vmatprep.subr.mxu0 0.0
        %1001 = vmatpush2.msra.mxu0 0.0
        %1002 = vmatprep.subr.mxu0 0.0
        %1003 = vmatpush2.msra.mxu0 0.0
        %1004 = vmatprep.subr.mxu0 0.0
        %1005 = vmatpush2.msra.mxu0 0.0
        %1006 = vmatprep.subr.mxu0 0.0
        %1007 = vmatpush2.msra.mxu0 0.0
        %1008 = vmatprep.subr.mxu0 0.0
        %1009 = vmatpush2.msra.mxu0 0.0
        %1010 = vmatprep.subr.mxu0 0.0
        %1011 = vmatpush2.msra.mxu0 0.0
        %1012 = vmatprep.subr.mxu0 0.0
        %1013 = vmatpush2.msra.mxu0 0.0
        %1014 = vmatprep.subr.mxu0 0.0
        %1015 = vmatpush2.msra.mxu0 0.0
        %1016 = vmatprep.subr.mxu0 0.0
        %1017 = vmatpush2.msra.mxu0 0.0
        %1018 = vmatprep.subr.mxu0 0.0
        %1019 = vmatpush2.msra.mxu0 0.0
        %1020 = vmatprep.subr.mxu0 0.0
        %1021 = vmatpush2.msra.mxu0 0.0
        %1022 = vmatprep.subr.mxu0 0.0
        %1023 = vmatpush2.msra.mxu0 0.0
        %1024 = vmatprep.subr.mxu0 0.0
        %1025 = vmatpush2.msra.mxu0 0.0
        %1026 = vmatprep.mubr.f32.mxu0 0.0
        %1027 = vmatmul.mubr.f32.gmra.mxu0 %v470
        %v1028 = vpop.f32.mrf.mxu0
        %v1029 = vadd.f32 0.0, %v1028
        %v1030 = vpop.f32.mrf.mxu0
        %1031 = vdwg.mxu0
        %1032 = vmatprep.subr.mxu0 0.0
        %1033 = vmatpush1.msra.mxu0 0.0
        %1034 = vmatprep.subr.mxu0 0.0
        %1035 = vmatpush1.msra.mxu0 0.0
        %1036 = vmatprep.subr.mxu0 0.0
        %1037 = vmatpush1.msra.mxu0 0.0
        %1038 = vmatprep.subr.mxu0 0.0
        %1039 = vmatpush1.msra.mxu0 0.0
        %1040 = vmatprep.subr.mxu0 0.0
        %1041 = vmatpush1.msra.mxu0 0.0
        %1042 = vmatprep.subr.mxu0 0.0
        %1043 = vmatpush1.msra.mxu0 0.0
        %1044 = vmatprep.subr.mxu0 0.0
        %1045 = vmatpush1.msra.mxu0 0.0
        %1046 = vmatprep.subr.mxu0 0.0
        %1047 = vmatpush1.msra.mxu0 0.0
        %1048 = vmatprep.subr.mxu0 0.0
        %1049 = vmatpush1.msra.mxu0 0.0
        %1050 = vmatprep.subr.mxu0 0.0
        %1051 = vmatpush1.msra.mxu0 0.0
        %1052 = vmatprep.subr.mxu0 0.0
        %1053 = vmatpush1.msra.mxu0 0.0
        %1054 = vmatprep.subr.mxu0 0.0
        %1055 = vmatpush1.msra.mxu0 0.0
        %1056 = vmatprep.subr.mxu0 0.0
        %1057 = vmatpush1.msra.mxu0 %v399
        %1058 = vmatprep.subr.mxu0 0.0
        %1059 = vmatpush1.msra.mxu0 %v398
        %1060 = vmatprep.subr.mxu0 0.0
        %1061 = vmatpush1.msra.mxu0 %v397
        %1062 = vmatprep.subr.mxu0 0.0
        %1063 = vmatpush1.msra.mxu0 %v396
        %1064 = vmatprep.subr.mxu0 0.0
        %1065 = vmatpush2.msra.mxu0 0.0
        %1066 = vmatprep.subr.mxu0 0.0
        %1067 = vmatpush2.msra.mxu0 0.0
        %1068 = vmatprep.subr.mxu0 0.0
        %1069 = vmatpush2.msra.mxu0 0.0
        %1070 = vmatprep.subr.mxu0 0.0
        %1071 = vmatpush2.msra.mxu0 0.0
        %1072 = vmatprep.subr.mxu0 0.0
        %1073 = vmatpush2.msra.mxu0 0.0
        %1074 = vmatprep.subr.mxu0 0.0
        %1075 = vmatpush2.msra.mxu0 0.0
        %1076 = vmatprep.subr.mxu0 0.0
        %1077 = vmatpush2.msra.mxu0 0.0
        %1078 = vmatprep.subr.mxu0 0.0
        %1079 = vmatpush2.msra.mxu0 0.0
        %1080 = vmatprep.subr.mxu0 0.0
        %1081 = vmatpush2.msra.mxu0 0.0
        %1082 = vmatprep.subr.mxu0 0.0
        %1083 = vmatpush2.msra.mxu0 0.0
        %1084 = vmatprep.subr.mxu0 0.0
        %1085 = vmatpush2.msra.mxu0 0.0
        %1086 = vmatprep.subr.mxu0 0.0
        %1087 = vmatpush2.msra.mxu0 0.0
        %1088 = vmatprep.subr.mxu0 0.0
        %1089 = vmatpush2.msra.mxu0 0.0
        %1090 = vmatprep.subr.mxu0 0.0
        %1091 = vmatpush2.msra.mxu0 0.0
        %1092 = vmatprep.subr.mxu0 0.0
        %1093 = vmatpush2.msra.mxu0 0.0
        %1094 = vmatprep.subr.mxu0 0.0
        %1095 = vmatpush2.msra.mxu0 0.0
        %1096 = vmatprep.mubr.f32.mxu0 0.0
        %1097 = vmatmul.mubr.f32.gmra.mxu0 %v470
        %v1098 = vpop.f32.mrf.mxu0
        %v1099 = vadd.f32 0.0, %v1098
        %v1100 = vpop.f32.mrf.mxu0
        %1101 = vdwg.mxu0
        %1102 = vmatprep.subr.mxu0 0.0
        %1103 = vmatpush1.msra.mxu0 0.0
        %1104 = vmatprep.subr.mxu0 0.0
        %1105 = vmatpush1.msra.mxu0 0.0
        %1106 = vmatprep.subr.mxu0 0.0
        %1107 = vmatpush1.msra.mxu0 0.0
        %1108 = vmatprep.subr.mxu0 0.0
        %1109 = vmatpush1.msra.mxu0 0.0
        %1110 = vmatprep.subr.mxu0 0.0
        %1111 = vmatpush1.msra.mxu0 0.0
        %1112 = vmatprep.subr.mxu0 0.0
        %1113 = vmatpush1.msra.mxu0 0.0
        %1114 = vmatprep.subr.mxu0 0.0
        %1115 = vmatpush1.msra.mxu0 0.0
        %1116 = vmatprep.subr.mxu0 0.0
        %1117 = vmatpush1.msra.mxu0 0.0
        %1118 = vmatprep.subr.mxu0 0.0
        %1119 = vmatpush1.msra.mxu0 0.0
        %1120 = vmatprep.subr.mxu0 0.0
        %1121 = vmatpush1.msra.mxu0 0.0
        %1122 = vmatprep.subr.mxu0 0.0
        %1123 = vmatpush1.msra.mxu0 0.0
        %1124 = vmatprep.subr.mxu0 0.0
        %1125 = vmatpush1.msra.mxu0 0.0
        %1126 = vmatprep.subr.mxu0 0.0
        %1127 = vmatpush1.msra.mxu0 %v403
        %1128 = vmatprep.subr.mxu0 0.0
        %1129 = vmatpush1.msra.mxu0 %v402
        %1130 = vmatprep.subr.mxu0 0.0
        %1131 = vmatpush1.msra.mxu0 %v401
        %1132 = vmatprep.subr.mxu0 0.0
        %1133 = vmatpush1.msra.mxu0 %v400
        %1134 = vmatprep.subr.mxu0 0.0
        %1135 = vmatpush2.msra.mxu0 0.0
        %1136 = vmatprep.subr.mxu0 0.0
        %1137 = vmatpush2.msra.mxu0 0.0
        %1138 = vmatprep.subr.mxu0 0.0
        %1139 = vmatpush2.msra.mxu0 0.0
        %1140 = vmatprep.subr.mxu0 0.0
        %1141 = vmatpush2.msra.mxu0 0.0
        %1142 = vmatprep.subr.mxu0 0.0
        %1143 = vmatpush2.msra.mxu0 0.0
        %1144 = vmatprep.subr.mxu0 0.0
        %1145 = vmatpush2.msra.mxu0 0.0
        %1146 = vmatprep.subr.mxu0 0.0
        %1147 = vmatpush2.msra.mxu0 0.0
        %1148 = vmatprep.subr.mxu0 0.0
        %1149 = vmatpush2.msra.mxu0 0.0
        %1150 = vmatprep.subr.mxu0 0.0
        %1151 = vmatpush2.msra.mxu0 0.0
        %1152 = vmatprep.subr.mxu0 0.0
        %1153 = vmatpush2.msra.mxu0 0.0
        %1154 = vmatprep.subr.mxu0 0.0
        %1155 = vmatpush2.msra.mxu0 0.0
        %1156 = vmatprep.subr.mxu0 0.0
        %1157 = vmatpush2.msra.mxu0 0.0
        %1158 = vmatprep.subr.mxu0 0.0
        %1159 = vmatpush2.msra.mxu0 0.0
        %1160 = vmatprep.subr.mxu0 0.0
        %1161 = vmatpush2.msra.mxu0 0.0
        %1162 = vmatprep.subr.mxu0 0.0
        %1163 = vmatpush2.msra.mxu0 0.0
        %1164 = vmatprep.subr.mxu0 0.0
        %1165 = vmatpush2.msra.mxu0 0.0
        %1166 = vmatprep.mubr.f32.mxu0 0.0
        %1167 = vmatmul.mubr.f32.gmra.mxu0 %v470
        %v1168 = vpop.f32.mrf.mxu0
        %v1169 = vadd.f32 0.0, %v1168
        %v1170 = vpop.f32.mrf.mxu0
        %1171 = vdwg.mxu0
        %1172 = vmatprep.subr.mxu0 0.0
        %1173 = vmatpush1.msra.mxu0 0.0
        %1174 = vmatprep.subr.mxu0 0.0
        %1175 = vmatpush1.msra.mxu0 0.0
        %1176 = vmatprep.subr.mxu0 0.0
        %1177 = vmatpush1.msra.mxu0 0.0
        %1178 = vmatprep.subr.mxu0 0.0
        %1179 = vmatpush1.msra.mxu0 0.0
        %1180 = vmatprep.subr.mxu0 0.0
        %1181 = vmatpush1.msra.mxu0 0.0
        %1182 = vmatprep.subr.mxu0 0.0
        %1183 = vmatpush1.msra.mxu0 0.0
        %1184 = vmatprep.subr.mxu0 0.0
        %1185 = vmatpush1.msra.mxu0 0.0
        %1186 = vmatprep.subr.mxu0 0.0
        %1187 = vmatpush1.msra.mxu0 0.0
        %1188 = vmatprep.subr.mxu0 0.0
        %1189 = vmatpush1.msra.mxu0 0.0
        %1190 = vmatprep.subr.mxu0 0.0
        %1191 = vmatpush1.msra.mxu0 0.0
        %1192 = vmatprep.subr.mxu0 0.0
        %1193 = vmatpush1.msra.mxu0 0.0
        %1194 = vmatprep.subr.mxu0 0.0
        %1195 = vmatpush1.msra.mxu0 0.0
        %1196 = vmatprep.subr.mxu0 0.0
        %1197 = vmatpush1.msra.mxu0 %v407
        %1198 = vmatprep.subr.mxu0 0.0
        %1199 = vmatpush1.msra.mxu0 %v406
        %1200 = vmatprep.subr.mxu0 0.0
        %1201 = vmatpush1.msra.mxu0 %v405
        %1202 = vmatprep.subr.mxu0 0.0
        %1203 = vmatpush1.msra.mxu0 %v404
        %1204 = vmatprep.subr.mxu0 0.0
        %1205 = vmatpush2.msra.mxu0 0.0
        %1206 = vmatprep.subr.mxu0 0.0
        %1207 = vmatpush2.msra.mxu0 0.0
        %1208 = vmatprep.subr.mxu0 0.0
        %1209 = vmatpush2.msra.mxu0 0.0
        %1210 = vmatprep.subr.mxu0 0.0
        %1211 = vmatpush2.msra.mxu0 0.0
        %1212 = vmatprep.subr.mxu0 0.0
        %1213 = vmatpush2.msra.mxu0 0.0
        %1214 = vmatprep.subr.mxu0 0.0
        %1215 = vmatpush2.msra.mxu0 0.0
        %1216 = vmatprep.subr.mxu0 0.0
        %1217 = vmatpush2.msra.mxu0 0.0
        %1218 = vmatprep.subr.mxu0 0.0
        %1219 = vmatpush2.msra.mxu0 0.0
        %1220 = vmatprep.subr.mxu0 0.0
        %1221 = vmatpush2.msra.mxu0 0.0
        %1222 = vmatprep.subr.mxu0 0.0
        %1223 = vmatpush2.msra.mxu0 0.0
        %1224 = vmatprep.subr.mxu0 0.0
        %1225 = vmatpush2.msra.mxu0 0.0
        %1226 = vmatprep.subr.mxu0 0.0
        %1227 = vmatpush2.msra.mxu0 0.0
        %1228 = vmatprep.subr.mxu0 0.0
        %1229 = vmatpush2.msra.mxu0 0.0
        %1230 = vmatprep.subr.mxu0 0.0
        %1231 = vmatpush2.msra.mxu0 0.0
        %1232 = vmatprep.subr.mxu0 0.0
        %1233 = vmatpush2.msra.mxu0 0.0
        %1234 = vmatprep.subr.mxu0 0.0
        %1235 = vmatpush2.msra.mxu0 0.0
        %1236 = vmatprep.mubr.f32.mxu0 0.0
        %1237 = vmatmul.mubr.f32.gmra.mxu0 %v470
        %v1238 = vpop.f32.mrf.mxu0
        %v1239 = vadd.f32 0.0, %v1238
        %v1240 = vpop.f32.mrf.mxu0
        %1241 = vdwg.mxu0
        %1242 = vmatprep.subr.mxu0 0.0
        %1243 = vmatpush1.msra.mxu0 0.0
        %1244 = vmatprep.subr.mxu0 0.0
        %1245 = vmatpush1.msra.mxu0 0.0
        %1246 = vmatprep.subr.mxu0 0.0
        %1247 = vmatpush1.msra.mxu0 0.0
        %1248 = vmatprep.subr.mxu0 0.0
        %1249 = vmatpush1.msra.mxu0 0.0
        %1250 = vmatprep.subr.mxu0 0.0
        %1251 = vmatpush1.msra.mxu0 0.0
        %1252 = vmatprep.subr.mxu0 0.0
        %1253 = vmatpush1.msra.mxu0 0.0
        %1254 = vmatprep.subr.mxu0 0.0
        %1255 = vmatpush1.msra.mxu0 0.0
        %1256 = vmatprep.subr.mxu0 0.0
        %1257 = vmatpush1.msra.mxu0 0.0
        %1258 = vmatprep.subr.mxu0 0.0
        %1259 = vmatpush1.msra.mxu0 0.0
        %1260 = vmatprep.subr.mxu0 0.0
        %1261 = vmatpush1.msra.mxu0 0.0
        %1262 = vmatprep.subr.mxu0 0.0
        %1263 = vmatpush1.msra.mxu0 0.0
        %1264 = vmatprep.subr.mxu0 0.0
        %1265 = vmatpush1.msra.mxu0 0.0
        %1266 = vmatprep.subr.mxu0 0.0
        %1267 = vmatpush1.msra.mxu0 %v411
        %1268 = vmatprep.subr.mxu0 0.0
        %1269 = vmatpush1.msra.mxu0 %v410
        %1270 = vmatprep.subr.mxu0 0.0
        %1271 = vmatpush1.msra.mxu0 %v409
        %1272 = vmatprep.subr.mxu0 0.0
        %1273 = vmatpush1.msra.mxu0 %v408
        %1274 = vmatprep.subr.mxu0 0.0
        %1275 = vmatpush2.msra.mxu0 0.0
        %1276 = vmatprep.subr.mxu0 0.0
        %1277 = vmatpush2.msra.mxu0 0.0
        %1278 = vmatprep.subr.mxu0 0.0
        %1279 = vmatpush2.msra.mxu0 0.0
        %1280 = vmatprep.subr.mxu0 0.0
        %1281 = vmatpush2.msra.mxu0 0.0
        %1282 = vmatprep.subr.mxu0 0.0
        %1283 = vmatpush2.msra.mxu0 0.0
        %1284 = vmatprep.subr.mxu0 0.0
        %1285 = vmatpush2.msra.mxu0 0.0
        %1286 = vmatprep.subr.mxu0 0.0
        %1287 = vmatpush2.msra.mxu0 0.0
        %1288 = vmatprep.subr.mxu0 0.0
        %1289 = vmatpush2.msra.mxu0 0.0
        %1290 = vmatprep.subr.mxu0 0.0
        %1291 = vmatpush2.msra.mxu0 0.0
        %1292 = vmatprep.subr.mxu0 0.0
        %1293 = vmatpush2.msra.mxu0 0.0
        %1294 = vmatprep.subr.mxu0 0.0
        %1295 = vmatpush2.msra.mxu0 0.0
        %1296 = vmatprep.subr.mxu0 0.0
        %1297 = vmatpush2.msra.mxu0 0.0
        %1298 = vmatprep.subr.mxu0 0.0
        %1299 = vmatpush2.msra.mxu0 0.0
        %1300 = vmatprep.subr.mxu0 0.0
        %1301 = vmatpush2.msra.mxu0 0.0
        %1302 = vmatprep.subr.mxu0 0.0
        %1303 = vmatpush2.msra.mxu0 0.0
        %1304 = vmatprep.subr.mxu0 0.0
        %1305 = vmatpush2.msra.mxu0 0.0
        %1306 = vmatprep.mubr.f32.mxu0 0.0
        %1307 = vmatmul.mubr.f32.gmra.mxu0 %v470
        %v1308 = vpop.f32.mrf.mxu0
        %v1309 = vadd.f32 0.0, %v1308
        %v1310 = vpop.f32.mrf.mxu0
        %1311 = vdwg.mxu0
        %1312 = vmatprep.subr.mxu0 0.0
        %1313 = vmatpush1.msra.mxu0 0.0
        %1314 = vmatprep.subr.mxu0 0.0
        %1315 = vmatpush1.msra.mxu0 0.0
        %1316 = vmatprep.subr.mxu0 0.0
        %1317 = vmatpush1.msra.mxu0 0.0
        %1318 = vmatprep.subr.mxu0 0.0
        %1319 = vmatpush1.msra.mxu0 0.0
        %1320 = vmatprep.subr.mxu0 0.0
        %1321 = vmatpush1.msra.mxu0 0.0
        %1322 = vmatprep.subr.mxu0 0.0
        %1323 = vmatpush1.msra.mxu0 0.0
        %1324 = vmatprep.subr.mxu0 0.0
        %1325 = vmatpush1.msra.mxu0 0.0
        %1326 = vmatprep.subr.mxu0 0.0
        %1327 = vmatpush1.msra.mxu0 0.0
        %1328 = vmatprep.subr.mxu0 0.0
        %1329 = vmatpush1.msra.mxu0 0.0
        %1330 = vmatprep.subr.mxu0 0.0
        %1331 = vmatpush1.msra.mxu0 0.0
        %1332 = vmatprep.subr.mxu0 0.0
        %1333 = vmatpush1.msra.mxu0 0.0
        %1334 = vmatprep.subr.mxu0 0.0
        %1335 = vmatpush1.msra.mxu0 0.0
        %1336 = vmatprep.subr.mxu0 0.0
        %1337 = vmatpush1.msra.mxu0 %v415
        %1338 = vmatprep.subr.mxu0 0.0
        %1339 = vmatpush1.msra.mxu0 %v414
        %1340 = vmatprep.subr.mxu0 0.0
        %1341 = vmatpush1.msra.mxu0 %v413
        %1342 = vmatprep.subr.mxu0 0.0
        %1343 = vmatpush1.msra.mxu0 %v412
        %1344 = vmatprep.subr.mxu0 0.0
        %1345 = vmatpush2.msra.mxu0 0.0
        %1346 = vmatprep.subr.mxu0 0.0
        %1347 = vmatpush2.msra.mxu0 0.0
        %1348 = vmatprep.subr.mxu0 0.0
        %1349 = vmatpush2.msra.mxu0 0.0
        %1350 = vmatprep.subr.mxu0 0.0
        %1351 = vmatpush2.msra.mxu0 0.0
        %1352 = vmatprep.subr.mxu0 0.0
        %1353 = vmatpush2.msra.mxu0 0.0
        %1354 = vmatprep.subr.mxu0 0.0
        %1355 = vmatpush2.msra.mxu0 0.0
        %1356 = vmatprep.subr.mxu0 0.0
        %1357 = vmatpush2.msra.mxu0 0.0
        %1358 = vmatprep.subr.mxu0 0.0
        %1359 = vmatpush2.msra.mxu0 0.0
        %1360 = vmatprep.subr.mxu0 0.0
        %1361 = vmatpush2.msra.mxu0 0.0
        %1362 = vmatprep.subr.mxu0 0.0
        %1363 = vmatpush2.msra.mxu0 0.0
        %1364 = vmatprep.subr.mxu0 0.0
        %1365 = vmatpush2.msra.mxu0 0.0
        %1366 = vmatprep.subr.mxu0 0.0
        %1367 = vmatpush2.msra.mxu0 0.0
        %1368 = vmatprep.subr.mxu0 0.0
        %1369 = vmatpush2.msra.mxu0 0.0
        %1370 = vmatprep.subr.mxu0 0.0
        %1371 = vmatpush2.msra.mxu0 0.0
        %1372 = vmatprep.subr.mxu0 0.0
        %1373 = vmatpush2.msra.mxu0 0.0
        %1374 = vmatprep.subr.mxu0 0.0
        %1375 = vmatpush2.msra.mxu0 0.0
        %1376 = vmatprep.mubr.f32.mxu0 0.0
        %1377 = vmatmul.mubr.f32.gmra.mxu0 %v470
        %v1378 = vpop.f32.mrf.mxu0
        %v1379 = vadd.f32 0.0, %v1378
        %v1380 = vpop.f32.mrf.mxu0
        %1381 = vdwg.mxu0
        %1382 = vmatprep.subr.mxu0 0.0
        %1383 = vmatpush1.msra.mxu0 0.0
        %1384 = vmatprep.subr.mxu0 0.0
        %1385 = vmatpush1.msra.mxu0 0.0
        %1386 = vmatprep.subr.mxu0 0.0
        %1387 = vmatpush1.msra.mxu0 0.0
        %1388 = vmatprep.subr.mxu0 0.0
        %1389 = vmatpush1.msra.mxu0 0.0
        %1390 = vmatprep.subr.mxu0 0.0
        %1391 = vmatpush1.msra.mxu0 0.0
        %1392 = vmatprep.subr.mxu0 0.0
        %1393 = vmatpush1.msra.mxu0 0.0
        %1394 = vmatprep.subr.mxu0 0.0
        %1395 = vmatpush1.msra.mxu0 0.0
        %1396 = vmatprep.subr.mxu0 0.0
        %1397 = vmatpush1.msra.mxu0 0.0
        %1398 = vmatprep.subr.mxu0 0.0
        %1399 = vmatpush1.msra.mxu0 0.0
        %1400 = vmatprep.subr.mxu0 0.0
        %1401 = vmatpush1.msra.mxu0 0.0
        %1402 = vmatprep.subr.mxu0 0.0
        %1403 = vmatpush1.msra.mxu0 0.0
        %1404 = vmatprep.subr.mxu0 0.0
        %1405 = vmatpush1.msra.mxu0 0.0
        %1406 = vmatprep.subr.mxu0 0.0
        %1407 = vmatpush1.msra.mxu0 %v419
        %1408 = vmatprep.subr.mxu0 0.0
        %1409 = vmatpush1.msra.mxu0 %v418
        %1410 = vmatprep.subr.mxu0 0.0
        %1411 = vmatpush1.msra.mxu0 %v417
        %1412 = vmatprep.subr.mxu0 0.0
        %1413 = vmatpush1.msra.mxu0 %v416
        %1414 = vmatprep.subr.mxu0 0.0
        %1415 = vmatpush2.msra.mxu0 0.0
        %1416 = vmatprep.subr.mxu0 0.0
        %1417 = vmatpush2.msra.mxu0 0.0
        %1418 = vmatprep.subr.mxu0 0.0
        %1419 = vmatpush2.msra.mxu0 0.0
        %1420 = vmatprep.subr.mxu0 0.0
        %1421 = vmatpush2.msra.mxu0 0.0
        %1422 = vmatprep.subr.mxu0 0.0
        %1423 = vmatpush2.msra.mxu0 0.0
        %1424 = vmatprep.subr.mxu0 0.0
        %1425 = vmatpush2.msra.mxu0 0.0
        %1426 = vmatprep.subr.mxu0 0.0
        %1427 = vmatpush2.msra.mxu0 0.0
        %1428 = vmatprep.subr.mxu0 0.0
        %1429 = vmatpush2.msra.mxu0 0.0
        %1430 = vmatprep.subr.mxu0 0.0
        %1431 = vmatpush2.msra.mxu0 0.0
        %1432 = vmatprep.subr.mxu0 0.0
        %1433 = vmatpush2.msra.mxu0 0.0
        %1434 = vmatprep.subr.mxu0 0.0
        %1435 = vmatpush2.msra.mxu0 0.0
        %1436 = vmatprep.subr.mxu0 0.0
        %1437 = vmatpush2.msra.mxu0 0.0
        %1438 = vmatprep.subr.mxu0 0.0
        %1439 = vmatpush2.msra.mxu0 0.0
        %1440 = vmatprep.subr.mxu0 0.0
        %1441 = vmatpush2.msra.mxu0 0.0
        %1442 = vmatprep.subr.mxu0 0.0
        %1443 = vmatpush2.msra.mxu0 0.0
        %1444 = vmatprep.subr.mxu0 0.0
        %1445 = vmatpush2.msra.mxu0 0.0
        %1446 = vmatprep.mubr.f32.mxu0 0.0
        %1447 = vmatmul.mubr.f32.gmra.mxu0 %v470
        %v1448 = vpop.f32.mrf.mxu0
        %v1449 = vadd.f32 0.0, %v1448
        %v1450 = vpop.f32.mrf.mxu0
        %1451 = vdwg.mxu0
        %1452 = vmatprep.subr.mxu0 0.0
        %1453 = vmatpush1.msra.mxu0 0.0
        %1454 = vmatprep.subr.mxu0 0.0
        %1455 = vmatpush1.msra.mxu0 0.0
        %1456 = vmatprep.subr.mxu0 0.0
        %1457 = vmatpush1.msra.mxu0 0.0
        %1458 = vmatprep.subr.mxu0 0.0
        %1459 = vmatpush1.msra.mxu0 0.0
        %1460 = vmatprep.subr.mxu0 0.0
        %1461 = vmatpush1.msra.mxu0 0.0
        %1462 = vmatprep.subr.mxu0 0.0
        %1463 = vmatpush1.msra.mxu0 0.0
        %1464 = vmatprep.subr.mxu0 0.0
        %1465 = vmatpush1.msra.mxu0 0.0
        %1466 = vmatprep.subr.mxu0 0.0
        %1467 = vmatpush1.msra.mxu0 0.0
        %1468 = vmatprep.subr.mxu0 0.0
        %1469 = vmatpush1.msra.mxu0 0.0
        %1470 = vmatprep.subr.mxu0 0.0
        %1471 = vmatpush1.msra.mxu0 0.0
        %1472 = vmatprep.subr.mxu0 0.0
        %1473 = vmatpush1.msra.mxu0 0.0
        %1474 = vmatprep.subr.mxu0 0.0
        %1475 = vmatpush1.msra.mxu0 0.0
        %1476 = vmatprep.subr.mxu0 0.0
        %1477 = vmatpush1.msra.mxu0 %v423
        %1478 = vmatprep.subr.mxu0 0.0
        %1479 = vmatpush1.msra.mxu0 %v422
        %1480 = vmatprep.subr.mxu0 0.0
        %1481 = vmatpush1.msra.mxu0 %v421
        %1482 = vmatprep.subr.mxu0 0.0
        %1483 = vmatpush1.msra.mxu0 %v420
        %1484 = vmatprep.subr.mxu0 0.0
        %1485 = vmatpush2.msra.mxu0 0.0
        %1486 = vmatprep.subr.mxu0 0.0
        %1487 = vmatpush2.msra.mxu0 0.0
        %1488 = vmatprep.subr.mxu0 0.0
        %1489 = vmatpush2.msra.mxu0 0.0
        %1490 = vmatprep.subr.mxu0 0.0
        %1491 = vmatpush2.msra.mxu0 0.0
        %1492 = vmatprep.subr.mxu0 0.0
        %1493 = vmatpush2.msra.mxu0 0.0
        %1494 = vmatprep.subr.mxu0 0.0
        %1495 = vmatpush2.msra.mxu0 0.0
        %1496 = vmatprep.subr.mxu0 0.0
        %1497 = vmatpush2.msra.mxu0 0.0
        %1498 = vmatprep.subr.mxu0 0.0
        %1499 = vmatpush2.msra.mxu0 0.0
        %1500 = vmatprep.subr.mxu0 0.0
        %1501 = vmatpush2.msra.mxu0 0.0
        %1502 = vmatprep.subr.mxu0 0.0
        %1503 = vmatpush2.msra.mxu0 0.0
        %1504 = vmatprep.subr.mxu0 0.0
        %1505 = vmatpush2.msra.mxu0 0.0
        %1506 = vmatprep.subr.mxu0 0.0
        %1507 = vmatpush2.msra.mxu0 0.0
        %1508 = vmatprep.subr.mxu0 0.0
        %1509 = vmatpush2.msra.mxu0 0.0
        %1510 = vmatprep.subr.mxu0 0.0
        %1511 = vmatpush2.msra.mxu0 0.0
        %1512 = vmatprep.subr.mxu0 0.0
        %1513 = vmatpush2.msra.mxu0 0.0
        %1514 = vmatprep.subr.mxu0 0.0
        %1515 = vmatpush2.msra.mxu0 0.0
        %1516 = vmatprep.mubr.f32.mxu0 0.0
        %1517 = vmatmul.mubr.f32.gmra.mxu0 %v470
        %v1518 = vpop.f32.mrf.mxu0
        %v1519 = vadd.f32 0.0, %v1518
        %v1520 = vpop.f32.mrf.mxu0
        %1521 = vdwg.mxu0
        %1522 = vmatprep.subr.mxu0 0.0
        %1523 = vmatpush1.msra.mxu0 0.0
        %1524 = vmatprep.subr.mxu0 0.0
        %1525 = vmatpush1.msra.mxu0 0.0
        %1526 = vmatprep.subr.mxu0 0.0
        %1527 = vmatpush1.msra.mxu0 0.0
        %1528 = vmatprep.subr.mxu0 0.0
        %1529 = vmatpush1.msra.mxu0 0.0
        %1530 = vmatprep.subr.mxu0 0.0
        %1531 = vmatpush1.msra.mxu0 0.0
        %1532 = vmatprep.subr.mxu0 0.0
        %1533 = vmatpush1.msra.mxu0 0.0
        %1534 = vmatprep.subr.mxu0 0.0
        %1535 = vmatpush1.msra.mxu0 0.0
        %1536 = vmatprep.subr.mxu0 0.0
        %1537 = vmatpush1.msra.mxu0 0.0
        %1538 = vmatprep.subr.mxu0 0.0
        %1539 = vmatpush1.msra.mxu0 0.0
        %1540 = vmatprep.subr.mxu0 0.0
        %1541 = vmatpush1.msra.mxu0 0.0
        %1542 = vmatprep.subr.mxu0 0.0
        %1543 = vmatpush1.msra.mxu0 0.0
        %1544 = vmatprep.subr.mxu0 0.0
        %1545 = vmatpush1.msra.mxu0 0.0
        %1546 = vmatprep.subr.mxu0 0.0
        %1547 = vmatpush1.msra.mxu0 %v427
        %1548 = vmatprep.subr.mxu0 0.0
        %1549 = vmatpush1.msra.mxu0 %v426
        %1550 = vmatprep.subr.mxu0 0.0
        %1551 = vmatpush1.msra.mxu0 %v425
        %1552 = vmatprep.subr.mxu0 0.0
        %1553 = vmatpush1.msra.mxu0 %v424
        %1554 = vmatprep.subr.mxu0 0.0
        %1555 = vmatpush2.msra.mxu0 0.0
        %1556 = vmatprep.subr.mxu0 0.0
        %1557 = vmatpush2.msra.mxu0 0.0
        %1558 = vmatprep.subr.mxu0 0.0
        %1559 = vmatpush2.msra.mxu0 0.0
        %1560 = vmatprep.subr.mxu0 0.0
        %1561 = vmatpush2.msra.mxu0 0.0
        %1562 = vmatprep.subr.mxu0 0.0
        %1563 = vmatpush2.msra.mxu0 0.0
        %1564 = vmatprep.subr.mxu0 0.0
        %1565 = vmatpush2.msra.mxu0 0.0
        %1566 = vmatprep.subr.mxu0 0.0
        %1567 = vmatpush2.msra.mxu0 0.0
        %1568 = vmatprep.subr.mxu0 0.0
        %1569 = vmatpush2.msra.mxu0 0.0
        %1570 = vmatprep.subr.mxu0 0.0
        %1571 = vmatpush2.msra.mxu0 0.0
        %1572 = vmatprep.subr.mxu0 0.0
        %1573 = vmatpush2.msra.mxu0 0.0
        %1574 = vmatprep.subr.mxu0 0.0
        %1575 = vmatpush2.msra.mxu0 0.0
        %1576 = vmatprep.subr.mxu0 0.0
        %1577 = vmatpush2.msra.mxu0 0.0
        %1578 = vmatprep.subr.mxu0 0.0
        %1579 = vmatpush2.msra.mxu0 0.0
        %1580 = vmatprep.subr.mxu0 0.0
        %1581 = vmatpush2.msra.mxu0 0.0
        %1582 = vmatprep.subr.mxu0 0.0
        %1583 = vmatpush2.msra.mxu0 0.0
        %1584 = vmatprep.subr.mxu0 0.0
        %1585 = vmatpush2.msra.mxu0 0.0
        %1586 = vmatprep.mubr.f32.mxu0 0.0
        %1587 = vmatmul.mubr.f32.gmra.mxu0 %v470
        %v1588 = vpop.f32.mrf.mxu0
        %v1589 = vadd.f32 0.0, %v1588
        %v1590 = vpop.f32.mrf.mxu0
        %1591 = vdwg.mxu0
        %vm1592 = vcmask 64512
        %v1594 = vsel %vm1592, %v332, 0
        %v1597 = vsel %vm1592, %v333, 0
        %v1600 = vsel %vm1592, %v334, 0
        %v1603 = vsel %vm1592, %v335, 0
        %v1606 = vsel %vm1592, %v539, 0
        %1608 = vmatprep.subr.mxu0 0.0
        %1609 = vmatpush1.xpose.msra.mxu0 0.0
        %1610 = vmatprep.subr.mxu0 0.0
        %1611 = vmatpush1.xpose.msra.mxu0 0.0
        %1612 = vmatprep.subr.mxu0 0.0
        %1613 = vmatpush1.xpose.msra.mxu0 0.0
        %1614 = vmatprep.subr.mxu0 0.0
        %1615 = vmatpush1.xpose.msra.mxu0 0.0
        %1616 = vmatprep.subr.mxu0 0.0
        %1617 = vmatpush1.xpose.msra.mxu0 0.0
        %1618 = vmatprep.subr.mxu0 0.0
        %1619 = vmatpush1.xpose.msra.mxu0 0.0
        %1620 = vmatprep.subr.mxu0 0.0
        %1621 = vmatpush1.xpose.msra.mxu0 0.0
        %1622 = vmatprep.subr.mxu0 0.0
        %1623 = vmatpush1.xpose.msra.mxu0 0.0
        %1624 = vmatprep.subr.mxu0 0.0
        %1625 = vmatpush1.xpose.msra.mxu0 0.0
        %1626 = vmatprep.subr.mxu0 0.0
        %1627 = vmatpush1.xpose.msra.mxu0 0.0
        %1628 = vmatprep.subr.mxu0 0.0
        %1629 = vmatpush1.xpose.msra.mxu0 0.0
        %1630 = vmatprep.subr.mxu0 0.0
        %1631 = vmatpush1.xpose.msra.mxu0 0.0
        %1632 = vmatprep.subr.mxu0 0.0
        %1633 = vmatpush1.xpose.msra.mxu0 0.0
        %1634 = vmatprep.subr.mxu0 0.0
        %1635 = vmatpush1.xpose.msra.mxu0 0.0
        %1636 = vmatprep.subr.mxu0 0.0
        %1637 = vmatpush1.xpose.msra.mxu0 0.0
        %1638 = vmatprep.subr.mxu0 0.0
        %1639 = vmatpush1.xpose.msra.mxu0 %v1606
        %1640 = vmatprep.subr.mxu0 0.0
        %1641 = vmatpush2.xpose.msra.mxu0 0.0
        %1642 = vmatprep.subr.mxu0 0.0
        %1643 = vmatpush2.xpose.msra.mxu0 0.0
        %1644 = vmatprep.subr.mxu0 0.0
        %1645 = vmatpush2.xpose.msra.mxu0 0.0
        %1646 = vmatprep.subr.mxu0 0.0
        %1647 = vmatpush2.xpose.msra.mxu0 0.0
        %1648 = vmatprep.subr.mxu0 0.0
        %1649 = vmatpush2.xpose.msra.mxu0 0.0
        %1650 = vmatprep.subr.mxu0 0.0
        %1651 = vmatpush2.xpose.msra.mxu0 0.0
        %1652 = vmatprep.subr.mxu0 0.0
        %1653 = vmatpush2.xpose.msra.mxu0 0.0
        %1654 = vmatprep.subr.mxu0 0.0
        %1655 = vmatpush2.xpose.msra.mxu0 0.0
        %1656 = vmatprep.subr.mxu0 0.0
        %1657 = vmatpush2.xpose.msra.mxu0 0.0
        %1658 = vmatprep.subr.mxu0 0.0
        %1659 = vmatpush2.xpose.msra.mxu0 0.0
        %1660 = vmatprep.subr.mxu0 0.0
        %1661 = vmatpush2.xpose.msra.mxu0 0.0
        %1662 = vmatprep.subr.mxu0 0.0
        %1663 = vmatpush2.xpose.msra.mxu0 0.0
        %1664 = vmatprep.subr.mxu0 0.0
        %1665 = vmatpush2.xpose.msra.mxu0 0.0
        %1666 = vmatprep.subr.mxu0 0.0
        %1667 = vmatpush2.xpose.msra.mxu0 0.0
        %1668 = vmatprep.subr.mxu0 0.0
        %1669 = vmatpush2.xpose.msra.mxu0 0.0
        %1670 = vmatprep.subr.mxu0 0.0
        %1671 = vmatpush2.xpose.msra.mxu0 0.0
        %1672 = vmatprep.mubr.f32.mxu0 0.0
        %1673 = vmatmul.mubr.f32.gmra.mxu0 %v1594
        %v1674 = vpop.f32.mrf.mxu0
        %v1675 = vadd.f32 0.0, %v1674
        %v1676 = vpop.f32.mrf.mxu0
        %1677 = vmatprep.mubr.f32.mxu0 0.0
        %1678 = vmatmul.mubr.f32.gmra.mxu0 %v1597
        %v1679 = vpop.f32.mrf.mxu0
        %v1680 = vadd.f32 0.0, %v1679
        %v1681 = vpop.f32.mrf.mxu0
        %1682 = vmatprep.mubr.f32.mxu0 0.0
        %1683 = vmatmul.mubr.f32.gmra.mxu0 %v1600
        %v1684 = vpop.f32.mrf.mxu0
        %v1685 = vadd.f32 0.0, %v1684
        %v1686 = vpop.f32.mrf.mxu0
        %1687 = vmatprep.mubr.f32.mxu0 0.0
        %1688 = vmatmul.mubr.f32.gmra.mxu0 %v1603
        %v1689 = vpop.f32.mrf.mxu0
        %v1690 = vadd.f32 0.0, %v1689
        %v1691 = vpop.f32.mrf.mxu0
        %1692 = vdwg.mxu0
        %v1694 = vsel %vm1592, %v336, 0
        %v1697 = vsel %vm1592, %v337, 0
        %v1700 = vsel %vm1592, %v338, 0
        %v1703 = vsel %vm1592, %v339, 0
        %v1706 = vsel %vm1592, %v609, 0
        %1708 = vmatprep.subr.mxu0 0.0
        %1709 = vmatpush1.xpose.msra.mxu0 0.0
        %1710 = vmatprep.subr.mxu0 0.0
        %1711 = vmatpush1.xpose.msra.mxu0 0.0
        %1712 = vmatprep.subr.mxu0 0.0
        %1713 = vmatpush1.xpose.msra.mxu0 0.0
        %1714 = vmatprep.subr.mxu0 0.0
        %1715 = vmatpush1.xpose.msra.mxu0 0.0
        %1716 = vmatprep.subr.mxu0 0.0
        %1717 = vmatpush1.xpose.msra.mxu0 0.0
        %1718 = vmatprep.subr.mxu0 0.0
        %1719 = vmatpush1.xpose.msra.mxu0 0.0
        %1720 = vmatprep.subr.mxu0 0.0
        %1721 = vmatpush1.xpose.msra.mxu0 0.0
        %1722 = vmatprep.subr.mxu0 0.0
        %1723 = vmatpush1.xpose.msra.mxu0 0.0
        %1724 = vmatprep.subr.mxu0 0.0
        %1725 = vmatpush1.xpose.msra.mxu0 0.0
        %1726 = vmatprep.subr.mxu0 0.0
        %1727 = vmatpush1.xpose.msra.mxu0 0.0
        %1728 = vmatprep.subr.mxu0 0.0
        %1729 = vmatpush1.xpose.msra.mxu0 0.0
        %1730 = vmatprep.subr.mxu0 0.0
        %1731 = vmatpush1.xpose.msra.mxu0 0.0
        %1732 = vmatprep.subr.mxu0 0.0
        %1733 = vmatpush1.xpose.msra.mxu0 0.0
        %1734 = vmatprep.subr.mxu0 0.0
        %1735 = vmatpush1.xpose.msra.mxu0 0.0
        %1736 = vmatprep.subr.mxu0 0.0
        %1737 = vmatpush1.xpose.msra.mxu0 0.0
        %1738 = vmatprep.subr.mxu0 0.0
        %1739 = vmatpush1.xpose.msra.mxu0 %v1706
        %1740 = vmatprep.subr.mxu0 0.0
        %1741 = vmatpush2.xpose.msra.mxu0 0.0
        %1742 = vmatprep.subr.mxu0 0.0
        %1743 = vmatpush2.xpose.msra.mxu0 0.0
        %1744 = vmatprep.subr.mxu0 0.0
        %1745 = vmatpush2.xpose.msra.mxu0 0.0
        %1746 = vmatprep.subr.mxu0 0.0
        %1747 = vmatpush2.xpose.msra.mxu0 0.0
        %1748 = vmatprep.subr.mxu0 0.0
        %1749 = vmatpush2.xpose.msra.mxu0 0.0
        %1750 = vmatprep.subr.mxu0 0.0
        %1751 = vmatpush2.xpose.msra.mxu0 0.0
        %1752 = vmatprep.subr.mxu0 0.0
        %1753 = vmatpush2.xpose.msra.mxu0 0.0
        %1754 = vmatprep.subr.mxu0 0.0
        %1755 = vmatpush2.xpose.msra.mxu0 0.0
        %1756 = vmatprep.subr.mxu0 0.0
        %1757 = vmatpush2.xpose.msra.mxu0 0.0
        %1758 = vmatprep.subr.mxu0 0.0
        %1759 = vmatpush2.xpose.msra.mxu0 0.0
        %1760 = vmatprep.subr.mxu0 0.0
        %1761 = vmatpush2.xpose.msra.mxu0 0.0
        %1762 = vmatprep.subr.mxu0 0.0
        %1763 = vmatpush2.xpose.msra.mxu0 0.0
        %1764 = vmatprep.subr.mxu0 0.0
        %1765 = vmatpush2.xpose.msra.mxu0 0.0
        %1766 = vmatprep.subr.mxu0 0.0
        %1767 = vmatpush2.xpose.msra.mxu0 0.0
        %1768 = vmatprep.subr.mxu0 0.0
        %1769 = vmatpush2.xpose.msra.mxu0 0.0
        %1770 = vmatprep.subr.mxu0 0.0
        %1771 = vmatpush2.xpose.msra.mxu0 0.0
        %1772 = vmatprep.mubr.f32.mxu0 0.0
        %1773 = vmatmul.mubr.f32.gmra.mxu0 %v1694
        %v1774 = vpop.f32.mrf.mxu0
        %v1775 = vadd.f32 0.0, %v1774
        %v1776 = vpop.f32.mrf.mxu0
        %1777 = vmatprep.mubr.f32.mxu0 0.0
        %1778 = vmatmul.mubr.f32.gmra.mxu0 %v1697
        %v1779 = vpop.f32.mrf.mxu0
        %v1780 = vadd.f32 0.0, %v1779
        %v1781 = vpop.f32.mrf.mxu0
        %1782 = vmatprep.mubr.f32.mxu0 0.0
        %1783 = vmatmul.mubr.f32.gmra.mxu0 %v1700
        %v1784 = vpop.f32.mrf.mxu0
        %v1785 = vadd.f32 0.0, %v1784
        %v1786 = vpop.f32.mrf.mxu0
        %1787 = vmatprep.mubr.f32.mxu0 0.0
        %1788 = vmatmul.mubr.f32.gmra.mxu0 %v1703
        %v1789 = vpop.f32.mrf.mxu0
        %v1790 = vadd.f32 0.0, %v1789
        %v1791 = vpop.f32.mrf.mxu0
        %1792 = vdwg.mxu0
        %v1794 = vsel %vm1592, %v340, 0
        %v1797 = vsel %vm1592, %v341, 0
        %v1800 = vsel %vm1592, %v342, 0
        %v1803 = vsel %vm1592, %v343, 0
        %v1806 = vsel %vm1592, %v679, 0
        %1808 = vmatprep.subr.mxu0 0.0
        %1809 = vmatpush1.xpose.msra.mxu0 0.0
        %1810 = vmatprep.subr.mxu0 0.0
        %1811 = vmatpush1.xpose.msra.mxu0 0.0
        %1812 = vmatprep.subr.mxu0 0.0
        %1813 = vmatpush1.xpose.msra.mxu0 0.0
        %1814 = vmatprep.subr.mxu0 0.0
        %1815 = vmatpush1.xpose.msra.mxu0 0.0
        %1816 = vmatprep.subr.mxu0 0.0
        %1817 = vmatpush1.xpose.msra.mxu0 0.0
        %1818 = vmatprep.subr.mxu0 0.0
        %1819 = vmatpush1.xpose.msra.mxu0 0.0
        %1820 = vmatprep.subr.mxu0 0.0
        %1821 = vmatpush1.xpose.msra.mxu0 0.0
        %1822 = vmatprep.subr.mxu0 0.0
        %1823 = vmatpush1.xpose.msra.mxu0 0.0
        %1824 = vmatprep.subr.mxu0 0.0
        %1825 = vmatpush1.xpose.msra.mxu0 0.0
        %1826 = vmatprep.subr.mxu0 0.0
        %1827 = vmatpush1.xpose.msra.mxu0 0.0
        %1828 = vmatprep.subr.mxu0 0.0
        %1829 = vmatpush1.xpose.msra.mxu0 0.0
        %1830 = vmatprep.subr.mxu0 0.0
        %1831 = vmatpush1.xpose.msra.mxu0 0.0
        %1832 = vmatprep.subr.mxu0 0.0
        %1833 = vmatpush1.xpose.msra.mxu0 0.0
        %1834 = vmatprep.subr.mxu0 0.0
        %1835 = vmatpush1.xpose.msra.mxu0 0.0
        %1836 = vmatprep.subr.mxu0 0.0
        %1837 = vmatpush1.xpose.msra.mxu0 0.0
        %1838 = vmatprep.subr.mxu0 0.0
        %1839 = vmatpush1.xpose.msra.mxu0 %v1806
        %1840 = vmatprep.subr.mxu0 0.0
        %1841 = vmatpush2.xpose.msra.mxu0 0.0
        %1842 = vmatprep.subr.mxu0 0.0
        %1843 = vmatpush2.xpose.msra.mxu0 0.0
        %1844 = vmatprep.subr.mxu0 0.0
        %1845 = vmatpush2.xpose.msra.mxu0 0.0
        %1846 = vmatprep.subr.mxu0 0.0
        %1847 = vmatpush2.xpose.msra.mxu0 0.0
        %1848 = vmatprep.subr.mxu0 0.0
        %1849 = vmatpush2.xpose.msra.mxu0 0.0
        %1850 = vmatprep.subr.mxu0 0.0
        %1851 = vmatpush2.xpose.msra.mxu0 0.0
        %1852 = vmatprep.subr.mxu0 0.0
        %1853 = vmatpush2.xpose.msra.mxu0 0.0
        %1854 = vmatprep.subr.mxu0 0.0
        %1855 = vmatpush2.xpose.msra.mxu0 0.0
        %1856 = vmatprep.subr.mxu0 0.0
        %1857 = vmatpush2.xpose.msra.mxu0 0.0
        %1858 = vmatprep.subr.mxu0 0.0
        %1859 = vmatpush2.xpose.msra.mxu0 0.0
        %1860 = vmatprep.subr.mxu0 0.0
        %1861 = vmatpush2.xpose.msra.mxu0 0.0
        %1862 = vmatprep.subr.mxu0 0.0
        %1863 = vmatpush2.xpose.msra.mxu0 0.0
        %1864 = vmatprep.subr.mxu0 0.0
        %1865 = vmatpush2.xpose.msra.mxu0 0.0
        %1866 = vmatprep.subr.mxu0 0.0
        %1867 = vmatpush2.xpose.msra.mxu0 0.0
        %1868 = vmatprep.subr.mxu0 0.0
        %1869 = vmatpush2.xpose.msra.mxu0 0.0
        %1870 = vmatprep.subr.mxu0 0.0
        %1871 = vmatpush2.xpose.msra.mxu0 0.0
        %1872 = vmatprep.mubr.f32.mxu0 0.0
        %1873 = vmatmul.mubr.f32.gmra.mxu0 %v1794
        %v1874 = vpop.f32.mrf.mxu0
        %v1875 = vadd.f32 0.0, %v1874
        %v1876 = vpop.f32.mrf.mxu0
        %1877 = vmatprep.mubr.f32.mxu0 0.0
        %1878 = vmatmul.mubr.f32.gmra.mxu0 %v1797
        %v1879 = vpop.f32.mrf.mxu0
        %v1880 = vadd.f32 0.0, %v1879
        %v1881 = vpop.f32.mrf.mxu0
        %1882 = vmatprep.mubr.f32.mxu0 0.0
        %1883 = vmatmul.mubr.f32.gmra.mxu0 %v1800
        %v1884 = vpop.f32.mrf.mxu0
        %v1885 = vadd.f32 0.0, %v1884
        %v1886 = vpop.f32.mrf.mxu0
        %1887 = vmatprep.mubr.f32.mxu0 0.0
        %1888 = vmatmul.mubr.f32.gmra.mxu0 %v1803
        %v1889 = vpop.f32.mrf.mxu0
        %v1890 = vadd.f32 0.0, %v1889
        %v1891 = vpop.f32.mrf.mxu0
        %1892 = vdwg.mxu0
        %v1894 = vsel %vm1592, %v344, 0
        %v1897 = vsel %vm1592, %v345, 0
        %v1900 = vsel %vm1592, %v346, 0
        %v1903 = vsel %vm1592, %v347, 0
        %v1906 = vsel %vm1592, %v749, 0
        %1908 = vmatprep.subr.mxu0 0.0
        %1909 = vmatpush1.xpose.msra.mxu0 0.0
        %1910 = vmatprep.subr.mxu0 0.0
        %1911 = vmatpush1.xpose.msra.mxu0 0.0
        %1912 = vmatprep.subr.mxu0 0.0
        %1913 = vmatpush1.xpose.msra.mxu0 0.0
        %1914 = vmatprep.subr.mxu0 0.0
        %1915 = vmatpush1.xpose.msra.mxu0 0.0
        %1916 = vmatprep.subr.mxu0 0.0
        %1917 = vmatpush1.xpose.msra.mxu0 0.0
        %1918 = vmatprep.subr.mxu0 0.0
        %1919 = vmatpush1.xpose.msra.mxu0 0.0
        %1920 = vmatprep.subr.mxu0 0.0
        %1921 = vmatpush1.xpose.msra.mxu0 0.0
        %1922 = vmatprep.subr.mxu0 0.0
        %1923 = vmatpush1.xpose.msra.mxu0 0.0
        %1924 = vmatprep.subr.mxu0 0.0
        %1925 = vmatpush1.xpose.msra.mxu0 0.0
        %1926 = vmatprep.subr.mxu0 0.0
        %1927 = vmatpush1.xpose.msra.mxu0 0.0
        %1928 = vmatprep.subr.mxu0 0.0
        %1929 = vmatpush1.xpose.msra.mxu0 0.0
        %1930 = vmatprep.subr.mxu0 0.0
        %1931 = vmatpush1.xpose.msra.mxu0 0.0
        %1932 = vmatprep.subr.mxu0 0.0
        %1933 = vmatpush1.xpose.msra.mxu0 0.0
        %1934 = vmatprep.subr.mxu0 0.0
        %1935 = vmatpush1.xpose.msra.mxu0 0.0
        %1936 = vmatprep.subr.mxu0 0.0
        %1937 = vmatpush1.xpose.msra.mxu0 0.0
        %1938 = vmatprep.subr.mxu0 0.0
        %1939 = vmatpush1.xpose.msra.mxu0 %v1906
        %1940 = vmatprep.subr.mxu0 0.0
        %1941 = vmatpush2.xpose.msra.mxu0 0.0
        %1942 = vmatprep.subr.mxu0 0.0
        %1943 = vmatpush2.xpose.msra.mxu0 0.0
        %1944 = vmatprep.subr.mxu0 0.0
        %1945 = vmatpush2.xpose.msra.mxu0 0.0
        %1946 = vmatprep.subr.mxu0 0.0
        %1947 = vmatpush2.xpose.msra.mxu0 0.0
        %1948 = vmatprep.subr.mxu0 0.0
        %1949 = vmatpush2.xpose.msra.mxu0 0.0
        %1950 = vmatprep.subr.mxu0 0.0
        %1951 = vmatpush2.xpose.msra.mxu0 0.0
        %1952 = vmatprep.subr.mxu0 0.0
        %1953 = vmatpush2.xpose.msra.mxu0 0.0
        %1954 = vmatprep.subr.mxu0 0.0
        %1955 = vmatpush2.xpose.msra.mxu0 0.0
        %1956 = vmatprep.subr.mxu0 0.0
        %1957 = vmatpush2.xpose.msra.mxu0 0.0
        %1958 = vmatprep.subr.mxu0 0.0
        %1959 = vmatpush2.xpose.msra.mxu0 0.0
        %1960 = vmatprep.subr.mxu0 0.0
        %1961 = vmatpush2.xpose.msra.mxu0 0.0
        %1962 = vmatprep.subr.mxu0 0.0
        %1963 = vmatpush2.xpose.msra.mxu0 0.0
        %1964 = vmatprep.subr.mxu0 0.0
        %1965 = vmatpush2.xpose.msra.mxu0 0.0
        %1966 = vmatprep.subr.mxu0 0.0
        %1967 = vmatpush2.xpose.msra.mxu0 0.0
        %1968 = vmatprep.subr.mxu0 0.0
        %1969 = vmatpush2.xpose.msra.mxu0 0.0
        %1970 = vmatprep.subr.mxu0 0.0
        %1971 = vmatpush2.xpose.msra.mxu0 0.0
        %1972 = vmatprep.mubr.f32.mxu0 0.0
        %1973 = vmatmul.mubr.f32.gmra.mxu0 %v1894
        %v1974 = vpop.f32.mrf.mxu0
        %v1975 = vadd.f32 0.0, %v1974
        %v1976 = vpop.f32.mrf.mxu0
        %1977 = vmatprep.mubr.f32.mxu0 0.0
        %1978 = vmatmul.mubr.f32.gmra.mxu0 %v1897
        %v1979 = vpop.f32.mrf.mxu0
        %v1980 = vadd.f32 0.0, %v1979
        %v1981 = vpop.f32.mrf.mxu0
        %1982 = vmatprep.mubr.f32.mxu0 0.0
        %1983 = vmatmul.mubr.f32.gmra.mxu0 %v1900
        %v1984 = vpop.f32.mrf.mxu0
        %v1985 = vadd.f32 0.0, %v1984
        %v1986 = vpop.f32.mrf.mxu0
        %1987 = vmatprep.mubr.f32.mxu0 0.0
        %1988 = vmatmul.mubr.f32.gmra.mxu0 %v1903
        %v1989 = vpop.f32.mrf.mxu0
        %v1990 = vadd.f32 0.0, %v1989
        %v1991 = vpop.f32.mrf.mxu0
        %1992 = vdwg.mxu0
        %v1994 = vsel %vm1592, %v348, 0
        %v1997 = vsel %vm1592, %v349, 0
        %v2000 = vsel %vm1592, %v350, 0
        %v2003 = vsel %vm1592, %v351, 0
        %v2006 = vsel %vm1592, %v819, 0
        %2008 = vmatprep.subr.mxu0 0.0
        %2009 = vmatpush1.xpose.msra.mxu0 0.0
        %2010 = vmatprep.subr.mxu0 0.0
        %2011 = vmatpush1.xpose.msra.mxu0 0.0
        %2012 = vmatprep.subr.mxu0 0.0
        %2013 = vmatpush1.xpose.msra.mxu0 0.0
        %2014 = vmatprep.subr.mxu0 0.0
        %2015 = vmatpush1.xpose.msra.mxu0 0.0
        %2016 = vmatprep.subr.mxu0 0.0
        %2017 = vmatpush1.xpose.msra.mxu0 0.0
        %2018 = vmatprep.subr.mxu0 0.0
        %2019 = vmatpush1.xpose.msra.mxu0 0.0
        %2020 = vmatprep.subr.mxu0 0.0
        %2021 = vmatpush1.xpose.msra.mxu0 0.0
        %2022 = vmatprep.subr.mxu0 0.0
        %2023 = vmatpush1.xpose.msra.mxu0 0.0
        %2024 = vmatprep.subr.mxu0 0.0
        %2025 = vmatpush1.xpose.msra.mxu0 0.0
        %2026 = vmatprep.subr.mxu0 0.0
        %2027 = vmatpush1.xpose.msra.mxu0 0.0
        %2028 = vmatprep.subr.mxu0 0.0
        %2029 = vmatpush1.xpose.msra.mxu0 0.0
        %2030 = vmatprep.subr.mxu0 0.0
        %2031 = vmatpush1.xpose.msra.mxu0 0.0
        %2032 = vmatprep.subr.mxu0 0.0
        %2033 = vmatpush1.xpose.msra.mxu0 0.0
        %2034 = vmatprep.subr.mxu0 0.0
        %2035 = vmatpush1.xpose.msra.mxu0 0.0
        %2036 = vmatprep.subr.mxu0 0.0
        %2037 = vmatpush1.xpose.msra.mxu0 0.0
        %2038 = vmatprep.subr.mxu0 0.0
        %2039 = vmatpush1.xpose.msra.mxu0 %v2006
        %2040 = vmatprep.subr.mxu0 0.0
        %2041 = vmatpush2.xpose.msra.mxu0 0.0
        %2042 = vmatprep.subr.mxu0 0.0
        %2043 = vmatpush2.xpose.msra.mxu0 0.0
        %2044 = vmatprep.subr.mxu0 0.0
        %2045 = vmatpush2.xpose.msra.mxu0 0.0
        %2046 = vmatprep.subr.mxu0 0.0
        %2047 = vmatpush2.xpose.msra.mxu0 0.0
        %2048 = vmatprep.subr.mxu0 0.0
        %2049 = vmatpush2.xpose.msra.mxu0 0.0
        %2050 = vmatprep.subr.mxu0 0.0
        %2051 = vmatpush2.xpose.msra.mxu0 0.0
        %2052 = vmatprep.subr.mxu0 0.0
        %2053 = vmatpush2.xpose.msra.mxu0 0.0
        %2054 = vmatprep.subr.mxu0 0.0
        %2055 = vmatpush2.xpose.msra.mxu0 0.0
        %2056 = vmatprep.subr.mxu0 0.0
        %2057 = vmatpush2.xpose.msra.mxu0 0.0
        %2058 = vmatprep.subr.mxu0 0.0
        %2059 = vmatpush2.xpose.msra.mxu0 0.0
        %2060 = vmatprep.subr.mxu0 0.0
        %2061 = vmatpush2.xpose.msra.mxu0 0.0
        %2062 = vmatprep.subr.mxu0 0.0
        %2063 = vmatpush2.xpose.msra.mxu0 0.0
        %2064 = vmatprep.subr.mxu0 0.0
        %2065 = vmatpush2.xpose.msra.mxu0 0.0
        %2066 = vmatprep.subr.mxu0 0.0
        %2067 = vmatpush2.xpose.msra.mxu0 0.0
        %2068 = vmatprep.subr.mxu0 0.0
        %2069 = vmatpush2.xpose.msra.mxu0 0.0
        %2070 = vmatprep.subr.mxu0 0.0
        %2071 = vmatpush2.xpose.msra.mxu0 0.0
        %2072 = vmatprep.mubr.f32.mxu0 0.0
        %2073 = vmatmul.mubr.f32.gmra.mxu0 %v1994
        %v2074 = vpop.f32.mrf.mxu0
        %v2075 = vadd.f32 0.0, %v2074
        %v2076 = vpop.f32.mrf.mxu0
        %2077 = vmatprep.mubr.f32.mxu0 0.0
        %2078 = vmatmul.mubr.f32.gmra.mxu0 %v1997
        %v2079 = vpop.f32.mrf.mxu0
        %v2080 = vadd.f32 0.0, %v2079
        %v2081 = vpop.f32.mrf.mxu0
        %2082 = vmatprep.mubr.f32.mxu0 0.0
        %2083 = vmatmul.mubr.f32.gmra.mxu0 %v2000
        %v2084 = vpop.f32.mrf.mxu0
        %v2085 = vadd.f32 0.0, %v2084
        %v2086 = vpop.f32.mrf.mxu0
        %2087 = vmatprep.mubr.f32.mxu0 0.0
        %2088 = vmatmul.mubr.f32.gmra.mxu0 %v2003
        %v2089 = vpop.f32.mrf.mxu0
        %v2090 = vadd.f32 0.0, %v2089
        %v2091 = vpop.f32.mrf.mxu0
        %2092 = vdwg.mxu0
        %v2094 = vsel %vm1592, %v352, 0
        %v2097 = vsel %vm1592, %v353, 0
        %v2100 = vsel %vm1592, %v354, 0
        %v2103 = vsel %vm1592, %v355, 0
        %v2106 = vsel %vm1592, %v889, 0
        %2108 = vmatprep.subr.mxu0 0.0
        %2109 = vmatpush1.xpose.msra.mxu0 0.0
        %2110 = vmatprep.subr.mxu0 0.0
        %2111 = vmatpush1.xpose.msra.mxu0 0.0
        %2112 = vmatprep.subr.mxu0 0.0
        %2113 = vmatpush1.xpose.msra.mxu0 0.0
        %2114 = vmatprep.subr.mxu0 0.0
        %2115 = vmatpush1.xpose.msra.mxu0 0.0
        %2116 = vmatprep.subr.mxu0 0.0
        %2117 = vmatpush1.xpose.msra.mxu0 0.0
        %2118 = vmatprep.subr.mxu0 0.0
        %2119 = vmatpush1.xpose.msra.mxu0 0.0
        %2120 = vmatprep.subr.mxu0 0.0
        %2121 = vmatpush1.xpose.msra.mxu0 0.0
        %2122 = vmatprep.subr.mxu0 0.0
        %2123 = vmatpush1.xpose.msra.mxu0 0.0
        %2124 = vmatprep.subr.mxu0 0.0
        %2125 = vmatpush1.xpose.msra.mxu0 0.0
        %2126 = vmatprep.subr.mxu0 0.0
        %2127 = vmatpush1.xpose.msra.mxu0 0.0
        %2128 = vmatprep.subr.mxu0 0.0
        %2129 = vmatpush1.xpose.msra.mxu0 0.0
        %2130 = vmatprep.subr.mxu0 0.0
        %2131 = vmatpush1.xpose.msra.mxu0 0.0
        %2132 = vmatprep.subr.mxu0 0.0
        %2133 = vmatpush1.xpose.msra.mxu0 0.0
        %2134 = vmatprep.subr.mxu0 0.0
        %2135 = vmatpush1.xpose.msra.mxu0 0.0
        %2136 = vmatprep.subr.mxu0 0.0
        %2137 = vmatpush1.xpose.msra.mxu0 0.0
        %2138 = vmatprep.subr.mxu0 0.0
        %2139 = vmatpush1.xpose.msra.mxu0 %v2106
        %2140 = vmatprep.subr.mxu0 0.0
        %2141 = vmatpush2.xpose.msra.mxu0 0.0
        %2142 = vmatprep.subr.mxu0 0.0
        %2143 = vmatpush2.xpose.msra.mxu0 0.0
        %2144 = vmatprep.subr.mxu0 0.0
        %2145 = vmatpush2.xpose.msra.mxu0 0.0
        %2146 = vmatprep.subr.mxu0 0.0
        %2147 = vmatpush2.xpose.msra.mxu0 0.0
        %2148 = vmatprep.subr.mxu0 0.0
        %2149 = vmatpush2.xpose.msra.mxu0 0.0
        %2150 = vmatprep.subr.mxu0 0.0
        %2151 = vmatpush2.xpose.msra.mxu0 0.0
        %2152 = vmatprep.subr.mxu0 0.0
        %2153 = vmatpush2.xpose.msra.mxu0 0.0
        %2154 = vmatprep.subr.mxu0 0.0
        %2155 = vmatpush2.xpose.msra.mxu0 0.0
        %2156 = vmatprep.subr.mxu0 0.0
        %2157 = vmatpush2.xpose.msra.mxu0 0.0
        %2158 = vmatprep.subr.mxu0 0.0
        %2159 = vmatpush2.xpose.msra.mxu0 0.0
        %2160 = vmatprep.subr.mxu0 0.0
        %2161 = vmatpush2.xpose.msra.mxu0 0.0
        %2162 = vmatprep.subr.mxu0 0.0
        %2163 = vmatpush2.xpose.msra.mxu0 0.0
        %2164 = vmatprep.subr.mxu0 0.0
        %2165 = vmatpush2.xpose.msra.mxu0 0.0
        %2166 = vmatprep.subr.mxu0 0.0
        %2167 = vmatpush2.xpose.msra.mxu0 0.0
        %2168 = vmatprep.subr.mxu0 0.0
        %2169 = vmatpush2.xpose.msra.mxu0 0.0
        %2170 = vmatprep.subr.mxu0 0.0
        %2171 = vmatpush2.xpose.msra.mxu0 0.0
        %2172 = vmatprep.mubr.f32.mxu0 0.0
        %2173 = vmatmul.mubr.f32.gmra.mxu0 %v2094
        %v2174 = vpop.f32.mrf.mxu0
        %v2175 = vadd.f32 0.0, %v2174
        %v2176 = vpop.f32.mrf.mxu0
        %2177 = vmatprep.mubr.f32.mxu0 0.0
        %2178 = vmatmul.mubr.f32.gmra.mxu0 %v2097
        %v2179 = vpop.f32.mrf.mxu0
        %v2180 = vadd.f32 0.0, %v2179
        %v2181 = vpop.f32.mrf.mxu0
        %2182 = vmatprep.mubr.f32.mxu0 0.0
        %2183 = vmatmul.mubr.f32.gmra.mxu0 %v2100
        %v2184 = vpop.f32.mrf.mxu0
        %v2185 = vadd.f32 0.0, %v2184
        %v2186 = vpop.f32.mrf.mxu0
        %2187 = vmatprep.mubr.f32.mxu0 0.0
        %2188 = vmatmul.mubr.f32.gmra.mxu0 %v2103
        %v2189 = vpop.f32.mrf.mxu0
        %v2190 = vadd.f32 0.0, %v2189
        %v2191 = vpop.f32.mrf.mxu0
        %2192 = vdwg.mxu0
        %v2194 = vsel %vm1592, %v356, 0
        %v2197 = vsel %vm1592, %v357, 0
        %v2200 = vsel %vm1592, %v358, 0
        %v2203 = vsel %vm1592, %v359, 0
        %v2206 = vsel %vm1592, %v959, 0
        %2208 = vmatprep.subr.mxu0 0.0
        %2209 = vmatpush1.xpose.msra.mxu0 0.0
        %2210 = vmatprep.subr.mxu0 0.0
        %2211 = vmatpush1.xpose.msra.mxu0 0.0
        %2212 = vmatprep.subr.mxu0 0.0
        %2213 = vmatpush1.xpose.msra.mxu0 0.0
        %2214 = vmatprep.subr.mxu0 0.0
        %2215 = vmatpush1.xpose.msra.mxu0 0.0
        %2216 = vmatprep.subr.mxu0 0.0
        %2217 = vmatpush1.xpose.msra.mxu0 0.0
        %2218 = vmatprep.subr.mxu0 0.0
        %2219 = vmatpush1.xpose.msra.mxu0 0.0
        %2220 = vmatprep.subr.mxu0 0.0
        %2221 = vmatpush1.xpose.msra.mxu0 0.0
        %2222 = vmatprep.subr.mxu0 0.0
        %2223 = vmatpush1.xpose.msra.mxu0 0.0
        %2224 = vmatprep.subr.mxu0 0.0
        %2225 = vmatpush1.xpose.msra.mxu0 0.0
        %2226 = vmatprep.subr.mxu0 0.0
        %2227 = vmatpush1.xpose.msra.mxu0 0.0
        %2228 = vmatprep.subr.mxu0 0.0
        %2229 = vmatpush1.xpose.msra.mxu0 0.0
        %2230 = vmatprep.subr.mxu0 0.0
        %2231 = vmatpush1.xpose.msra.mxu0 0.0
        %2232 = vmatprep.subr.mxu0 0.0
        %2233 = vmatpush1.xpose.msra.mxu0 0.0
        %2234 = vmatprep.subr.mxu0 0.0
        %2235 = vmatpush1.xpose.msra.mxu0 0.0
        %2236 = vmatprep.subr.mxu0 0.0
        %2237 = vmatpush1.xpose.msra.mxu0 0.0
        %2238 = vmatprep.subr.mxu0 0.0
        %2239 = vmatpush1.xpose.msra.mxu0 %v2206
        %2240 = vmatprep.subr.mxu0 0.0
        %2241 = vmatpush2.xpose.msra.mxu0 0.0
        %2242 = vmatprep.subr.mxu0 0.0
        %2243 = vmatpush2.xpose.msra.mxu0 0.0
        %2244 = vmatprep.subr.mxu0 0.0
        %2245 = vmatpush2.xpose.msra.mxu0 0.0
        %2246 = vmatprep.subr.mxu0 0.0
        %2247 = vmatpush2.xpose.msra.mxu0 0.0
        %2248 = vmatprep.subr.mxu0 0.0
        %2249 = vmatpush2.xpose.msra.mxu0 0.0
        %2250 = vmatprep.subr.mxu0 0.0
        %2251 = vmatpush2.xpose.msra.mxu0 0.0
        %2252 = vmatprep.subr.mxu0 0.0
        %2253 = vmatpush2.xpose.msra.mxu0 0.0
        %2254 = vmatprep.subr.mxu0 0.0
        %2255 = vmatpush2.xpose.msra.mxu0 0.0
        %2256 = vmatprep.subr.mxu0 0.0
        %2257 = vmatpush2.xpose.msra.mxu0 0.0
        %2258 = vmatprep.subr.mxu0 0.0
        %2259 = vmatpush2.xpose.msra.mxu0 0.0
        %2260 = vmatprep.subr.mxu0 0.0
        %2261 = vmatpush2.xpose.msra.mxu0 0.0
        %2262 = vmatprep.subr.mxu0 0.0
        %2263 = vmatpush2.xpose.msra.mxu0 0.0
        %2264 = vmatprep.subr.mxu0 0.0
        %2265 = vmatpush2.xpose.msra.mxu0 0.0
        %2266 = vmatprep.subr.mxu0 0.0
        %2267 = vmatpush2.xpose.msra.mxu0 0.0
        %2268 = vmatprep.subr.mxu0 0.0
        %2269 = vmatpush2.xpose.msra.mxu0 0.0
        %2270 = vmatprep.subr.mxu0 0.0
        %2271 = vmatpush2.xpose.msra.mxu0 0.0
        %2272 = vmatprep.mubr.f32.mxu0 0.0
        %2273 = vmatmul.mubr.f32.gmra.mxu0 %v2194
        %v2274 = vpop.f32.mrf.mxu0
        %v2275 = vadd.f32 0.0, %v2274
        %v2276 = vpop.f32.mrf.mxu0
        %2277 = vmatprep.mubr.f32.mxu0 0.0
        %2278 = vmatmul.mubr.f32.gmra.mxu0 %v2197
        %v2279 = vpop.f32.mrf.mxu0
        %v2280 = vadd.f32 0.0, %v2279
        %v2281 = vpop.f32.mrf.mxu0
        %2282 = vmatprep.mubr.f32.mxu0 0.0
        %2283 = vmatmul.mubr.f32.gmra.mxu0 %v2200
        %v2284 = vpop.f32.mrf.mxu0
        %v2285 = vadd.f32 0.0, %v2284
        %v2286 = vpop.f32.mrf.mxu0
        %2287 = vmatprep.mubr.f32.mxu0 0.0
        %2288 = vmatmul.mubr.f32.gmra.mxu0 %v2203
        %v2289 = vpop.f32.mrf.mxu0
        %v2290 = vadd.f32 0.0, %v2289
        %v2291 = vpop.f32.mrf.mxu0
        %2292 = vdwg.mxu0
        %v2294 = vsel %vm1592, %v360, 0
        %v2297 = vsel %vm1592, %v361, 0
        %v2300 = vsel %vm1592, %v362, 0
        %v2303 = vsel %vm1592, %v363, 0
        %v2306 = vsel %vm1592, %v1029, 0
        %2308 = vmatprep.subr.mxu0 0.0
        %2309 = vmatpush1.xpose.msra.mxu0 0.0
        %2310 = vmatprep.subr.mxu0 0.0
        %2311 = vmatpush1.xpose.msra.mxu0 0.0
        %2312 = vmatprep.subr.mxu0 0.0
        %2313 = vmatpush1.xpose.msra.mxu0 0.0
        %2314 = vmatprep.subr.mxu0 0.0
        %2315 = vmatpush1.xpose.msra.mxu0 0.0
        %2316 = vmatprep.subr.mxu0 0.0
        %2317 = vmatpush1.xpose.msra.mxu0 0.0
        %2318 = vmatprep.subr.mxu0 0.0
        %2319 = vmatpush1.xpose.msra.mxu0 0.0
        %2320 = vmatprep.subr.mxu0 0.0
        %2321 = vmatpush1.xpose.msra.mxu0 0.0
        %2322 = vmatprep.subr.mxu0 0.0
        %2323 = vmatpush1.xpose.msra.mxu0 0.0
        %2324 = vmatprep.subr.mxu0 0.0
        %2325 = vmatpush1.xpose.msra.mxu0 0.0
        %2326 = vmatprep.subr.mxu0 0.0
        %2327 = vmatpush1.xpose.msra.mxu0 0.0
        %2328 = vmatprep.subr.mxu0 0.0
        %2329 = vmatpush1.xpose.msra.mxu0 0.0
        %2330 = vmatprep.subr.mxu0 0.0
        %2331 = vmatpush1.xpose.msra.mxu0 0.0
        %2332 = vmatprep.subr.mxu0 0.0
        %2333 = vmatpush1.xpose.msra.mxu0 0.0
        %2334 = vmatprep.subr.mxu0 0.0
        %2335 = vmatpush1.xpose.msra.mxu0 0.0
        %2336 = vmatprep.subr.mxu0 0.0
        %2337 = vmatpush1.xpose.msra.mxu0 0.0
        %2338 = vmatprep.subr.mxu0 0.0
        %2339 = vmatpush1.xpose.msra.mxu0 %v2306
        %2340 = vmatprep.subr.mxu0 0.0
        %2341 = vmatpush2.xpose.msra.mxu0 0.0
        %2342 = vmatprep.subr.mxu0 0.0
        %2343 = vmatpush2.xpose.msra.mxu0 0.0
        %2344 = vmatprep.subr.mxu0 0.0
        %2345 = vmatpush2.xpose.msra.mxu0 0.0
        %2346 = vmatprep.subr.mxu0 0.0
        %2347 = vmatpush2.xpose.msra.mxu0 0.0
        %2348 = vmatprep.subr.mxu0 0.0
        %2349 = vmatpush2.xpose.msra.mxu0 0.0
        %2350 = vmatprep.subr.mxu0 0.0
        %2351 = vmatpush2.xpose.msra.mxu0 0.0
        %2352 = vmatprep.subr.mxu0 0.0
        %2353 = vmatpush2.xpose.msra.mxu0 0.0
        %2354 = vmatprep.subr.mxu0 0.0
        %2355 = vmatpush2.xpose.msra.mxu0 0.0
        %2356 = vmatprep.subr.mxu0 0.0
        %2357 = vmatpush2.xpose.msra.mxu0 0.0
        %2358 = vmatprep.subr.mxu0 0.0
        %2359 = vmatpush2.xpose.msra.mxu0 0.0
        %2360 = vmatprep.subr.mxu0 0.0
        %2361 = vmatpush2.xpose.msra.mxu0 0.0
        %2362 = vmatprep.subr.mxu0 0.0
        %2363 = vmatpush2.xpose.msra.mxu0 0.0
        %2364 = vmatprep.subr.mxu0 0.0
        %2365 = vmatpush2.xpose.msra.mxu0 0.0
        %2366 = vmatprep.subr.mxu0 0.0
        %2367 = vmatpush2.xpose.msra.mxu0 0.0
        %2368 = vmatprep.subr.mxu0 0.0
        %2369 = vmatpush2.xpose.msra.mxu0 0.0
        %2370 = vmatprep.subr.mxu0 0.0
        %2371 = vmatpush2.xpose.msra.mxu0 0.0
        %2372 = vmatprep.mubr.f32.mxu0 0.0
        %2373 = vmatmul.mubr.f32.gmra.mxu0 %v2294
        %v2374 = vpop.f32.mrf.mxu0
        %v2375 = vadd.f32 0.0, %v2374
        %v2376 = vpop.f32.mrf.mxu0
        %2377 = vmatprep.mubr.f32.mxu0 0.0
        %2378 = vmatmul.mubr.f32.gmra.mxu0 %v2297
        %v2379 = vpop.f32.mrf.mxu0
        %v2380 = vadd.f32 0.0, %v2379
        %v2381 = vpop.f32.mrf.mxu0
        %2382 = vmatprep.mubr.f32.mxu0 0.0
        %2383 = vmatmul.mubr.f32.gmra.mxu0 %v2300
        %v2384 = vpop.f32.mrf.mxu0
        %v2385 = vadd.f32 0.0, %v2384
        %v2386 = vpop.f32.mrf.mxu0
        %2387 = vmatprep.mubr.f32.mxu0 0.0
        %2388 = vmatmul.mubr.f32.gmra.mxu0 %v2303
        %v2389 = vpop.f32.mrf.mxu0
        %v2390 = vadd.f32 0.0, %v2389
        %v2391 = vpop.f32.mrf.mxu0
        %2392 = vdwg.mxu0
        %v2393 = vmul.f32 %v1675, 0.35355338
        %v2394 = vmul.f32 %v1680, 0.35355338
        %v2395 = vmul.f32 %v1685, 0.35355338
        %v2396 = vmul.f32 %v1690, 0.35355338
        %v2397 = vmul.f32 %v1775, 0.35355338
        %v2398 = vmul.f32 %v1780, 0.35355338
        %v2399 = vmul.f32 %v1785, 0.35355338
        %v2400 = vmul.f32 %v1790, 0.35355338
        %v2401 = vmul.f32 %v1875, 0.35355338
        %v2402 = vmul.f32 %v1880, 0.35355338
        %v2403 = vmul.f32 %v1885, 0.35355338
        %v2404 = vmul.f32 %v1890, 0.35355338
        %v2405 = vmul.f32 %v1975, 0.35355338
        %v2406 = vmul.f32 %v1980, 0.35355338
        %v2407 = vmul.f32 %v1985, 0.35355338
        %v2408 = vmul.f32 %v1990, 0.35355338
        %v2409 = vmul.f32 %v2075, 0.35355338
        %v2410 = vmul.f32 %v2080, 0.35355338
        %v2411 = vmul.f32 %v2085, 0.35355338
        %v2412 = vmul.f32 %v2090, 0.35355338
        %v2413 = vmul.f32 %v2175, 0.35355338
        %v2414 = vmul.f32 %v2180, 0.35355338
        %v2415 = vmul.f32 %v2185, 0.35355338
        %v2416 = vmul.f32 %v2190, 0.35355338
        %v2417 = vmul.f32 %v2275, 0.35355338
        %v2418 = vmul.f32 %v2280, 0.35355338
        %v2419 = vmul.f32 %v2285, 0.35355338
        %v2420 = vmul.f32 %v2290, 0.35355338
        %v2421 = vmul.f32 %v2375, 0.35355338
        %v2422 = vmul.f32 %v2380, 0.35355338
        %v2423 = vmul.f32 %v2385, 0.35355338
        %v2424 = vmul.f32 %v2390, 0.35355338
        %v2425 = vsel %vm1592, %v2393, -inf
        %2426 = vmax.xlane.f32.xlu0 %v2425
        %v2427 = vpop.xlane.xlu0 %2426
        %v2428 = vsel %vm1592, %v2394, -inf
        %2429 = vmax.xlane.f32.xlu0 %v2428
        %v2430 = vpop.xlane.xlu0 %2429
        %v2431 = vsel %vm1592, %v2395, -inf
        %2432 = vmax.xlane.f32.xlu0 %v2431
        %v2433 = vpop.xlane.xlu0 %2432
        %v2434 = vsel %vm1592, %v2396, -inf
        %2435 = vmax.xlane.f32.xlu0 %v2434
        %v2436 = vpop.xlane.xlu0 %2435
        %v2437 = vsel %vm1592, %v2397, -inf
        %2438 = vmax.xlane.f32.xlu0 %v2437
        %v2439 = vpop.xlane.xlu0 %2438
        %v2440 = vsel %vm1592, %v2398, -inf
        %2441 = vmax.xlane.f32.xlu0 %v2440
        %v2442 = vpop.xlane.xlu0 %2441
        %v2443 = vsel %vm1592, %v2399, -inf
        %2444 = vmax.xlane.f32.xlu0 %v2443
        %v2445 = vpop.xlane.xlu0 %2444
        %v2446 = vsel %vm1592, %v2400, -inf
        %2447 = vmax.xlane.f32.xlu0 %v2446
        %v2448 = vpop.xlane.xlu0 %2447
        %v2449 = vsel %vm1592, %v2401, -inf
        %2450 = vmax.xlane.f32.xlu0 %v2449
        %v2451 = vpop.xlane.xlu0 %2450
        %v2452 = vsel %vm1592, %v2402, -inf
        %2453 = vmax.xlane.f32.xlu0 %v2452
        %v2454 = vpop.xlane.xlu0 %2453
        %v2455 = vsel %vm1592, %v2403, -inf
        %2456 = vmax.xlane.f32.xlu0 %v2455
        %v2457 = vpop.xlane.xlu0 %2456
        %v2458 = vsel %vm1592, %v2404, -inf
        %2459 = vmax.xlane.f32.xlu0 %v2458
        %v2460 = vpop.xlane.xlu0 %2459
        %v2461 = vsel %vm1592, %v2405, -inf
        %2462 = vmax.xlane.f32.xlu0 %v2461
        %v2463 = vpop.xlane.xlu0 %2462
        %v2464 = vsel %vm1592, %v2406, -inf
        %2465 = vmax.xlane.f32.xlu0 %v2464
        %v2466 = vpop.xlane.xlu0 %2465
        %v2467 = vsel %vm1592, %v2407, -inf
        %2468 = vmax.xlane.f32.xlu0 %v2467
        %v2469 = vpop.xlane.xlu0 %2468
        %v2470 = vsel %vm1592, %v2408, -inf
        %2471 = vmax.xlane.f32.xlu0 %v2470
        %v2472 = vpop.xlane.xlu0 %2471
        %v2473 = vsel %vm1592, %v2409, -inf
        %2474 = vmax.xlane.f32.xlu0 %v2473
        %v2475 = vpop.xlane.xlu0 %2474
        %v2476 = vsel %vm1592, %v2410, -inf
        %2477 = vmax.xlane.f32.xlu0 %v2476
        %v2478 = vpop.xlane.xlu0 %2477
        %v2479 = vsel %vm1592, %v2411, -inf
        %2480 = vmax.xlane.f32.xlu0 %v2479
        %v2481 = vpop.xlane.xlu0 %2480
        %v2482 = vsel %vm1592, %v2412, -inf
        %2483 = vmax.xlane.f32.xlu0 %v2482
        %v2484 = vpop.xlane.xlu0 %2483
        %v2485 = vsel %vm1592, %v2413, -inf
        %2486 = vmax.xlane.f32.xlu0 %v2485
        %v2487 = vpop.xlane.xlu0 %2486
        %v2488 = vsel %vm1592, %v2414, -inf
        %2489 = vmax.xlane.f32.xlu0 %v2488
        %v2490 = vpop.xlane.xlu0 %2489
        %v2491 = vsel %vm1592, %v2415, -inf
        %2492 = vmax.xlane.f32.xlu0 %v2491
        %v2493 = vpop.xlane.xlu0 %2492
        %v2494 = vsel %vm1592, %v2416, -inf
        %2495 = vmax.xlane.f32.xlu0 %v2494
        %v2496 = vpop.xlane.xlu0 %2495
        %v2497 = vsel %vm1592, %v2417, -inf
        %2498 = vmax.xlane.f32.xlu0 %v2497
        %v2499 = vpop.xlane.xlu0 %2498
        %v2500 = vsel %vm1592, %v2418, -inf
        %2501 = vmax.xlane.f32.xlu0 %v2500
        %v2502 = vpop.xlane.xlu0 %2501
        %v2503 = vsel %vm1592, %v2419, -inf
        %2504 = vmax.xlane.f32.xlu0 %v2503
        %v2505 = vpop.xlane.xlu0 %2504
        %v2506 = vsel %vm1592, %v2420, -inf
        %2507 = vmax.xlane.f32.xlu0 %v2506
        %v2508 = vpop.xlane.xlu0 %2507
        %v2509 = vsel %vm1592, %v2421, -inf
        %2510 = vmax.xlane.f32.xlu0 %v2509
        %v2511 = vpop.xlane.xlu0 %2510
        %v2512 = vsel %vm1592, %v2422, -inf
        %2513 = vmax.xlane.f32.xlu0 %v2512
        %v2514 = vpop.xlane.xlu0 %2513
        %v2515 = vsel %vm1592, %v2423, -inf
        %2516 = vmax.xlane.f32.xlu0 %v2515
        %v2517 = vpop.xlane.xlu0 %2516
        %v2518 = vsel %vm1592, %v2424, -inf
        %2519 = vmax.xlane.f32.xlu0 %v2518
        %v2520 = vpop.xlane.xlu0 %2519
        %v2521 = vsub.f32 %v2393, %v2427
        %v2522 = vsub.f32 %v2394, %v2430
        %v2523 = vsub.f32 %v2395, %v2433
        %v2524 = vsub.f32 %v2396, %v2436
        %v2525 = vsub.f32 %v2397, %v2439
        %v2526 = vsub.f32 %v2398, %v2442
        %v2527 = vsub.f32 %v2399, %v2445
        %v2528 = vsub.f32 %v2400, %v2448
        %v2529 = vsub.f32 %v2401, %v2451
        %v2530 = vsub.f32 %v2402, %v2454
        %v2531 = vsub.f32 %v2403, %v2457
        %v2532 = vsub.f32 %v2404, %v2460
        %v2533 = vsub.f32 %v2405, %v2463
        %v2534 = vsub.f32 %v2406, %v2466
        %v2535 = vsub.f32 %v2407, %v2469
        %v2536 = vsub.f32 %v2408, %v2472
        %v2537 = vsub.f32 %v2409, %v2475
        %v2538 = vsub.f32 %v2410, %v2478
        %v2539 = vsub.f32 %v2411, %v2481
        %v2540 = vsub.f32 %v2412, %v2484
        %v2541 = vsub.f32 %v2413, %v2487
        %v2542 = vsub.f32 %v2414, %v2490
        %v2543 = vsub.f32 %v2415, %v2493
        %v2544 = vsub.f32 %v2416, %v2496
        %v2545 = vsub.f32 %v2417, %v2499
        %v2546 = vsub.f32 %v2418, %v2502
        %v2547 = vsub.f32 %v2419, %v2505
        %v2548 = vsub.f32 %v2420, %v2508
        %v2549 = vsub.f32 %v2421, %v2511
        %v2550 = vsub.f32 %v2422, %v2514
        %v2551 = vsub.f32 %v2423, %v2517
        %v2552 = vsub.f32 %v2424, %v2520
        %v2553 = vmul.f32 %v2521, 1.442695
        %v2554 = vpow.pop %v2553
        %v2555 = vmul.f32 %v2522, 1.442695
        %v2556 = vpow.pop %v2555
        %v2557 = vmul.f32 %v2523, 1.442695
        %v2558 = vpow.pop %v2557
        %v2559 = vmul.f32 %v2524, 1.442695
        %v2560 = vpow.pop %v2559
        %v2561 = vmul.f32 %v2525, 1.442695
        %v2562 = vpow.pop %v2561
        %v2563 = vmul.f32 %v2526, 1.442695
        %v2564 = vpow.pop %v2563
        %v2565 = vmul.f32 %v2527, 1.442695
        %v2566 = vpow.pop %v2565
        %v2567 = vmul.f32 %v2528, 1.442695
        %v2568 = vpow.pop %v2567
        %v2569 = vmul.f32 %v2529, 1.442695
        %v2570 = vpow.pop %v2569
        %v2571 = vmul.f32 %v2530, 1.442695
        %v2572 = vpow.pop %v2571
        %v2573 = vmul.f32 %v2531, 1.442695
        %v2574 = vpow.pop %v2573
        %v2575 = vmul.f32 %v2532, 1.442695
        %v2576 = vpow.pop %v2575
        %v2577 = vmul.f32 %v2533, 1.442695
        %v2578 = vpow.pop %v2577
        %v2579 = vmul.f32 %v2534, 1.442695
        %v2580 = vpow.pop %v2579
        %v2581 = vmul.f32 %v2535, 1.442695
        %v2582 = vpow.pop %v2581
        %v2583 = vmul.f32 %v2536, 1.442695
        %v2584 = vpow.pop %v2583
        %v2585 = vmul.f32 %v2537, 1.442695
        %v2586 = vpow.pop %v2585
        %v2587 = vmul.f32 %v2538, 1.442695
        %v2588 = vpow.pop %v2587
        %v2589 = vmul.f32 %v2539, 1.442695
        %v2590 = vpow.pop %v2589
        %v2591 = vmul.f32 %v2540, 1.442695
        %v2592 = vpow.pop %v2591
        %v2593 = vmul.f32 %v2541, 1.442695
        %v2594 = vpow.pop %v2593
        %v2595 = vmul.f32 %v2542, 1.442695
        %v2596 = vpow.pop %v2595
        %v2597 = vmul.f32 %v2543, 1.442695
        %v2598 = vpow.pop %v2597
        %v2599 = vmul.f32 %v2544, 1.442695
        %v2600 = vpow.pop %v2599
        %v2601 = vmul.f32 %v2545, 1.442695
        %v2602 = vpow.pop %v2601
        %v2603 = vmul.f32 %v2546, 1.442695
        %v2604 = vpow.pop %v2603
        %v2605 = vmul.f32 %v2547, 1.442695
        %v2606 = vpow.pop %v2605
        %v2607 = vmul.f32 %v2548, 1.442695
        %v2608 = vpow.pop %v2607
        %v2609 = vmul.f32 %v2549, 1.442695
        %v2610 = vpow.pop %v2609
        %v2611 = vmul.f32 %v2550, 1.442695
        %v2612 = vpow.pop %v2611
        %v2613 = vmul.f32 %v2551, 1.442695
        %v2614 = vpow.pop %v2613
        %v2615 = vmul.f32 %v2552, 1.442695
        %v2616 = vpow.pop %v2615
        %v2617 = vsel %vm1592, %v2554, 0.0
        %2618 = vadd.xlane.f32.xlu0 %v2617
        %v2619 = vpop.xlane.xlu0 %2618
        %v2620 = vsel %vm1592, %v2556, 0.0
        %2621 = vadd.xlane.f32.xlu0 %v2620
        %v2622 = vpop.xlane.xlu0 %2621
        %v2623 = vsel %vm1592, %v2558, 0.0
        %2624 = vadd.xlane.f32.xlu0 %v2623
        %v2625 = vpop.xlane.xlu0 %2624
        %v2626 = vsel %vm1592, %v2560, 0.0
        %2627 = vadd.xlane.f32.xlu0 %v2626
        %v2628 = vpop.xlane.xlu0 %2627
        %v2629 = vsel %vm1592, %v2562, 0.0
        %2630 = vadd.xlane.f32.xlu0 %v2629
        %v2631 = vpop.xlane.xlu0 %2630
        %v2632 = vsel %vm1592, %v2564, 0.0
        %2633 = vadd.xlane.f32.xlu0 %v2632
        %v2634 = vpop.xlane.xlu0 %2633
        %v2635 = vsel %vm1592, %v2566, 0.0
        %2636 = vadd.xlane.f32.xlu0 %v2635
        %v2637 = vpop.xlane.xlu0 %2636
        %v2638 = vsel %vm1592, %v2568, 0.0
        %2639 = vadd.xlane.f32.xlu0 %v2638
        %v2640 = vpop.xlane.xlu0 %2639
        %v2641 = vsel %vm1592, %v2570, 0.0
        %2642 = vadd.xlane.f32.xlu0 %v2641
        %v2643 = vpop.xlane.xlu0 %2642
        %v2644 = vsel %vm1592, %v2572, 0.0
        %2645 = vadd.xlane.f32.xlu0 %v2644
        %v2646 = vpop.xlane.xlu0 %2645
        %v2647 = vsel %vm1592, %v2574, 0.0
        %2648 = vadd.xlane.f32.xlu0 %v2647
        %v2649 = vpop.xlane.xlu0 %2648
        %v2650 = vsel %vm1592, %v2576, 0.0
        %2651 = vadd.xlane.f32.xlu0 %v2650
        %v2652 = vpop.xlane.xlu0 %2651
        %v2653 = vsel %vm1592, %v2578, 0.0
        %2654 = vadd.xlane.f32.xlu0 %v2653
        %v2655 = vpop.xlane.xlu0 %2654
        %v2656 = vsel %vm1592, %v2580, 0.0
        %2657 = vadd.xlane.f32.xlu0 %v2656
        %v2658 = vpop.xlane.xlu0 %2657
        %v2659 = vsel %vm1592, %v2582, 0.0
        %2660 = vadd.xlane.f32.xlu0 %v2659
        %v2661 = vpop.xlane.xlu0 %2660
        %v2662 = vsel %vm1592, %v2584, 0.0
        %2663 = vadd.xlane.f32.xlu0 %v2662
        %v2664 = vpop.xlane.xlu0 %2663
        %v2665 = vsel %vm1592, %v2586, 0.0
        %2666 = vadd.xlane.f32.xlu0 %v2665
        %v2667 = vpop.xlane.xlu0 %2666
        %v2668 = vsel %vm1592, %v2588, 0.0
        %2669 = vadd.xlane.f32.xlu0 %v2668
        %v2670 = vpop.xlane.xlu0 %2669
        %v2671 = vsel %vm1592, %v2590, 0.0
        %2672 = vadd.xlane.f32.xlu0 %v2671
        %v2673 = vpop.xlane.xlu0 %2672
        %v2674 = vsel %vm1592, %v2592, 0.0
        %2675 = vadd.xlane.f32.xlu0 %v2674
        %v2676 = vpop.xlane.xlu0 %2675
        %v2677 = vsel %vm1592, %v2594, 0.0
        %2678 = vadd.xlane.f32.xlu0 %v2677
        %v2679 = vpop.xlane.xlu0 %2678
        %v2680 = vsel %vm1592, %v2596, 0.0
        %2681 = vadd.xlane.f32.xlu0 %v2680
        %v2682 = vpop.xlane.xlu0 %2681
        %v2683 = vsel %vm1592, %v2598, 0.0
        %2684 = vadd.xlane.f32.xlu0 %v2683
        %v2685 = vpop.xlane.xlu0 %2684
        %v2686 = vsel %vm1592, %v2600, 0.0
        %2687 = vadd.xlane.f32.xlu0 %v2686
        %v2688 = vpop.xlane.xlu0 %2687
        %v2689 = vsel %vm1592, %v2602, 0.0
        %2690 = vadd.xlane.f32.xlu0 %v2689
        %v2691 = vpop.xlane.xlu0 %2690
        %v2692 = vsel %vm1592, %v2604, 0.0
        %2693 = vadd.xlane.f32.xlu0 %v2692
        %v2694 = vpop.xlane.xlu0 %2693
        %v2695 = vsel %vm1592, %v2606, 0.0
        %2696 = vadd.xlane.f32.xlu0 %v2695
        %v2697 = vpop.xlane.xlu0 %2696
        %v2698 = vsel %vm1592, %v2608, 0.0
        %2699 = vadd.xlane.f32.xlu0 %v2698
        %v2700 = vpop.xlane.xlu0 %2699
        %v2701 = vsel %vm1592, %v2610, 0.0
        %2702 = vadd.xlane.f32.xlu0 %v2701
        %v2703 = vpop.xlane.xlu0 %2702
        %v2704 = vsel %vm1592, %v2612, 0.0
        %2705 = vadd.xlane.f32.xlu0 %v2704
        %v2706 = vpop.xlane.xlu0 %2705
        %v2707 = vsel %vm1592, %v2614, 0.0
        %2708 = vadd.xlane.f32.xlu0 %v2707
        %v2709 = vpop.xlane.xlu0 %2708
        %v2710 = vsel %vm1592, %v2616, 0.0
        %2711 = vadd.xlane.f32.xlu0 %v2710
        %v2712 = vpop.xlane.xlu0 %2711
        %v2714 = vsel %vm1592, %v2554, 0
        %v2717 = vsel %vm1592, %v2556, 0
        %v2720 = vsel %vm1592, %v2558, 0
        %v2723 = vsel %vm1592, %v2560, 0
        %2725 = vmatprep.subr.mxu0 0.0
        %2726 = vmatpush1.msra.mxu0 0.0
        %2727 = vmatprep.subr.mxu0 0.0
        %2728 = vmatpush1.msra.mxu0 0.0
        %2729 = vmatprep.subr.mxu0 0.0
        %2730 = vmatpush1.msra.mxu0 0.0
        %2731 = vmatprep.subr.mxu0 0.0
        %2732 = vmatpush1.msra.mxu0 0.0
        %2733 = vmatprep.subr.mxu0 0.0
        %2734 = vmatpush1.msra.mxu0 0.0
        %2735 = vmatprep.subr.mxu0 0.0
        %2736 = vmatpush1.msra.mxu0 0.0
        %2737 = vmatprep.subr.mxu0 0.0
        %2738 = vmatpush1.msra.mxu0 0.0
        %2739 = vmatprep.subr.mxu0 0.0
        %2740 = vmatpush1.msra.mxu0 0.0
        %2741 = vmatprep.subr.mxu0 0.0
        %2742 = vmatpush1.msra.mxu0 0.0
        %2743 = vmatprep.subr.mxu0 0.0
        %2744 = vmatpush1.msra.mxu0 0.0
        %2745 = vmatprep.subr.mxu0 0.0
        %2746 = vmatpush1.msra.mxu0 0.0
        %2747 = vmatprep.subr.mxu0 0.0
        %2748 = vmatpush1.msra.mxu0 0.0
        %2749 = vmatprep.subr.mxu0 0.0
        %2750 = vmatpush1.msra.mxu0 0.0
        %2751 = vmatprep.subr.mxu0 0.0
        %2752 = vmatpush1.msra.mxu0 0.0
        %2753 = vmatprep.subr.mxu0 0.0
        %2754 = vmatpush1.msra.mxu0 0.0
        %2755 = vmatprep.subr.mxu0 0.0
        %2756 = vmatpush1.msra.mxu0 %v1099
        %2757 = vmatprep.subr.mxu0 0.0
        %2758 = vmatpush2.msra.mxu0 0.0
        %2759 = vmatprep.subr.mxu0 0.0
        %2760 = vmatpush2.msra.mxu0 0.0
        %2761 = vmatprep.subr.mxu0 0.0
        %2762 = vmatpush2.msra.mxu0 0.0
        %2763 = vmatprep.subr.mxu0 0.0
        %2764 = vmatpush2.msra.mxu0 0.0
        %2765 = vmatprep.subr.mxu0 0.0
        %2766 = vmatpush2.msra.mxu0 0.0
        %2767 = vmatprep.subr.mxu0 0.0
        %2768 = vmatpush2.msra.mxu0 0.0
        %2769 = vmatprep.subr.mxu0 0.0
        %2770 = vmatpush2.msra.mxu0 0.0
        %2771 = vmatprep.subr.mxu0 0.0
        %2772 = vmatpush2.msra.mxu0 0.0
        %2773 = vmatprep.subr.mxu0 0.0
        %2774 = vmatpush2.msra.mxu0 0.0
        %2775 = vmatprep.subr.mxu0 0.0
        %2776 = vmatpush2.msra.mxu0 0.0
        %2777 = vmatprep.subr.mxu0 0.0
        %2778 = vmatpush2.msra.mxu0 0.0
        %2779 = vmatprep.subr.mxu0 0.0
        %2780 = vmatpush2.msra.mxu0 0.0
        %2781 = vmatprep.subr.mxu0 0.0
        %2782 = vmatpush2.msra.mxu0 0.0
        %2783 = vmatprep.subr.mxu0 0.0
        %2784 = vmatpush2.msra.mxu0 0.0
        %2785 = vmatprep.subr.mxu0 0.0
        %2786 = vmatpush2.msra.mxu0 0.0
        %2787 = vmatprep.subr.mxu0 0.0
        %2788 = vmatpush2.msra.mxu0 0.0
        %2789 = vmatprep.mubr.f32.mxu0 0.0
        %2790 = vmatmul.mubr.f32.gmra.mxu0 %v2714
        %v2791 = vpop.f32.mrf.mxu0
        %v2792 = vadd.f32 0.0, %v2791
        %v2793 = vpop.f32.mrf.mxu0
        %2794 = vmatprep.mubr.f32.mxu0 0.0
        %2795 = vmatmul.mubr.f32.gmra.mxu0 %v2717
        %v2796 = vpop.f32.mrf.mxu0
        %v2797 = vadd.f32 0.0, %v2796
        %v2798 = vpop.f32.mrf.mxu0
        %2799 = vmatprep.mubr.f32.mxu0 0.0
        %2800 = vmatmul.mubr.f32.gmra.mxu0 %v2720
        %v2801 = vpop.f32.mrf.mxu0
        %v2802 = vadd.f32 0.0, %v2801
        %v2803 = vpop.f32.mrf.mxu0
        %2804 = vmatprep.mubr.f32.mxu0 0.0
        %2805 = vmatmul.mubr.f32.gmra.mxu0 %v2723
        %v2806 = vpop.f32.mrf.mxu0
        %v2807 = vadd.f32 0.0, %v2806
        %v2808 = vpop.f32.mrf.mxu0
        %2809 = vdwg.mxu0
        %v2811 = vsel %vm1592, %v2562, 0
        %v2814 = vsel %vm1592, %v2564, 0
        %v2817 = vsel %vm1592, %v2566, 0
        %v2820 = vsel %vm1592, %v2568, 0
        %2822 = vmatprep.subr.mxu0 0.0
        %2823 = vmatpush1.msra.mxu0 0.0
        %2824 = vmatprep.subr.mxu0 0.0
        %2825 = vmatpush1.msra.mxu0 0.0
        %2826 = vmatprep.subr.mxu0 0.0
        %2827 = vmatpush1.msra.mxu0 0.0
        %2828 = vmatprep.subr.mxu0 0.0
        %2829 = vmatpush1.msra.mxu0 0.0
        %2830 = vmatprep.subr.mxu0 0.0
        %2831 = vmatpush1.msra.mxu0 0.0
        %2832 = vmatprep.subr.mxu0 0.0
        %2833 = vmatpush1.msra.mxu0 0.0
        %2834 = vmatprep.subr.mxu0 0.0
        %2835 = vmatpush1.msra.mxu0 0.0
        %2836 = vmatprep.subr.mxu0 0.0
        %2837 = vmatpush1.msra.mxu0 0.0
        %2838 = vmatprep.subr.mxu0 0.0
        %2839 = vmatpush1.msra.mxu0 0.0
        %2840 = vmatprep.subr.mxu0 0.0
        %2841 = vmatpush1.msra.mxu0 0.0
        %2842 = vmatprep.subr.mxu0 0.0
        %2843 = vmatpush1.msra.mxu0 0.0
        %2844 = vmatprep.subr.mxu0 0.0
        %2845 = vmatpush1.msra.mxu0 0.0
        %2846 = vmatprep.subr.mxu0 0.0
        %2847 = vmatpush1.msra.mxu0 0.0
        %2848 = vmatprep.subr.mxu0 0.0
        %2849 = vmatpush1.msra.mxu0 0.0
        %2850 = vmatprep.subr.mxu0 0.0
        %2851 = vmatpush1.msra.mxu0 0.0
        %2852 = vmatprep.subr.mxu0 0.0
        %2853 = vmatpush1.msra.mxu0 %v1169
        %2854 = vmatprep.subr.mxu0 0.0
        %2855 = vmatpush2.msra.mxu0 0.0
        %2856 = vmatprep.subr.mxu0 0.0
        %2857 = vmatpush2.msra.mxu0 0.0
        %2858 = vmatprep.subr.mxu0 0.0
        %2859 = vmatpush2.msra.mxu0 0.0
        %2860 = vmatprep.subr.mxu0 0.0
        %2861 = vmatpush2.msra.mxu0 0.0
        %2862 = vmatprep.subr.mxu0 0.0
        %2863 = vmatpush2.msra.mxu0 0.0
        %2864 = vmatprep.subr.mxu0 0.0
        %2865 = vmatpush2.msra.mxu0 0.0
        %2866 = vmatprep.subr.mxu0 0.0
        %2867 = vmatpush2.msra.mxu0 0.0
        %2868 = vmatprep.subr.mxu0 0.0
        %2869 = vmatpush2.msra.mxu0 0.0
        %2870 = vmatprep.subr.mxu0 0.0
        %2871 = vmatpush2.msra.mxu0 0.0
        %2872 = vmatprep.subr.mxu0 0.0
        %2873 = vmatpush2.msra.mxu0 0.0
        %2874 = vmatprep.subr.mxu0 0.0
        %2875 = vmatpush2.msra.mxu0 0.0
        %2876 = vmatprep.subr.mxu0 0.0
        %2877 = vmatpush2.msra.mxu0 0.0
        %2878 = vmatprep.subr.mxu0 0.0
        %2879 = vmatpush2.msra.mxu0 0.0
        %2880 = vmatprep.subr.mxu0 0.0
        %2881 = vmatpush2.msra.mxu0 0.0
        %2882 = vmatprep.subr.mxu0 0.0
        %2883 = vmatpush2.msra.mxu0 0.0
        %2884 = vmatprep.subr.mxu0 0.0
        %2885 = vmatpush2.msra.mxu0 0.0
        %2886 = vmatprep.mubr.f32.mxu0 0.0
        %2887 = vmatmul.mubr.f32.gmra.mxu0 %v2811
        %v2888 = vpop.f32.mrf.mxu0
        %v2889 = vadd.f32 0.0, %v2888
        %v2890 = vpop.f32.mrf.mxu0
        %2891 = vmatprep.mubr.f32.mxu0 0.0
        %2892 = vmatmul.mubr.f32.gmra.mxu0 %v2814
        %v2893 = vpop.f32.mrf.mxu0
        %v2894 = vadd.f32 0.0, %v2893
        %v2895 = vpop.f32.mrf.mxu0
        %2896 = vmatprep.mubr.f32.mxu0 0.0
        %2897 = vmatmul.mubr.f32.gmra.mxu0 %v2817
        %v2898 = vpop.f32.mrf.mxu0
        %v2899 = vadd.f32 0.0, %v2898
        %v2900 = vpop.f32.mrf.mxu0
        %2901 = vmatprep.mubr.f32.mxu0 0.0
        %2902 = vmatmul.mubr.f32.gmra.mxu0 %v2820
        %v2903 = vpop.f32.mrf.mxu0
        %v2904 = vadd.f32 0.0, %v2903
        %v2905 = vpop.f32.mrf.mxu0
        %2906 = vdwg.mxu0
        %v2908 = vsel %vm1592, %v2570, 0
        %v2911 = vsel %vm1592, %v2572, 0
        %v2914 = vsel %vm1592, %v2574, 0
        %v2917 = vsel %vm1592, %v2576, 0
        %2919 = vmatprep.subr.mxu0 0.0
        %2920 = vmatpush1.msra.mxu0 0.0
        %2921 = vmatprep.subr.mxu0 0.0
        %2922 = vmatpush1.msra.mxu0 0.0
        %2923 = vmatprep.subr.mxu0 0.0
        %2924 = vmatpush1.msra.mxu0 0.0
        %2925 = vmatprep.subr.mxu0 0.0
        %2926 = vmatpush1.msra.mxu0 0.0
        %2927 = vmatprep.subr.mxu0 0.0
        %2928 = vmatpush1.msra.mxu0 0.0
        %2929 = vmatprep.subr.mxu0 0.0
        %2930 = vmatpush1.msra.mxu0 0.0
        %2931 = vmatprep.subr.mxu0 0.0
        %2932 = vmatpush1.msra.mxu0 0.0
        %2933 = vmatprep.subr.mxu0 0.0
        %2934 = vmatpush1.msra.mxu0 0.0
        %2935 = vmatprep.subr.mxu0 0.0
        %2936 = vmatpush1.msra.mxu0 0.0
        %2937 = vmatprep.subr.mxu0 0.0
        %2938 = vmatpush1.msra.mxu0 0.0
        %2939 = vmatprep.subr.mxu0 0.0
        %2940 = vmatpush1.msra.mxu0 0.0
        %2941 = vmatprep.subr.mxu0 0.0
        %2942 = vmatpush1.msra.mxu0 0.0
        %2943 = vmatprep.subr.mxu0 0.0
        %2944 = vmatpush1.msra.mxu0 0.0
        %2945 = vmatprep.subr.mxu0 0.0
        %2946 = vmatpush1.msra.mxu0 0.0
        %2947 = vmatprep.subr.mxu0 0.0
        %2948 = vmatpush1.msra.mxu0 0.0
        %2949 = vmatprep.subr.mxu0 0.0
        %2950 = vmatpush1.msra.mxu0 %v1239
        %2951 = vmatprep.subr.mxu0 0.0
        %2952 = vmatpush2.msra.mxu0 0.0
        %2953 = vmatprep.subr.mxu0 0.0
        %2954 = vmatpush2.msra.mxu0 0.0
        %2955 = vmatprep.subr.mxu0 0.0
        %2956 = vmatpush2.msra.mxu0 0.0
        %2957 = vmatprep.subr.mxu0 0.0
        %2958 = vmatpush2.msra.mxu0 0.0
        %2959 = vmatprep.subr.mxu0 0.0
        %2960 = vmatpush2.msra.mxu0 0.0
        %2961 = vmatprep.subr.mxu0 0.0
        %2962 = vmatpush2.msra.mxu0 0.0
        %2963 = vmatprep.subr.mxu0 0.0
        %2964 = vmatpush2.msra.mxu0 0.0
        %2965 = vmatprep.subr.mxu0 0.0
        %2966 = vmatpush2.msra.mxu0 0.0
        %2967 = vmatprep.subr.mxu0 0.0
        %2968 = vmatpush2.msra.mxu0 0.0
        %2969 = vmatprep.subr.mxu0 0.0
        %2970 = vmatpush2.msra.mxu0 0.0
        %2971 = vmatprep.subr.mxu0 0.0
        %2972 = vmatpush2.msra.mxu0 0.0
        %2973 = vmatprep.subr.mxu0 0.0
        %2974 = vmatpush2.msra.mxu0 0.0
        %2975 = vmatprep.subr.mxu0 0.0
        %2976 = vmatpush2.msra.mxu0 0.0
        %2977 = vmatprep.subr.mxu0 0.0
        %2978 = vmatpush2.msra.mxu0 0.0
        %2979 = vmatprep.subr.mxu0 0.0
        %2980 = vmatpush2.msra.mxu0 0.0
        %2981 = vmatprep.subr.mxu0 0.0
        %2982 = vmatpush2.msra.mxu0 0.0
        %2983 = vmatprep.mubr.f32.mxu0 0.0
        %2984 = vmatmul.mubr.f32.gmra.mxu0 %v2908
        %v2985 = vpop.f32.mrf.mxu0
        %v2986 = vadd.f32 0.0, %v2985
        %v2987 = vpop.f32.mrf.mxu0
        %2988 = vmatprep.mubr.f32.mxu0 0.0
        %2989 = vmatmul.mubr.f32.gmra.mxu0 %v2911
        %v2990 = vpop.f32.mrf.mxu0
        %v2991 = vadd.f32 0.0, %v2990
        %v2992 = vpop.f32.mrf.mxu0
        %2993 = vmatprep.mubr.f32.mxu0 0.0
        %2994 = vmatmul.mubr.f32.gmra.mxu0 %v2914
        %v2995 = vpop.f32.mrf.mxu0
        %v2996 = vadd.f32 0.0, %v2995
        %v2997 = vpop.f32.mrf.mxu0
        %2998 = vmatprep.mubr.f32.mxu0 0.0
        %2999 = vmatmul.mubr.f32.gmra.mxu0 %v2917
        %v3000 = vpop.f32.mrf.mxu0
        %v3001 = vadd.f32 0.0, %v3000
        %v3002 = vpop.f32.mrf.mxu0
        %3003 = vdwg.mxu0
        %v3005 = vsel %vm1592, %v2578, 0
        %v3008 = vsel %vm1592, %v2580, 0
        %v3011 = vsel %vm1592, %v2582, 0
        %v3014 = vsel %vm1592, %v2584, 0
        %3016 = vmatprep.subr.mxu0 0.0
        %3017 = vmatpush1.msra.mxu0 0.0
        %3018 = vmatprep.subr.mxu0 0.0
        %3019 = vmatpush1.msra.mxu0 0.0
        %3020 = vmatprep.subr.mxu0 0.0
        %3021 = vmatpush1.msra.mxu0 0.0
        %3022 = vmatprep.subr.mxu0 0.0
        %3023 = vmatpush1.msra.mxu0 0.0
        %3024 = vmatprep.subr.mxu0 0.0
        %3025 = vmatpush1.msra.mxu0 0.0
        %3026 = vmatprep.subr.mxu0 0.0
        %3027 = vmatpush1.msra.mxu0 0.0
        %3028 = vmatprep.subr.mxu0 0.0
        %3029 = vmatpush1.msra.mxu0 0.0
        %3030 = vmatprep.subr.mxu0 0.0
        %3031 = vmatpush1.msra.mxu0 0.0
        %3032 = vmatprep.subr.mxu0 0.0
        %3033 = vmatpush1.msra.mxu0 0.0
        %3034 = vmatprep.subr.mxu0 0.0
        %3035 = vmatpush1.msra.mxu0 0.0
        %3036 = vmatprep.subr.mxu0 0.0
        %3037 = vmatpush1.msra.mxu0 0.0
        %3038 = vmatprep.subr.mxu0 0.0
        %3039 = vmatpush1.msra.mxu0 0.0
        %3040 = vmatprep.subr.mxu0 0.0
        %3041 = vmatpush1.msra.mxu0 0.0
        %3042 = vmatprep.subr.mxu0 0.0
        %3043 = vmatpush1.msra.mxu0 0.0
        %3044 = vmatprep.subr.mxu0 0.0
        %3045 = vmatpush1.msra.mxu0 0.0
        %3046 = vmatprep.subr.mxu0 0.0
        %3047 = vmatpush1.msra.mxu0 %v1309
        %3048 = vmatprep.subr.mxu0 0.0
        %3049 = vmatpush2.msra.mxu0 0.0
        %3050 = vmatprep.subr.mxu0 0.0
        %3051 = vmatpush2.msra.mxu0 0.0
        %3052 = vmatprep.subr.mxu0 0.0
        %3053 = vmatpush2.msra.mxu0 0.0
        %3054 = vmatprep.subr.mxu0 0.0
        %3055 = vmatpush2.msra.mxu0 0.0
        %3056 = vmatprep.subr.mxu0 0.0
        %3057 = vmatpush2.msra.mxu0 0.0
        %3058 = vmatprep.subr.mxu0 0.0
        %3059 = vmatpush2.msra.mxu0 0.0
        %3060 = vmatprep.subr.mxu0 0.0
        %3061 = vmatpush2.msra.mxu0 0.0
        %3062 = vmatprep.subr.mxu0 0.0
        %3063 = vmatpush2.msra.mxu0 0.0
        %3064 = vmatprep.subr.mxu0 0.0
        %3065 = vmatpush2.msra.mxu0 0.0
        %3066 = vmatprep.subr.mxu0 0.0
        %3067 = vmatpush2.msra.mxu0 0.0
        %3068 = vmatprep.subr.mxu0 0.0
        %3069 = vmatpush2.msra.mxu0 0.0
        %3070 = vmatprep.subr.mxu0 0.0
        %3071 = vmatpush2.msra.mxu0 0.0
        %3072 = vmatprep.subr.mxu0 0.0
        %3073 = vmatpush2.msra.mxu0 0.0
        %3074 = vmatprep.subr.mxu0 0.0
        %3075 = vmatpush2.msra.mxu0 0.0
        %3076 = vmatprep.subr.mxu0 0.0
        %3077 = vmatpush2.msra.mxu0 0.0
        %3078 = vmatprep.subr.mxu0 0.0
        %3079 = vmatpush2.msra.mxu0 0.0
        %3080 = vmatprep.mubr.f32.mxu0 0.0
        %3081 = vmatmul.mubr.f32.gmra.mxu0 %v3005
        %v3082 = vpop.f32.mrf.mxu0
        %v3083 = vadd.f32 0.0, %v3082
        %v3084 = vpop.f32.mrf.mxu0
        %3085 = vmatprep.mubr.f32.mxu0 0.0
        %3086 = vmatmul.mubr.f32.gmra.mxu0 %v3008
        %v3087 = vpop.f32.mrf.mxu0
        %v3088 = vadd.f32 0.0, %v3087
        %v3089 = vpop.f32.mrf.mxu0
        %3090 = vmatprep.mubr.f32.mxu0 0.0
        %3091 = vmatmul.mubr.f32.gmra.mxu0 %v3011
        %v3092 = vpop.f32.mrf.mxu0
        %v3093 = vadd.f32 0.0, %v3092
        %v3094 = vpop.f32.mrf.mxu0
        %3095 = vmatprep.mubr.f32.mxu0 0.0
        %3096 = vmatmul.mubr.f32.gmra.mxu0 %v3014
        %v3097 = vpop.f32.mrf.mxu0
        %v3098 = vadd.f32 0.0, %v3097
        %v3099 = vpop.f32.mrf.mxu0
        %3100 = vdwg.mxu0
        %v3102 = vsel %vm1592, %v2586, 0
        %v3105 = vsel %vm1592, %v2588, 0
        %v3108 = vsel %vm1592, %v2590, 0
        %v3111 = vsel %vm1592, %v2592, 0
        %3113 = vmatprep.subr.mxu0 0.0
        %3114 = vmatpush1.msra.mxu0 0.0
        %3115 = vmatprep.subr.mxu0 0.0
        %3116 = vmatpush1.msra.mxu0 0.0
        %3117 = vmatprep.subr.mxu0 0.0
        %3118 = vmatpush1.msra.mxu0 0.0
        %3119 = vmatprep.subr.mxu0 0.0
        %3120 = vmatpush1.msra.mxu0 0.0
        %3121 = vmatprep.subr.mxu0 0.0
        %3122 = vmatpush1.msra.mxu0 0.0
        %3123 = vmatprep.subr.mxu0 0.0
        %3124 = vmatpush1.msra.mxu0 0.0
        %3125 = vmatprep.subr.mxu0 0.0
        %3126 = vmatpush1.msra.mxu0 0.0
        %3127 = vmatprep.subr.mxu0 0.0
        %3128 = vmatpush1.msra.mxu0 0.0
        %3129 = vmatprep.subr.mxu0 0.0
        %3130 = vmatpush1.msra.mxu0 0.0
        %3131 = vmatprep.subr.mxu0 0.0
        %3132 = vmatpush1.msra.mxu0 0.0
        %3133 = vmatprep.subr.mxu0 0.0
        %3134 = vmatpush1.msra.mxu0 0.0
        %3135 = vmatprep.subr.mxu0 0.0
        %3136 = vmatpush1.msra.mxu0 0.0
        %3137 = vmatprep.subr.mxu0 0.0
        %3138 = vmatpush1.msra.mxu0 0.0
        %3139 = vmatprep.subr.mxu0 0.0
        %3140 = vmatpush1.msra.mxu0 0.0
        %3141 = vmatprep.subr.mxu0 0.0
        %3142 = vmatpush1.msra.mxu0 0.0
        %3143 = vmatprep.subr.mxu0 0.0
        %3144 = vmatpush1.msra.mxu0 %v1379
        %3145 = vmatprep.subr.mxu0 0.0
        %3146 = vmatpush2.msra.mxu0 0.0
        %3147 = vmatprep.subr.mxu0 0.0
        %3148 = vmatpush2.msra.mxu0 0.0
        %3149 = vmatprep.subr.mxu0 0.0
        %3150 = vmatpush2.msra.mxu0 0.0
        %3151 = vmatprep.subr.mxu0 0.0
        %3152 = vmatpush2.msra.mxu0 0.0
        %3153 = vmatprep.subr.mxu0 0.0
        %3154 = vmatpush2.msra.mxu0 0.0
        %3155 = vmatprep.subr.mxu0 0.0
        %3156 = vmatpush2.msra.mxu0 0.0
        %3157 = vmatprep.subr.mxu0 0.0
        %3158 = vmatpush2.msra.mxu0 0.0
        %3159 = vmatprep.subr.mxu0 0.0
        %3160 = vmatpush2.msra.mxu0 0.0
        %3161 = vmatprep.subr.mxu0 0.0
        %3162 = vmatpush2.msra.mxu0 0.0
        %3163 = vmatprep.subr.mxu0 0.0
        %3164 = vmatpush2.msra.mxu0 0.0
        %3165 = vmatprep.subr.mxu0 0.0
        %3166 = vmatpush2.msra.mxu0 0.0
        %3167 = vmatprep.subr.mxu0 0.0
        %3168 = vmatpush2.msra.mxu0 0.0
        %3169 = vmatprep.subr.mxu0 0.0
        %3170 = vmatpush2.msra.mxu0 0.0
        %3171 = vmatprep.subr.mxu0 0.0
        %3172 = vmatpush2.msra.mxu0 0.0
        %3173 = vmatprep.subr.mxu0 0.0
        %3174 = vmatpush2.msra.mxu0 0.0
        %3175 = vmatprep.subr.mxu0 0.0
        %3176 = vmatpush2.msra.mxu0 0.0
        %3177 = vmatprep.mubr.f32.mxu0 0.0
        %3178 = vmatmul.mubr.f32.gmra.mxu0 %v3102
        %v3179 = vpop.f32.mrf.mxu0
        %v3180 = vadd.f32 0.0, %v3179
        %v3181 = vpop.f32.mrf.mxu0
        %3182 = vmatprep.mubr.f32.mxu0 0.0
        %3183 = vmatmul.mubr.f32.gmra.mxu0 %v3105
        %v3184 = vpop.f32.mrf.mxu0
        %v3185 = vadd.f32 0.0, %v3184
        %v3186 = vpop.f32.mrf.mxu0
        %3187 = vmatprep.mubr.f32.mxu0 0.0
        %3188 = vmatmul.mubr.f32.gmra.mxu0 %v3108
        %v3189 = vpop.f32.mrf.mxu0
        %v3190 = vadd.f32 0.0, %v3189
        %v3191 = vpop.f32.mrf.mxu0
        %3192 = vmatprep.mubr.f32.mxu0 0.0
        %3193 = vmatmul.mubr.f32.gmra.mxu0 %v3111
        %v3194 = vpop.f32.mrf.mxu0
        %v3195 = vadd.f32 0.0, %v3194
        %v3196 = vpop.f32.mrf.mxu0
        %3197 = vdwg.mxu0
        %v3199 = vsel %vm1592, %v2594, 0
        %v3202 = vsel %vm1592, %v2596, 0
        %v3205 = vsel %vm1592, %v2598, 0
        %v3208 = vsel %vm1592, %v2600, 0
        %3210 = vmatprep.subr.mxu0 0.0
        %3211 = vmatpush1.msra.mxu0 0.0
        %3212 = vmatprep.subr.mxu0 0.0
        %3213 = vmatpush1.msra.mxu0 0.0
        %3214 = vmatprep.subr.mxu0 0.0
        %3215 = vmatpush1.msra.mxu0 0.0
        %3216 = vmatprep.subr.mxu0 0.0
        %3217 = vmatpush1.msra.mxu0 0.0
        %3218 = vmatprep.subr.mxu0 0.0
        %3219 = vmatpush1.msra.mxu0 0.0
        %3220 = vmatprep.subr.mxu0 0.0
        %3221 = vmatpush1.msra.mxu0 0.0
        %3222 = vmatprep.subr.mxu0 0.0
        %3223 = vmatpush1.msra.mxu0 0.0
        %3224 = vmatprep.subr.mxu0 0.0
        %3225 = vmatpush1.msra.mxu0 0.0
        %3226 = vmatprep.subr.mxu0 0.0
        %3227 = vmatpush1.msra.mxu0 0.0
        %3228 = vmatprep.subr.mxu0 0.0
        %3229 = vmatpush1.msra.mxu0 0.0
        %3230 = vmatprep.subr.mxu0 0.0
        %3231 = vmatpush1.msra.mxu0 0.0
        %3232 = vmatprep.subr.mxu0 0.0
        %3233 = vmatpush1.msra.mxu0 0.0
        %3234 = vmatprep.subr.mxu0 0.0
        %3235 = vmatpush1.msra.mxu0 0.0
        %3236 = vmatprep.subr.mxu0 0.0
        %3237 = vmatpush1.msra.mxu0 0.0
        %3238 = vmatprep.subr.mxu0 0.0
        %3239 = vmatpush1.msra.mxu0 0.0
        %3240 = vmatprep.subr.mxu0 0.0
        %3241 = vmatpush1.msra.mxu0 %v1449
        %3242 = vmatprep.subr.mxu0 0.0
        %3243 = vmatpush2.msra.mxu0 0.0
        %3244 = vmatprep.subr.mxu0 0.0
        %3245 = vmatpush2.msra.mxu0 0.0
        %3246 = vmatprep.subr.mxu0 0.0
        %3247 = vmatpush2.msra.mxu0 0.0
        %3248 = vmatprep.subr.mxu0 0.0
        %3249 = vmatpush2.msra.mxu0 0.0
        %3250 = vmatprep.subr.mxu0 0.0
        %3251 = vmatpush2.msra.mxu0 0.0
        %3252 = vmatprep.subr.mxu0 0.0
        %3253 = vmatpush2.msra.mxu0 0.0
        %3254 = vmatprep.subr.mxu0 0.0
        %3255 = vmatpush2.msra.mxu0 0.0
        %3256 = vmatprep.subr.mxu0 0.0
        %3257 = vmatpush2.msra.mxu0 0.0
        %3258 = vmatprep.subr.mxu0 0.0
        %3259 = vmatpush2.msra.mxu0 0.0
        %3260 = vmatprep.subr.mxu0 0.0
        %3261 = vmatpush2.msra.mxu0 0.0
        %3262 = vmatprep.subr.mxu0 0.0
        %3263 = vmatpush2.msra.mxu0 0.0
        %3264 = vmatprep.subr.mxu0 0.0
        %3265 = vmatpush2.msra.mxu0 0.0
        %3266 = vmatprep.subr.mxu0 0.0
        %3267 = vmatpush2.msra.mxu0 0.0
        %3268 = vmatprep.subr.mxu0 0.0
        %3269 = vmatpush2.msra.mxu0 0.0
        %3270 = vmatprep.subr.mxu0 0.0
        %3271 = vmatpush2.msra.mxu0 0.0
        %3272 = vmatprep.subr.mxu0 0.0
        %3273 = vmatpush2.msra.mxu0 0.0
        %3274 = vmatprep.mubr.f32.mxu0 0.0
        %3275 = vmatmul.mubr.f32.gmra.mxu0 %v3199
        %v3276 = vpop.f32.mrf.mxu0
        %v3277 = vadd.f32 0.0, %v3276
        %v3278 = vpop.f32.mrf.mxu0
        %3279 = vmatprep.mubr.f32.mxu0 0.0
        %3280 = vmatmul.mubr.f32.gmra.mxu0 %v3202
        %v3281 = vpop.f32.mrf.mxu0
        %v3282 = vadd.f32 0.0, %v3281
        %v3283 = vpop.f32.mrf.mxu0
        %3284 = vmatprep.mubr.f32.mxu0 0.0
        %3285 = vmatmul.mubr.f32.gmra.mxu0 %v3205
        %v3286 = vpop.f32.mrf.mxu0
        %v3287 = vadd.f32 0.0, %v3286
        %v3288 = vpop.f32.mrf.mxu0
        %3289 = vmatprep.mubr.f32.mxu0 0.0
        %3290 = vmatmul.mubr.f32.gmra.mxu0 %v3208
        %v3291 = vpop.f32.mrf.mxu0
        %v3292 = vadd.f32 0.0, %v3291
        %v3293 = vpop.f32.mrf.mxu0
        %3294 = vdwg.mxu0
        %v3296 = vsel %vm1592, %v2602, 0
        %v3299 = vsel %vm1592, %v2604, 0
        %v3302 = vsel %vm1592, %v2606, 0
        %v3305 = vsel %vm1592, %v2608, 0
        %3307 = vmatprep.subr.mxu0 0.0
        %3308 = vmatpush1.msra.mxu0 0.0
        %3309 = vmatprep.subr.mxu0 0.0
        %3310 = vmatpush1.msra.mxu0 0.0
        %3311 = vmatprep.subr.mxu0 0.0
        %3312 = vmatpush1.msra.mxu0 0.0
        %3313 = vmatprep.subr.mxu0 0.0
        %3314 = vmatpush1.msra.mxu0 0.0
        %3315 = vmatprep.subr.mxu0 0.0
        %3316 = vmatpush1.msra.mxu0 0.0
        %3317 = vmatprep.subr.mxu0 0.0
        %3318 = vmatpush1.msra.mxu0 0.0
        %3319 = vmatprep.subr.mxu0 0.0
        %3320 = vmatpush1.msra.mxu0 0.0
        %3321 = vmatprep.subr.mxu0 0.0
        %3322 = vmatpush1.msra.mxu0 0.0
        %3323 = vmatprep.subr.mxu0 0.0
        %3324 = vmatpush1.msra.mxu0 0.0
        %3325 = vmatprep.subr.mxu0 0.0
        %3326 = vmatpush1.msra.mxu0 0.0
        %3327 = vmatprep.subr.mxu0 0.0
        %3328 = vmatpush1.msra.mxu0 0.0
        %3329 = vmatprep.subr.mxu0 0.0
        %3330 = vmatpush1.msra.mxu0 0.0
        %3331 = vmatprep.subr.mxu0 0.0
        %3332 = vmatpush1.msra.mxu0 0.0
        %3333 = vmatprep.subr.mxu0 0.0
        %3334 = vmatpush1.msra.mxu0 0.0
        %3335 = vmatprep.subr.mxu0 0.0
        %3336 = vmatpush1.msra.mxu0 0.0
        %3337 = vmatprep.subr.mxu0 0.0
        %3338 = vmatpush1.msra.mxu0 %v1519
        %3339 = vmatprep.subr.mxu0 0.0
        %3340 = vmatpush2.msra.mxu0 0.0
        %3341 = vmatprep.subr.mxu0 0.0
        %3342 = vmatpush2.msra.mxu0 0.0
        %3343 = vmatprep.subr.mxu0 0.0
        %3344 = vmatpush2.msra.mxu0 0.0
        %3345 = vmatprep.subr.mxu0 0.0
        %3346 = vmatpush2.msra.mxu0 0.0
        %3347 = vmatprep.subr.mxu0 0.0
        %3348 = vmatpush2.msra.mxu0 0.0
        %3349 = vmatprep.subr.mxu0 0.0
        %3350 = vmatpush2.msra.mxu0 0.0
        %3351 = vmatprep.subr.mxu0 0.0
        %3352 = vmatpush2.msra.mxu0 0.0
        %3353 = vmatprep.subr.mxu0 0.0
        %3354 = vmatpush2.msra.mxu0 0.0
        %3355 = vmatprep.subr.mxu0 0.0
        %3356 = vmatpush2.msra.mxu0 0.0
        %3357 = vmatprep.subr.mxu0 0.0
        %3358 = vmatpush2.msra.mxu0 0.0
        %3359 = vmatprep.subr.mxu0 0.0
        %3360 = vmatpush2.msra.mxu0 0.0
        %3361 = vmatprep.subr.mxu0 0.0
        %3362 = vmatpush2.msra.mxu0 0.0
        %3363 = vmatprep.subr.mxu0 0.0
        %3364 = vmatpush2.msra.mxu0 0.0
        %3365 = vmatprep.subr.mxu0 0.0
        %3366 = vmatpush2.msra.mxu0 0.0
        %3367 = vmatprep.subr.mxu0 0.0
        %3368 = vmatpush2.msra.mxu0 0.0
        %3369 = vmatprep.subr.mxu0 0.0
        %3370 = vmatpush2.msra.mxu0 0.0
        %3371 = vmatprep.mubr.f32.mxu0 0.0
        %3372 = vmatmul.mubr.f32.gmra.mxu0 %v3296
        %v3373 = vpop.f32.mrf.mxu0
        %v3374 = vadd.f32 0.0, %v3373
        %v3375 = vpop.f32.mrf.mxu0
        %3376 = vmatprep.mubr.f32.mxu0 0.0
        %3377 = vmatmul.mubr.f32.gmra.mxu0 %v3299
        %v3378 = vpop.f32.mrf.mxu0
        %v3379 = vadd.f32 0.0, %v3378
        %v3380 = vpop.f32.mrf.mxu0
        %3381 = vmatprep.mubr.f32.mxu0 0.0
        %3382 = vmatmul.mubr.f32.gmra.mxu0 %v3302
        %v3383 = vpop.f32.mrf.mxu0
        %v3384 = vadd.f32 0.0, %v3383
        %v3385 = vpop.f32.mrf.mxu0
        %3386 = vmatprep.mubr.f32.mxu0 0.0
        %3387 = vmatmul.mubr.f32.gmra.mxu0 %v3305
        %v3388 = vpop.f32.mrf.mxu0
        %v3389 = vadd.f32 0.0, %v3388
        %v3390 = vpop.f32.mrf.mxu0
        %3391 = vdwg.mxu0
        %v3393 = vsel %vm1592, %v2610, 0
        %v3396 = vsel %vm1592, %v2612, 0
        %v3399 = vsel %vm1592, %v2614, 0
        %v3402 = vsel %vm1592, %v2616, 0
        %3404 = vmatprep.subr.mxu0 0.0
        %3405 = vmatpush1.msra.mxu0 0.0
        %3406 = vmatprep.subr.mxu0 0.0
        %3407 = vmatpush1.msra.mxu0 0.0
        %3408 = vmatprep.subr.mxu0 0.0
        %3409 = vmatpush1.msra.mxu0 0.0
        %3410 = vmatprep.subr.mxu0 0.0
        %3411 = vmatpush1.msra.mxu0 0.0
        %3412 = vmatprep.subr.mxu0 0.0
        %3413 = vmatpush1.msra.mxu0 0.0
        %3414 = vmatprep.subr.mxu0 0.0
        %3415 = vmatpush1.msra.mxu0 0.0
        %3416 = vmatprep.subr.mxu0 0.0
        %3417 = vmatpush1.msra.mxu0 0.0
        %3418 = vmatprep.subr.mxu0 0.0
        %3419 = vmatpush1.msra.mxu0 0.0
        %3420 = vmatprep.subr.mxu0 0.0
        %3421 = vmatpush1.msra.mxu0 0.0
        %3422 = vmatprep.subr.mxu0 0.0
        %3423 = vmatpush1.msra.mxu0 0.0
        %3424 = vmatprep.subr.mxu0 0.0
        %3425 = vmatpush1.msra.mxu0 0.0
        %3426 = vmatprep.subr.mxu0 0.0
        %3427 = vmatpush1.msra.mxu0 0.0
        %3428 = vmatprep.subr.mxu0 0.0
        %3429 = vmatpush1.msra.mxu0 0.0
        %3430 = vmatprep.subr.mxu0 0.0
        %3431 = vmatpush1.msra.mxu0 0.0
        %3432 = vmatprep.subr.mxu0 0.0
        %3433 = vmatpush1.msra.mxu0 0.0
        %3434 = vmatprep.subr.mxu0 0.0
        %3435 = vmatpush1.msra.mxu0 %v1589
        %3436 = vmatprep.subr.mxu0 0.0
        %3437 = vmatpush2.msra.mxu0 0.0
        %3438 = vmatprep.subr.mxu0 0.0
        %3439 = vmatpush2.msra.mxu0 0.0
        %3440 = vmatprep.subr.mxu0 0.0
        %3441 = vmatpush2.msra.mxu0 0.0
        %3442 = vmatprep.subr.mxu0 0.0
        %3443 = vmatpush2.msra.mxu0 0.0
        %3444 = vmatprep.subr.mxu0 0.0
        %3445 = vmatpush2.msra.mxu0 0.0
        %3446 = vmatprep.subr.mxu0 0.0
        %3447 = vmatpush2.msra.mxu0 0.0
        %3448 = vmatprep.subr.mxu0 0.0
        %3449 = vmatpush2.msra.mxu0 0.0
        %3450 = vmatprep.subr.mxu0 0.0
        %3451 = vmatpush2.msra.mxu0 0.0
        %3452 = vmatprep.subr.mxu0 0.0
        %3453 = vmatpush2.msra.mxu0 0.0
        %3454 = vmatprep.subr.mxu0 0.0
        %3455 = vmatpush2.msra.mxu0 0.0
        %3456 = vmatprep.subr.mxu0 0.0
        %3457 = vmatpush2.msra.mxu0 0.0
        %3458 = vmatprep.subr.mxu0 0.0
        %3459 = vmatpush2.msra.mxu0 0.0
        %3460 = vmatprep.subr.mxu0 0.0
        %3461 = vmatpush2.msra.mxu0 0.0
        %3462 = vmatprep.subr.mxu0 0.0
        %3463 = vmatpush2.msra.mxu0 0.0
        %3464 = vmatprep.subr.mxu0 0.0
        %3465 = vmatpush2.msra.mxu0 0.0
        %3466 = vmatprep.subr.mxu0 0.0
        %3467 = vmatpush2.msra.mxu0 0.0
        %3468 = vmatprep.mubr.f32.mxu0 0.0
        %3469 = vmatmul.mubr.f32.gmra.mxu0 %v3393
        %v3470 = vpop.f32.mrf.mxu0
        %v3471 = vadd.f32 0.0, %v3470
        %v3472 = vpop.f32.mrf.mxu0
        %3473 = vmatprep.mubr.f32.mxu0 0.0
        %3474 = vmatmul.mubr.f32.gmra.mxu0 %v3396
        %v3475 = vpop.f32.mrf.mxu0
        %v3476 = vadd.f32 0.0, %v3475
        %v3477 = vpop.f32.mrf.mxu0
        %3478 = vmatprep.mubr.f32.mxu0 0.0
        %3479 = vmatmul.mubr.f32.gmra.mxu0 %v3399
        %v3480 = vpop.f32.mrf.mxu0
        %v3481 = vadd.f32 0.0, %v3480
        %v3482 = vpop.f32.mrf.mxu0
        %3483 = vmatprep.mubr.f32.mxu0 0.0
        %3484 = vmatmul.mubr.f32.gmra.mxu0 %v3402
        %v3485 = vpop.f32.mrf.mxu0
        %v3486 = vadd.f32 0.0, %v3485
        %v3487 = vpop.f32.mrf.mxu0
        %3488 = vdwg.mxu0
        %v3489 = vrcp.pop %v2619
        %v3490 = vrcp.pop %v2622
        %v3491 = vrcp.pop %v2625
        %v3492 = vrcp.pop %v2628
        %v3493 = vrcp.pop %v2631
        %v3494 = vrcp.pop %v2634
        %v3495 = vrcp.pop %v2637
        %v3496 = vrcp.pop %v2640
        %v3497 = vrcp.pop %v2643
        %v3498 = vrcp.pop %v2646
        %v3499 = vrcp.pop %v2649
        %v3500 = vrcp.pop %v2652
        %v3501 = vrcp.pop %v2655
        %v3502 = vrcp.pop %v2658
        %v3503 = vrcp.pop %v2661
        %v3504 = vrcp.pop %v2664
        %v3505 = vrcp.pop %v2667
        %v3506 = vrcp.pop %v2670
        %v3507 = vrcp.pop %v2673
        %v3508 = vrcp.pop %v2676
        %v3509 = vrcp.pop %v2679
        %v3510 = vrcp.pop %v2682
        %v3511 = vrcp.pop %v2685
        %v3512 = vrcp.pop %v2688
        %v3513 = vrcp.pop %v2691
        %v3514 = vrcp.pop %v2694
        %v3515 = vrcp.pop %v2697
        %v3516 = vrcp.pop %v2700
        %v3517 = vrcp.pop %v2703
        %v3518 = vrcp.pop %v2706
        %v3519 = vrcp.pop %v2709
        %v3520 = vrcp.pop %v2712
        %v3521 = vmul.f32 %v2792, %v3489
        %v3522 = vmul.f32 %v2797, %v3490
        %v3523 = vmul.f32 %v2802, %v3491
        %v3524 = vmul.f32 %v2807, %v3492
        %v3525 = vmul.f32 %v2889, %v3493
        %v3526 = vmul.f32 %v2894, %v3494
        %v3527 = vmul.f32 %v2899, %v3495
        %v3528 = vmul.f32 %v2904, %v3496
        %v3529 = vmul.f32 %v2986, %v3497
        %v3530 = vmul.f32 %v2991, %v3498
        %v3531 = vmul.f32 %v2996, %v3499
        %v3532 = vmul.f32 %v3001, %v3500
        %v3533 = vmul.f32 %v3083, %v3501
        %v3534 = vmul.f32 %v3088, %v3502
        %v3535 = vmul.f32 %v3093, %v3503
        %v3536 = vmul.f32 %v3098, %v3504
        %v3537 = vmul.f32 %v3180, %v3505
        %v3538 = vmul.f32 %v3185, %v3506
        %v3539 = vmul.f32 %v3190, %v3507
        %v3540 = vmul.f32 %v3195, %v3508
        %v3541 = vmul.f32 %v3277, %v3509
        %v3542 = vmul.f32 %v3282, %v3510
        %v3543 = vmul.f32 %v3287, %v3511
        %v3544 = vmul.f32 %v3292, %v3512
        %v3545 = vmul.f32 %v3374, %v3513
        %v3546 = vmul.f32 %v3379, %v3514
        %v3547 = vmul.f32 %v3384, %v3515
        %v3548 = vmul.f32 %v3389, %v3516
        %v3549 = vmul.f32 %v3471, %v3517
        %v3550 = vmul.f32 %v3476, %v3518
        %v3551 = vmul.f32 %v3481, %v3519
        %v3552 = vmul.f32 %v3486, %v3520
        %v3554 = vsel %vm1592, %v3521, 0
        %v3557 = vsel %vm1592, %v3522, 0
        %v3560 = vsel %vm1592, %v3523, 0
        %v3563 = vsel %vm1592, %v3524, 0
        %3565 = vmatprep.subr.mxu0 0.0
        %3566 = vmatpush1.msra.mxu0 0.0
        %3567 = vmatprep.subr.mxu0 0.0
        %3568 = vmatpush1.msra.mxu0 0.0
        %3569 = vmatprep.subr.mxu0 0.0
        %3570 = vmatpush1.msra.mxu0 0.0
        %3571 = vmatprep.subr.mxu0 0.0
        %3572 = vmatpush1.msra.mxu0 0.0
        %3573 = vmatprep.subr.mxu0 0.0
        %3574 = vmatpush1.msra.mxu0 0.0
        %3575 = vmatprep.subr.mxu0 0.0
        %3576 = vmatpush1.msra.mxu0 0.0
        %3577 = vmatprep.subr.mxu0 0.0
        %3578 = vmatpush1.msra.mxu0 0.0
        %3579 = vmatprep.subr.mxu0 0.0
        %3580 = vmatpush1.msra.mxu0 0.0
        %3581 = vmatprep.subr.mxu0 0.0
        %3582 = vmatpush1.msra.mxu0 0.0
        %3583 = vmatprep.subr.mxu0 0.0
        %3584 = vmatpush1.msra.mxu0 0.0
        %3585 = vmatprep.subr.mxu0 0.0
        %3586 = vmatpush1.msra.mxu0 0.0
        %3587 = vmatprep.subr.mxu0 0.0
        %3588 = vmatpush1.msra.mxu0 0.0
        %3589 = vmatprep.subr.mxu0 0.0
        %3590 = vmatpush1.msra.mxu0 0.0
        %3591 = vmatprep.subr.mxu0 0.0
        %3592 = vmatpush1.msra.mxu0 0.0
        %3593 = vmatprep.subr.mxu0 0.0
        %3594 = vmatpush1.msra.mxu0 0.0
        %3595 = vmatprep.subr.mxu0 0.0
        %3596 = vmatpush1.msra.mxu0 %v428
        %3597 = vmatprep.subr.mxu0 0.0
        %3598 = vmatpush2.msra.mxu0 0.0
        %3599 = vmatprep.subr.mxu0 0.0
        %3600 = vmatpush2.msra.mxu0 0.0
        %3601 = vmatprep.subr.mxu0 0.0
        %3602 = vmatpush2.msra.mxu0 0.0
        %3603 = vmatprep.subr.mxu0 0.0
        %3604 = vmatpush2.msra.mxu0 0.0
        %3605 = vmatprep.subr.mxu0 0.0
        %3606 = vmatpush2.msra.mxu0 0.0
        %3607 = vmatprep.subr.mxu0 0.0
        %3608 = vmatpush2.msra.mxu0 0.0
        %3609 = vmatprep.subr.mxu0 0.0
        %3610 = vmatpush2.msra.mxu0 0.0
        %3611 = vmatprep.subr.mxu0 0.0
        %3612 = vmatpush2.msra.mxu0 0.0
        %3613 = vmatprep.subr.mxu0 0.0
        %3614 = vmatpush2.msra.mxu0 0.0
        %3615 = vmatprep.subr.mxu0 0.0
        %3616 = vmatpush2.msra.mxu0 0.0
        %3617 = vmatprep.subr.mxu0 0.0
        %3618 = vmatpush2.msra.mxu0 0.0
        %3619 = vmatprep.subr.mxu0 0.0
        %3620 = vmatpush2.msra.mxu0 0.0
        %3621 = vmatprep.subr.mxu0 0.0
        %3622 = vmatpush2.msra.mxu0 0.0
        %3623 = vmatprep.subr.mxu0 0.0
        %3624 = vmatpush2.msra.mxu0 0.0
        %3625 = vmatprep.subr.mxu0 0.0
        %3626 = vmatpush2.msra.mxu0 0.0
        %3627 = vmatprep.subr.mxu0 0.0
        %3628 = vmatpush2.msra.mxu0 0.0
        %3629 = vmatprep.mubr.f32.mxu0 0.0
        %3630 = vmatmul.mubr.f32.gmra.mxu0 %v3554
        %v3631 = vpop.f32.mrf.mxu0
        %v3632 = vadd.f32 0.0, %v3631
        %v3633 = vpop.f32.mrf.mxu0
        %3634 = vmatprep.mubr.f32.mxu0 0.0
        %3635 = vmatmul.mubr.f32.gmra.mxu0 %v3557
        %v3636 = vpop.f32.mrf.mxu0
        %v3637 = vadd.f32 0.0, %v3636
        %v3638 = vpop.f32.mrf.mxu0
        %3639 = vmatprep.mubr.f32.mxu0 0.0
        %3640 = vmatmul.mubr.f32.gmra.mxu0 %v3560
        %v3641 = vpop.f32.mrf.mxu0
        %v3642 = vadd.f32 0.0, %v3641
        %v3643 = vpop.f32.mrf.mxu0
        %3644 = vmatprep.mubr.f32.mxu0 0.0
        %3645 = vmatmul.mubr.f32.gmra.mxu0 %v3563
        %v3646 = vpop.f32.mrf.mxu0
        %v3647 = vadd.f32 0.0, %v3646
        %v3648 = vpop.f32.mrf.mxu0
        %3649 = vdwg.mxu0
        %v3651 = vsel %vm1592, %v3525, 0
        %v3654 = vsel %vm1592, %v3526, 0
        %v3657 = vsel %vm1592, %v3527, 0
        %v3660 = vsel %vm1592, %v3528, 0
        %3662 = vmatprep.subr.mxu0 0.0
        %3663 = vmatpush1.msra.mxu0 0.0
        %3664 = vmatprep.subr.mxu0 0.0
        %3665 = vmatpush1.msra.mxu0 0.0
        %3666 = vmatprep.subr.mxu0 0.0
        %3667 = vmatpush1.msra.mxu0 0.0
        %3668 = vmatprep.subr.mxu0 0.0
        %3669 = vmatpush1.msra.mxu0 0.0
        %3670 = vmatprep.subr.mxu0 0.0
        %3671 = vmatpush1.msra.mxu0 0.0
        %3672 = vmatprep.subr.mxu0 0.0
        %3673 = vmatpush1.msra.mxu0 0.0
        %3674 = vmatprep.subr.mxu0 0.0
        %3675 = vmatpush1.msra.mxu0 0.0
        %3676 = vmatprep.subr.mxu0 0.0
        %3677 = vmatpush1.msra.mxu0 0.0
        %3678 = vmatprep.subr.mxu0 0.0
        %3679 = vmatpush1.msra.mxu0 0.0
        %3680 = vmatprep.subr.mxu0 0.0
        %3681 = vmatpush1.msra.mxu0 0.0
        %3682 = vmatprep.subr.mxu0 0.0
        %3683 = vmatpush1.msra.mxu0 0.0
        %3684 = vmatprep.subr.mxu0 0.0
        %3685 = vmatpush1.msra.mxu0 0.0
        %3686 = vmatprep.subr.mxu0 0.0
        %3687 = vmatpush1.msra.mxu0 0.0
        %3688 = vmatprep.subr.mxu0 0.0
        %3689 = vmatpush1.msra.mxu0 0.0
        %3690 = vmatprep.subr.mxu0 0.0
        %3691 = vmatpush1.msra.mxu0 0.0
        %3692 = vmatprep.subr.mxu0 0.0
        %3693 = vmatpush1.msra.mxu0 %v429
        %3694 = vmatprep.subr.mxu0 0.0
        %3695 = vmatpush2.msra.mxu0 0.0
        %3696 = vmatprep.subr.mxu0 0.0
        %3697 = vmatpush2.msra.mxu0 0.0
        %3698 = vmatprep.subr.mxu0 0.0
        %3699 = vmatpush2.msra.mxu0 0.0
        %3700 = vmatprep.subr.mxu0 0.0
        %3701 = vmatpush2.msra.mxu0 0.0
        %3702 = vmatprep.subr.mxu0 0.0
        %3703 = vmatpush2.msra.mxu0 0.0
        %3704 = vmatprep.subr.mxu0 0.0
        %3705 = vmatpush2.msra.mxu0 0.0
        %3706 = vmatprep.subr.mxu0 0.0
        %3707 = vmatpush2.msra.mxu0 0.0
        %3708 = vmatprep.subr.mxu0 0.0
        %3709 = vmatpush2.msra.mxu0 0.0
        %3710 = vmatprep.subr.mxu0 0.0
        %3711 = vmatpush2.msra.mxu0 0.0
        %3712 = vmatprep.subr.mxu0 0.0
        %3713 = vmatpush2.msra.mxu0 0.0
        %3714 = vmatprep.subr.mxu0 0.0
        %3715 = vmatpush2.msra.mxu0 0.0
        %3716 = vmatprep.subr.mxu0 0.0
        %3717 = vmatpush2.msra.mxu0 0.0
        %3718 = vmatprep.subr.mxu0 0.0
        %3719 = vmatpush2.msra.mxu0 0.0
        %3720 = vmatprep.subr.mxu0 0.0
        %3721 = vmatpush2.msra.mxu0 0.0
        %3722 = vmatprep.subr.mxu0 0.0
        %3723 = vmatpush2.msra.mxu0 0.0
        %3724 = vmatprep.subr.mxu0 0.0
        %3725 = vmatpush2.msra.mxu0 0.0
        %3726 = vmatprep.mubr.f32.mxu0 0.0
        %3727 = vmatmul.mubr.f32.gmra.mxu0 %v3651
        %v3728 = vpop.f32.mrf.mxu0
        %v3729 = vadd.f32 0.0, %v3728
        %v3730 = vpop.f32.mrf.mxu0
        %3731 = vmatprep.mubr.f32.mxu0 0.0
        %3732 = vmatmul.mubr.f32.gmra.mxu0 %v3654
        %v3733 = vpop.f32.mrf.mxu0
        %v3734 = vadd.f32 0.0, %v3733
        %v3735 = vpop.f32.mrf.mxu0
        %3736 = vmatprep.mubr.f32.mxu0 0.0
        %3737 = vmatmul.mubr.f32.gmra.mxu0 %v3657
        %v3738 = vpop.f32.mrf.mxu0
        %v3739 = vadd.f32 0.0, %v3738
        %v3740 = vpop.f32.mrf.mxu0
        %3741 = vmatprep.mubr.f32.mxu0 0.0
        %3742 = vmatmul.mubr.f32.gmra.mxu0 %v3660
        %v3743 = vpop.f32.mrf.mxu0
        %v3744 = vadd.f32 0.0, %v3743
        %v3745 = vpop.f32.mrf.mxu0
        %3746 = vdwg.mxu0
        %v3748 = vsel %vm1592, %v3529, 0
        %v3751 = vsel %vm1592, %v3530, 0
        %v3754 = vsel %vm1592, %v3531, 0
        %v3757 = vsel %vm1592, %v3532, 0
        %3759 = vmatprep.subr.mxu0 0.0
        %3760 = vmatpush1.msra.mxu0 0.0
        %3761 = vmatprep.subr.mxu0 0.0
        %3762 = vmatpush1.msra.mxu0 0.0
        %3763 = vmatprep.subr.mxu0 0.0
        %3764 = vmatpush1.msra.mxu0 0.0
        %3765 = vmatprep.subr.mxu0 0.0
        %3766 = vmatpush1.msra.mxu0 0.0
        %3767 = vmatprep.subr.mxu0 0.0
        %3768 = vmatpush1.msra.mxu0 0.0
        %3769 = vmatprep.subr.mxu0 0.0
        %3770 = vmatpush1.msra.mxu0 0.0
        %3771 = vmatprep.subr.mxu0 0.0
        %3772 = vmatpush1.msra.mxu0 0.0
        %3773 = vmatprep.subr.mxu0 0.0
        %3774 = vmatpush1.msra.mxu0 0.0
        %3775 = vmatprep.subr.mxu0 0.0
        %3776 = vmatpush1.msra.mxu0 0.0
        %3777 = vmatprep.subr.mxu0 0.0
        %3778 = vmatpush1.msra.mxu0 0.0
        %3779 = vmatprep.subr.mxu0 0.0
        %3780 = vmatpush1.msra.mxu0 0.0
        %3781 = vmatprep.subr.mxu0 0.0
        %3782 = vmatpush1.msra.mxu0 0.0
        %3783 = vmatprep.subr.mxu0 0.0
        %3784 = vmatpush1.msra.mxu0 0.0
        %3785 = vmatprep.subr.mxu0 0.0
        %3786 = vmatpush1.msra.mxu0 0.0
        %3787 = vmatprep.subr.mxu0 0.0
        %3788 = vmatpush1.msra.mxu0 0.0
        %3789 = vmatprep.subr.mxu0 0.0
        %3790 = vmatpush1.msra.mxu0 %v430
        %3791 = vmatprep.subr.mxu0 0.0
        %3792 = vmatpush2.msra.mxu0 0.0
        %3793 = vmatprep.subr.mxu0 0.0
        %3794 = vmatpush2.msra.mxu0 0.0
        %3795 = vmatprep.subr.mxu0 0.0
        %3796 = vmatpush2.msra.mxu0 0.0
        %3797 = vmatprep.subr.mxu0 0.0
        %3798 = vmatpush2.msra.mxu0 0.0
        %3799 = vmatprep.subr.mxu0 0.0
        %3800 = vmatpush2.msra.mxu0 0.0
        %3801 = vmatprep.subr.mxu0 0.0
        %3802 = vmatpush2.msra.mxu0 0.0
        %3803 = vmatprep.subr.mxu0 0.0
        %3804 = vmatpush2.msra.mxu0 0.0
        %3805 = vmatprep.subr.mxu0 0.0
        %3806 = vmatpush2.msra.mxu0 0.0
        %3807 = vmatprep.subr.mxu0 0.0
        %3808 = vmatpush2.msra.mxu0 0.0
        %3809 = vmatprep.subr.mxu0 0.0
        %3810 = vmatpush2.msra.mxu0 0.0
        %3811 = vmatprep.subr.mxu0 0.0
        %3812 = vmatpush2.msra.mxu0 0.0
        %3813 = vmatprep.subr.mxu0 0.0
        %3814 = vmatpush2.msra.mxu0 0.0
        %3815 = vmatprep.subr.mxu0 0.0
        %3816 = vmatpush2.msra.mxu0 0.0
        %3817 = vmatprep.subr.mxu0 0.0
        %3818 = vmatpush2.msra.mxu0 0.0
        %3819 = vmatprep.subr.mxu0 0.0
        %3820 = vmatpush2.msra.mxu0 0.0
        %3821 = vmatprep.subr.mxu0 0.0
        %3822 = vmatpush2.msra.mxu0 0.0
        %3823 = vmatprep.mubr.f32.mxu0 0.0
        %3824 = vmatmul.mubr.f32.gmra.mxu0 %v3748
        %v3825 = vpop.f32.mrf.mxu0
        %v3826 = vadd.f32 0.0, %v3825
        %v3827 = vpop.f32.mrf.mxu0
        %3828 = vmatprep.mubr.f32.mxu0 0.0
        %3829 = vmatmul.mubr.f32.gmra.mxu0 %v3751
        %v3830 = vpop.f32.mrf.mxu0
        %v3831 = vadd.f32 0.0, %v3830
        %v3832 = vpop.f32.mrf.mxu0
        %3833 = vmatprep.mubr.f32.mxu0 0.0
        %3834 = vmatmul.mubr.f32.gmra.mxu0 %v3754
        %v3835 = vpop.f32.mrf.mxu0
        %v3836 = vadd.f32 0.0, %v3835
        %v3837 = vpop.f32.mrf.mxu0
        %3838 = vmatprep.mubr.f32.mxu0 0.0
        %3839 = vmatmul.mubr.f32.gmra.mxu0 %v3757
        %v3840 = vpop.f32.mrf.mxu0
        %v3841 = vadd.f32 0.0, %v3840
        %v3842 = vpop.f32.mrf.mxu0
        %3843 = vdwg.mxu0
        %v3845 = vsel %vm1592, %v3533, 0
        %v3848 = vsel %vm1592, %v3534, 0
        %v3851 = vsel %vm1592, %v3535, 0
        %v3854 = vsel %vm1592, %v3536, 0
        %3856 = vmatprep.subr.mxu0 0.0
        %3857 = vmatpush1.msra.mxu0 0.0
        %3858 = vmatprep.subr.mxu0 0.0
        %3859 = vmatpush1.msra.mxu0 0.0
        %3860 = vmatprep.subr.mxu0 0.0
        %3861 = vmatpush1.msra.mxu0 0.0
        %3862 = vmatprep.subr.mxu0 0.0
        %3863 = vmatpush1.msra.mxu0 0.0
        %3864 = vmatprep.subr.mxu0 0.0
        %3865 = vmatpush1.msra.mxu0 0.0
        %3866 = vmatprep.subr.mxu0 0.0
        %3867 = vmatpush1.msra.mxu0 0.0
        %3868 = vmatprep.subr.mxu0 0.0
        %3869 = vmatpush1.msra.mxu0 0.0
        %3870 = vmatprep.subr.mxu0 0.0
        %3871 = vmatpush1.msra.mxu0 0.0
        %3872 = vmatprep.subr.mxu0 0.0
        %3873 = vmatpush1.msra.mxu0 0.0
        %3874 = vmatprep.subr.mxu0 0.0
        %3875 = vmatpush1.msra.mxu0 0.0
        %3876 = vmatprep.subr.mxu0 0.0
        %3877 = vmatpush1.msra.mxu0 0.0
        %3878 = vmatprep.subr.mxu0 0.0
        %3879 = vmatpush1.msra.mxu0 0.0
        %3880 = vmatprep.subr.mxu0 0.0
        %3881 = vmatpush1.msra.mxu0 0.0
        %3882 = vmatprep.subr.mxu0 0.0
        %3883 = vmatpush1.msra.mxu0 0.0
        %3884 = vmatprep.subr.mxu0 0.0
        %3885 = vmatpush1.msra.mxu0 0.0
        %3886 = vmatprep.subr.mxu0 0.0
        %3887 = vmatpush1.msra.mxu0 %v431
        %3888 = vmatprep.subr.mxu0 0.0
        %3889 = vmatpush2.msra.mxu0 0.0
        %3890 = vmatprep.subr.mxu0 0.0
        %3891 = vmatpush2.msra.mxu0 0.0
        %3892 = vmatprep.subr.mxu0 0.0
        %3893 = vmatpush2.msra.mxu0 0.0
        %3894 = vmatprep.subr.mxu0 0.0
        %3895 = vmatpush2.msra.mxu0 0.0
        %3896 = vmatprep.subr.mxu0 0.0
        %3897 = vmatpush2.msra.mxu0 0.0
        %3898 = vmatprep.subr.mxu0 0.0
        %3899 = vmatpush2.msra.mxu0 0.0
        %3900 = vmatprep.subr.mxu0 0.0
        %3901 = vmatpush2.msra.mxu0 0.0
        %3902 = vmatprep.subr.mxu0 0.0
        %3903 = vmatpush2.msra.mxu0 0.0
        %3904 = vmatprep.subr.mxu0 0.0
        %3905 = vmatpush2.msra.mxu0 0.0
        %3906 = vmatprep.subr.mxu0 0.0
        %3907 = vmatpush2.msra.mxu0 0.0
        %3908 = vmatprep.subr.mxu0 0.0
        %3909 = vmatpush2.msra.mxu0 0.0
        %3910 = vmatprep.subr.mxu0 0.0
        %3911 = vmatpush2.msra.mxu0 0.0
        %3912 = vmatprep.subr.mxu0 0.0
        %3913 = vmatpush2.msra.mxu0 0.0
        %3914 = vmatprep.subr.mxu0 0.0
        %3915 = vmatpush2.msra.mxu0 0.0
        %3916 = vmatprep.subr.mxu0 0.0
        %3917 = vmatpush2.msra.mxu0 0.0
        %3918 = vmatprep.subr.mxu0 0.0
        %3919 = vmatpush2.msra.mxu0 0.0
        %3920 = vmatprep.mubr.f32.mxu0 0.0
        %3921 = vmatmul.mubr.f32.gmra.mxu0 %v3845
        %v3922 = vpop.f32.mrf.mxu0
        %v3923 = vadd.f32 0.0, %v3922
        %v3924 = vpop.f32.mrf.mxu0
        %3925 = vmatprep.mubr.f32.mxu0 0.0
        %3926 = vmatmul.mubr.f32.gmra.mxu0 %v3848
        %v3927 = vpop.f32.mrf.mxu0
        %v3928 = vadd.f32 0.0, %v3927
        %v3929 = vpop.f32.mrf.mxu0
        %3930 = vmatprep.mubr.f32.mxu0 0.0
        %3931 = vmatmul.mubr.f32.gmra.mxu0 %v3851
        %v3932 = vpop.f32.mrf.mxu0
        %v3933 = vadd.f32 0.0, %v3932
        %v3934 = vpop.f32.mrf.mxu0
        %3935 = vmatprep.mubr.f32.mxu0 0.0
        %3936 = vmatmul.mubr.f32.gmra.mxu0 %v3854
        %v3937 = vpop.f32.mrf.mxu0
        %v3938 = vadd.f32 0.0, %v3937
        %v3939 = vpop.f32.mrf.mxu0
        %3940 = vdwg.mxu0
        %v3942 = vsel %vm1592, %v3537, 0
        %v3945 = vsel %vm1592, %v3538, 0
        %v3948 = vsel %vm1592, %v3539, 0
        %v3951 = vsel %vm1592, %v3540, 0
        %3953 = vmatprep.subr.mxu0 0.0
        %3954 = vmatpush1.msra.mxu0 0.0
        %3955 = vmatprep.subr.mxu0 0.0
        %3956 = vmatpush1.msra.mxu0 0.0
        %3957 = vmatprep.subr.mxu0 0.0
        %3958 = vmatpush1.msra.mxu0 0.0
        %3959 = vmatprep.subr.mxu0 0.0
        %3960 = vmatpush1.msra.mxu0 0.0
        %3961 = vmatprep.subr.mxu0 0.0
        %3962 = vmatpush1.msra.mxu0 0.0
        %3963 = vmatprep.subr.mxu0 0.0
        %3964 = vmatpush1.msra.mxu0 0.0
        %3965 = vmatprep.subr.mxu0 0.0
        %3966 = vmatpush1.msra.mxu0 0.0
        %3967 = vmatprep.subr.mxu0 0.0
        %3968 = vmatpush1.msra.mxu0 0.0
        %3969 = vmatprep.subr.mxu0 0.0
        %3970 = vmatpush1.msra.mxu0 0.0
        %3971 = vmatprep.subr.mxu0 0.0
        %3972 = vmatpush1.msra.mxu0 0.0
        %3973 = vmatprep.subr.mxu0 0.0
        %3974 = vmatpush1.msra.mxu0 0.0
        %3975 = vmatprep.subr.mxu0 0.0
        %3976 = vmatpush1.msra.mxu0 0.0
        %3977 = vmatprep.subr.mxu0 0.0
        %3978 = vmatpush1.msra.mxu0 0.0
        %3979 = vmatprep.subr.mxu0 0.0
        %3980 = vmatpush1.msra.mxu0 0.0
        %3981 = vmatprep.subr.mxu0 0.0
        %3982 = vmatpush1.msra.mxu0 0.0
        %3983 = vmatprep.subr.mxu0 0.0
        %3984 = vmatpush1.msra.mxu0 %v432
        %3985 = vmatprep.subr.mxu0 0.0
        %3986 = vmatpush2.msra.mxu0 0.0
        %3987 = vmatprep.subr.mxu0 0.0
        %3988 = vmatpush2.msra.mxu0 0.0
        %3989 = vmatprep.subr.mxu0 0.0
        %3990 = vmatpush2.msra.mxu0 0.0
        %3991 = vmatprep.subr.mxu0 0.0
        %3992 = vmatpush2.msra.mxu0 0.0
        %3993 = vmatprep.subr.mxu0 0.0
        %3994 = vmatpush2.msra.mxu0 0.0
        %3995 = vmatprep.subr.mxu0 0.0
        %3996 = vmatpush2.msra.mxu0 0.0
        %3997 = vmatprep.subr.mxu0 0.0
        %3998 = vmatpush2.msra.mxu0 0.0
        %3999 = vmatprep.subr.mxu0 0.0
        %4000 = vmatpush2.msra.mxu0 0.0
        %4001 = vmatprep.subr.mxu0 0.0
        %4002 = vmatpush2.msra.mxu0 0.0
        %4003 = vmatprep.subr.mxu0 0.0
        %4004 = vmatpush2.msra.mxu0 0.0
        %4005 = vmatprep.subr.mxu0 0.0
        %4006 = vmatpush2.msra.mxu0 0.0
        %4007 = vmatprep.subr.mxu0 0.0
        %4008 = vmatpush2.msra.mxu0 0.0
        %4009 = vmatprep.subr.mxu0 0.0
        %4010 = vmatpush2.msra.mxu0 0.0
        %4011 = vmatprep.subr.mxu0 0.0
        %4012 = vmatpush2.msra.mxu0 0.0
        %4013 = vmatprep.subr.mxu0 0.0
        %4014 = vmatpush2.msra.mxu0 0.0
        %4015 = vmatprep.subr.mxu0 0.0
        %4016 = vmatpush2.msra.mxu0 0.0
        %4017 = vmatprep.mubr.f32.mxu0 0.0
        %4018 = vmatmul.mubr.f32.gmra.mxu0 %v3942
        %v4019 = vpop.f32.mrf.mxu0
        %v4020 = vadd.f32 0.0, %v4019
        %v4021 = vpop.f32.mrf.mxu0
        %4022 = vmatprep.mubr.f32.mxu0 0.0
        %4023 = vmatmul.mubr.f32.gmra.mxu0 %v3945
        %v4024 = vpop.f32.mrf.mxu0
        %v4025 = vadd.f32 0.0, %v4024
        %v4026 = vpop.f32.mrf.mxu0
        %4027 = vmatprep.mubr.f32.mxu0 0.0
        %4028 = vmatmul.mubr.f32.gmra.mxu0 %v3948
        %v4029 = vpop.f32.mrf.mxu0
        %v4030 = vadd.f32 0.0, %v4029
        %v4031 = vpop.f32.mrf.mxu0
        %4032 = vmatprep.mubr.f32.mxu0 0.0
        %4033 = vmatmul.mubr.f32.gmra.mxu0 %v3951
        %v4034 = vpop.f32.mrf.mxu0
        %v4035 = vadd.f32 0.0, %v4034
        %v4036 = vpop.f32.mrf.mxu0
        %4037 = vdwg.mxu0
        %v4039 = vsel %vm1592, %v3541, 0
        %v4042 = vsel %vm1592, %v3542, 0
        %v4045 = vsel %vm1592, %v3543, 0
        %v4048 = vsel %vm1592, %v3544, 0
        %4050 = vmatprep.subr.mxu0 0.0
        %4051 = vmatpush1.msra.mxu0 0.0
        %4052 = vmatprep.subr.mxu0 0.0
        %4053 = vmatpush1.msra.mxu0 0.0
        %4054 = vmatprep.subr.mxu0 0.0
        %4055 = vmatpush1.msra.mxu0 0.0
        %4056 = vmatprep.subr.mxu0 0.0
        %4057 = vmatpush1.msra.mxu0 0.0
        %4058 = vmatprep.subr.mxu0 0.0
        %4059 = vmatpush1.msra.mxu0 0.0
        %4060 = vmatprep.subr.mxu0 0.0
        %4061 = vmatpush1.msra.mxu0 0.0
        %4062 = vmatprep.subr.mxu0 0.0
        %4063 = vmatpush1.msra.mxu0 0.0
        %4064 = vmatprep.subr.mxu0 0.0
        %4065 = vmatpush1.msra.mxu0 0.0
        %4066 = vmatprep.subr.mxu0 0.0
        %4067 = vmatpush1.msra.mxu0 0.0
        %4068 = vmatprep.subr.mxu0 0.0
        %4069 = vmatpush1.msra.mxu0 0.0
        %4070 = vmatprep.subr.mxu0 0.0
        %4071 = vmatpush1.msra.mxu0 0.0
        %4072 = vmatprep.subr.mxu0 0.0
        %4073 = vmatpush1.msra.mxu0 0.0
        %4074 = vmatprep.subr.mxu0 0.0
        %4075 = vmatpush1.msra.mxu0 0.0
        %4076 = vmatprep.subr.mxu0 0.0
        %4077 = vmatpush1.msra.mxu0 0.0
        %4078 = vmatprep.subr.mxu0 0.0
        %4079 = vmatpush1.msra.mxu0 0.0
        %4080 = vmatprep.subr.mxu0 0.0
        %4081 = vmatpush1.msra.mxu0 %v433
        %4082 = vmatprep.subr.mxu0 0.0
        %4083 = vmatpush2.msra.mxu0 0.0
        %4084 = vmatprep.subr.mxu0 0.0
        %4085 = vmatpush2.msra.mxu0 0.0
        %4086 = vmatprep.subr.mxu0 0.0
        %4087 = vmatpush2.msra.mxu0 0.0
        %4088 = vmatprep.subr.mxu0 0.0
        %4089 = vmatpush2.msra.mxu0 0.0
        %4090 = vmatprep.subr.mxu0 0.0
        %4091 = vmatpush2.msra.mxu0 0.0
        %4092 = vmatprep.subr.mxu0 0.0
        %4093 = vmatpush2.msra.mxu0 0.0
        %4094 = vmatprep.subr.mxu0 0.0
        %4095 = vmatpush2.msra.mxu0 0.0
        %4096 = vmatprep.subr.mxu0 0.0
        %4097 = vmatpush2.msra.mxu0 0.0
        %4098 = vmatprep.subr.mxu0 0.0
        %4099 = vmatpush2.msra.mxu0 0.0
        %4100 = vmatprep.subr.mxu0 0.0
        %4101 = vmatpush2.msra.mxu0 0.0
        %4102 = vmatprep.subr.mxu0 0.0
        %4103 = vmatpush2.msra.mxu0 0.0
        %4104 = vmatprep.subr.mxu0 0.0
        %4105 = vmatpush2.msra.mxu0 0.0
        %4106 = vmatprep.subr.mxu0 0.0
        %4107 = vmatpush2.msra.mxu0 0.0
        %4108 = vmatprep.subr.mxu0 0.0
        %4109 = vmatpush2.msra.mxu0 0.0
        %4110 = vmatprep.subr.mxu0 0.0
        %4111 = vmatpush2.msra.mxu0 0.0
        %4112 = vmatprep.subr.mxu0 0.0
        %4113 = vmatpush2.msra.mxu0 0.0
        %4114 = vmatprep.mubr.f32.mxu0 0.0
        %4115 = vmatmul.mubr.f32.gmra.mxu0 %v4039
        %v4116 = vpop.f32.mrf.mxu0
        %v4117 = vadd.f32 0.0, %v4116
        %v4118 = vpop.f32.mrf.mxu0
        %4119 = vmatprep.mubr.f32.mxu0 0.0
        %4120 = vmatmul.mubr.f32.gmra.mxu0 %v4042
        %v4121 = vpop.f32.mrf.mxu0
        %v4122 = vadd.f32 0.0, %v4121
        %v4123 = vpop.f32.mrf.mxu0
        %4124 = vmatprep.mubr.f32.mxu0 0.0
        %4125 = vmatmul.mubr.f32.gmra.mxu0 %v4045
        %v4126 = vpop.f32.mrf.mxu0
        %v4127 = vadd.f32 0.0, %v4126
        %v4128 = vpop.f32.mrf.mxu0
        %4129 = vmatprep.mubr.f32.mxu0 0.0
        %4130 = vmatmul.mubr.f32.gmra.mxu0 %v4048
        %v4131 = vpop.f32.mrf.mxu0
        %v4132 = vadd.f32 0.0, %v4131
        %v4133 = vpop.f32.mrf.mxu0
        %4134 = vdwg.mxu0
        %v4136 = vsel %vm1592, %v3545, 0
        %v4139 = vsel %vm1592, %v3546, 0
        %v4142 = vsel %vm1592, %v3547, 0
        %v4145 = vsel %vm1592, %v3548, 0
        %4147 = vmatprep.subr.mxu0 0.0
        %4148 = vmatpush1.msra.mxu0 0.0
        %4149 = vmatprep.subr.mxu0 0.0
        %4150 = vmatpush1.msra.mxu0 0.0
        %4151 = vmatprep.subr.mxu0 0.0
        %4152 = vmatpush1.msra.mxu0 0.0
        %4153 = vmatprep.subr.mxu0 0.0
        %4154 = vmatpush1.msra.mxu0 0.0
        %4155 = vmatprep.subr.mxu0 0.0
        %4156 = vmatpush1.msra.mxu0 0.0
        %4157 = vmatprep.subr.mxu0 0.0
        %4158 = vmatpush1.msra.mxu0 0.0
        %4159 = vmatprep.subr.mxu0 0.0
        %4160 = vmatpush1.msra.mxu0 0.0
        %4161 = vmatprep.subr.mxu0 0.0
        %4162 = vmatpush1.msra.mxu0 0.0
        %4163 = vmatprep.subr.mxu0 0.0
        %4164 = vmatpush1.msra.mxu0 0.0
        %4165 = vmatprep.subr.mxu0 0.0
        %4166 = vmatpush1.msra.mxu0 0.0
        %4167 = vmatprep.subr.mxu0 0.0
        %4168 = vmatpush1.msra.mxu0 0.0
        %4169 = vmatprep.subr.mxu0 0.0
        %4170 = vmatpush1.msra.mxu0 0.0
        %4171 = vmatprep.subr.mxu0 0.0
        %4172 = vmatpush1.msra.mxu0 0.0
        %4173 = vmatprep.subr.mxu0 0.0
        %4174 = vmatpush1.msra.mxu0 0.0
        %4175 = vmatprep.subr.mxu0 0.0
        %4176 = vmatpush1.msra.mxu0 0.0
        %4177 = vmatprep.subr.mxu0 0.0
        %4178 = vmatpush1.msra.mxu0 %v434
        %4179 = vmatprep.subr.mxu0 0.0
        %4180 = vmatpush2.msra.mxu0 0.0
        %4181 = vmatprep.subr.mxu0 0.0
        %4182 = vmatpush2.msra.mxu0 0.0
        %4183 = vmatprep.subr.mxu0 0.0
        %4184 = vmatpush2.msra.mxu0 0.0
        %4185 = vmatprep.subr.mxu0 0.0
        %4186 = vmatpush2.msra.mxu0 0.0
        %4187 = vmatprep.subr.mxu0 0.0
        %4188 = vmatpush2.msra.mxu0 0.0
        %4189 = vmatprep.subr.mxu0 0.0
        %4190 = vmatpush2.msra.mxu0 0.0
        %4191 = vmatprep.subr.mxu0 0.0
        %4192 = vmatpush2.msra.mxu0 0.0
        %4193 = vmatprep.subr.mxu0 0.0
        %4194 = vmatpush2.msra.mxu0 0.0
        %4195 = vmatprep.subr.mxu0 0.0
        %4196 = vmatpush2.msra.mxu0 0.0
        %4197 = vmatprep.subr.mxu0 0.0
        %4198 = vmatpush2.msra.mxu0 0.0
        %4199 = vmatprep.subr.mxu0 0.0
        %4200 = vmatpush2.msra.mxu0 0.0
        %4201 = vmatprep.subr.mxu0 0.0
        %4202 = vmatpush2.msra.mxu0 0.0
        %4203 = vmatprep.subr.mxu0 0.0
        %4204 = vmatpush2.msra.mxu0 0.0
        %4205 = vmatprep.subr.mxu0 0.0
        %4206 = vmatpush2.msra.mxu0 0.0
        %4207 = vmatprep.subr.mxu0 0.0
        %4208 = vmatpush2.msra.mxu0 0.0
        %4209 = vmatprep.subr.mxu0 0.0
        %4210 = vmatpush2.msra.mxu0 0.0
        %4211 = vmatprep.mubr.f32.mxu0 0.0
        %4212 = vmatmul.mubr.f32.gmra.mxu0 %v4136
        %v4213 = vpop.f32.mrf.mxu0
        %v4214 = vadd.f32 0.0, %v4213
        %v4215 = vpop.f32.mrf.mxu0
        %4216 = vmatprep.mubr.f32.mxu0 0.0
        %4217 = vmatmul.mubr.f32.gmra.mxu0 %v4139
        %v4218 = vpop.f32.mrf.mxu0
        %v4219 = vadd.f32 0.0, %v4218
        %v4220 = vpop.f32.mrf.mxu0
        %4221 = vmatprep.mubr.f32.mxu0 0.0
        %4222 = vmatmul.mubr.f32.gmra.mxu0 %v4142
        %v4223 = vpop.f32.mrf.mxu0
        %v4224 = vadd.f32 0.0, %v4223
        %v4225 = vpop.f32.mrf.mxu0
        %4226 = vmatprep.mubr.f32.mxu0 0.0
        %4227 = vmatmul.mubr.f32.gmra.mxu0 %v4145
        %v4228 = vpop.f32.mrf.mxu0
        %v4229 = vadd.f32 0.0, %v4228
        %v4230 = vpop.f32.mrf.mxu0
        %4231 = vdwg.mxu0
        %v4233 = vsel %vm1592, %v3549, 0
        %v4236 = vsel %vm1592, %v3550, 0
        %v4239 = vsel %vm1592, %v3551, 0
        %v4242 = vsel %vm1592, %v3552, 0
        %4244 = vmatprep.subr.mxu0 0.0
        %4245 = vmatpush1.msra.mxu0 0.0
        %4246 = vmatprep.subr.mxu0 0.0
        %4247 = vmatpush1.msra.mxu0 0.0
        %4248 = vmatprep.subr.mxu0 0.0
        %4249 = vmatpush1.msra.mxu0 0.0
        %4250 = vmatprep.subr.mxu0 0.0
        %4251 = vmatpush1.msra.mxu0 0.0
        %4252 = vmatprep.subr.mxu0 0.0
        %4253 = vmatpush1.msra.mxu0 0.0
        %4254 = vmatprep.subr.mxu0 0.0
        %4255 = vmatpush1.msra.mxu0 0.0
        %4256 = vmatprep.subr.mxu0 0.0
        %4257 = vmatpush1.msra.mxu0 0.0
        %4258 = vmatprep.subr.mxu0 0.0
        %4259 = vmatpush1.msra.mxu0 0.0
        %4260 = vmatprep.subr.mxu0 0.0
        %4261 = vmatpush1.msra.mxu0 0.0
        %4262 = vmatprep.subr.mxu0 0.0
        %4263 = vmatpush1.msra.mxu0 0.0
        %4264 = vmatprep.subr.mxu0 0.0
        %4265 = vmatpush1.msra.mxu0 0.0
        %4266 = vmatprep.subr.mxu0 0.0
        %4267 = vmatpush1.msra.mxu0 0.0
        %4268 = vmatprep.subr.mxu0 0.0
        %4269 = vmatpush1.msra.mxu0 0.0
        %4270 = vmatprep.subr.mxu0 0.0
        %4271 = vmatpush1.msra.mxu0 0.0
        %4272 = vmatprep.subr.mxu0 0.0
        %4273 = vmatpush1.msra.mxu0 0.0
        %4274 = vmatprep.subr.mxu0 0.0
        %4275 = vmatpush1.msra.mxu0 %v435
        %4276 = vmatprep.subr.mxu0 0.0
        %4277 = vmatpush2.msra.mxu0 0.0
        %4278 = vmatprep.subr.mxu0 0.0
        %4279 = vmatpush2.msra.mxu0 0.0
        %4280 = vmatprep.subr.mxu0 0.0
        %4281 = vmatpush2.msra.mxu0 0.0
        %4282 = vmatprep.subr.mxu0 0.0
        %4283 = vmatpush2.msra.mxu0 0.0
        %4284 = vmatprep.subr.mxu0 0.0
        %4285 = vmatpush2.msra.mxu0 0.0
        %4286 = vmatprep.subr.mxu0 0.0
        %4287 = vmatpush2.msra.mxu0 0.0
        %4288 = vmatprep.subr.mxu0 0.0
        %4289 = vmatpush2.msra.mxu0 0.0
        %4290 = vmatprep.subr.mxu0 0.0
        %4291 = vmatpush2.msra.mxu0 0.0
        %4292 = vmatprep.subr.mxu0 0.0
        %4293 = vmatpush2.msra.mxu0 0.0
        %4294 = vmatprep.subr.mxu0 0.0
        %4295 = vmatpush2.msra.mxu0 0.0
        %4296 = vmatprep.subr.mxu0 0.0
        %4297 = vmatpush2.msra.mxu0 0.0
        %4298 = vmatprep.subr.mxu0 0.0
        %4299 = vmatpush2.msra.mxu0 0.0
        %4300 = vmatprep.subr.mxu0 0.0
        %4301 = vmatpush2.msra.mxu0 0.0
        %4302 = vmatprep.subr.mxu0 0.0
        %4303 = vmatpush2.msra.mxu0 0.0
        %4304 = vmatprep.subr.mxu0 0.0
        %4305 = vmatpush2.msra.mxu0 0.0
        %4306 = vmatprep.subr.mxu0 0.0
        %4307 = vmatpush2.msra.mxu0 0.0
        %4308 = vmatprep.mubr.f32.mxu0 0.0
        %4309 = vmatmul.mubr.f32.gmra.mxu0 %v4233
        %v4310 = vpop.f32.mrf.mxu0
        %v4311 = vadd.f32 0.0, %v4310
        %v4312 = vpop.f32.mrf.mxu0
        %4313 = vmatprep.mubr.f32.mxu0 0.0
        %4314 = vmatmul.mubr.f32.gmra.mxu0 %v4236
        %v4315 = vpop.f32.mrf.mxu0
        %v4316 = vadd.f32 0.0, %v4315
        %v4317 = vpop.f32.mrf.mxu0
        %4318 = vmatprep.mubr.f32.mxu0 0.0
        %4319 = vmatmul.mubr.f32.gmra.mxu0 %v4239
        %v4320 = vpop.f32.mrf.mxu0
        %v4321 = vadd.f32 0.0, %v4320
        %v4322 = vpop.f32.mrf.mxu0
        %4323 = vmatprep.mubr.f32.mxu0 0.0
        %4324 = vmatmul.mubr.f32.gmra.mxu0 %v4242
        %v4325 = vpop.f32.mrf.mxu0
        %v4326 = vadd.f32 0.0, %v4325
        %v4327 = vpop.f32.mrf.mxu0
        %4328 = vdwg.mxu0
        %v4329 = vsel %vm438, %v3632, 0.0
        %v4330 = vsel %vm438, %v3729, 0.0
        %v4331 = vadd.f32 %v4329, %v4330
        %v4332 = vsel %vm438, %v3826, 0.0
        %v4333 = vadd.f32 %v4331, %v4332
        %v4334 = vsel %vm438, %v3923, 0.0
        %v4335 = vadd.f32 %v4333, %v4334
        %v4336 = vsel %vm438, %v4020, 0.0
        %v4337 = vadd.f32 %v4335, %v4336
        %v4338 = vsel %vm438, %v4117, 0.0
        %v4339 = vadd.f32 %v4337, %v4338
        %v4340 = vsel %vm438, %v4214, 0.0
        %v4341 = vadd.f32 %v4339, %v4340
        %v4342 = vsel %vm438, %v4311, 0.0
        %v4343 = vadd.f32 %v4341, %v4342
        %v4344 = vsel %vm438, %v3637, 0.0
        %v4345 = vsel %vm438, %v3734, 0.0
        %v4346 = vadd.f32 %v4344, %v4345
        %v4347 = vsel %vm438, %v3831, 0.0
        %v4348 = vadd.f32 %v4346, %v4347
        %v4349 = vsel %vm438, %v3928, 0.0
        %v4350 = vadd.f32 %v4348, %v4349
        %v4351 = vsel %vm438, %v4025, 0.0
        %v4352 = vadd.f32 %v4350, %v4351
        %v4353 = vsel %vm438, %v4122, 0.0
        %v4354 = vadd.f32 %v4352, %v4353
        %v4355 = vsel %vm438, %v4219, 0.0
        %v4356 = vadd.f32 %v4354, %v4355
        %v4357 = vsel %vm438, %v4316, 0.0
        %v4358 = vadd.f32 %v4356, %v4357
        %v4359 = vsel %vm438, %v3642, 0.0
        %v4360 = vsel %vm438, %v3739, 0.0
        %v4361 = vadd.f32 %v4359, %v4360
        %v4362 = vsel %vm438, %v3836, 0.0
        %v4363 = vadd.f32 %v4361, %v4362
        %v4364 = vsel %vm438, %v3933, 0.0
        %v4365 = vadd.f32 %v4363, %v4364
        %v4366 = vsel %vm438, %v4030, 0.0
        %v4367 = vadd.f32 %v4365, %v4366
        %v4368 = vsel %vm438, %v4127, 0.0
        %v4369 = vadd.f32 %v4367, %v4368
        %v4370 = vsel %vm438, %v4224, 0.0
        %v4371 = vadd.f32 %v4369, %v4370
        %v4372 = vsel %vm438, %v4321, 0.0
        %v4373 = vadd.f32 %v4371, %v4372
        %v4374 = vsel %vm438, %v3647, 0.0
        %v4375 = vsel %vm438, %v3744, 0.0
        %v4376 = vadd.f32 %v4374, %v4375
        %v4377 = vsel %vm438, %v3841, 0.0
        %v4378 = vadd.f32 %v4376, %v4377
        %v4379 = vsel %vm438, %v3938, 0.0
        %v4380 = vadd.f32 %v4378, %v4379
        %v4381 = vsel %vm438, %v4035, 0.0
        %v4382 = vadd.f32 %v4380, %v4381
        %v4383 = vsel %vm438, %v4132, 0.0
        %v4384 = vadd.f32 %v4382, %v4383
        %v4385 = vsel %vm438, %v4229, 0.0
        %v4386 = vadd.f32 %v4384, %v4385
        %v4387 = vsel %vm438, %v4326, 0.0
        %v4388 = vadd.f32 %v4386, %v4387
        %v4390 = vlaneseq
        %v4391 = vshrl.u32 %v4390, 7
        %v4392 = vsub.s32 0, %v4391
        %v4393 = vrot.slane %v436, %v4392
        %v4395 = vadd.f32 %v4343, %v4393
        %v4396 = vadd.f32 %v4358, %v4393
        %v4397 = vadd.f32 %v4373, %v4393
        %v4398 = vadd.f32 %v4388, %v4393
        %v4399 = vadd.f32 %v328, %v4395
        %v4400 = vadd.f32 %v329, %v4396
        %v4401 = vadd.f32 %v330, %v4397
        %v4402 = vadd.f32 %v331, %v4398
        %v4404 = vsel %vm438, %v437, 0
        %4406 = vmatprep.subr.mxu0 0.0
        %4407 = vmatpush1.msra.mxu0 0.0
        %4408 = vmatprep.subr.mxu0 0.0
        %4409 = vmatpush1.msra.mxu0 0.0
        %4410 = vmatprep.subr.mxu0 0.0
        %4411 = vmatpush1.msra.mxu0 0.0
        %4412 = vmatprep.subr.mxu0 0.0
        %4413 = vmatpush1.msra.mxu0 0.0
        %4414 = vmatprep.subr.mxu0 0.0
        %4415 = vmatpush1.msra.mxu0 0.0
        %4416 = vmatprep.subr.mxu0 0.0
        %4417 = vmatpush1.msra.mxu0 0.0
        %4418 = vmatprep.subr.mxu0 0.0
        %4419 = vmatpush1.msra.mxu0 0.0
        %4420 = vmatprep.subr.mxu0 0.0
        %4421 = vmatpush1.msra.mxu0 0.0
        %4422 = vmatprep.subr.mxu0 0.0
        %4423 = vmatpush1.msra.mxu0 0.0
        %4424 = vmatprep.subr.mxu0 0.0
        %4425 = vmatpush1.msra.mxu0 0.0
        %4426 = vmatprep.subr.mxu0 0.0
        %4427 = vmatpush1.msra.mxu0 0.0
        %4428 = vmatprep.subr.mxu0 0.0
        %4429 = vmatpush1.msra.mxu0 0.0
        %4430 = vmatprep.subr.mxu0 0.0
        %4431 = vmatpush1.msra.mxu0 %v4402
        %4432 = vmatprep.subr.mxu0 0.0
        %4433 = vmatpush1.msra.mxu0 %v4401
        %4434 = vmatprep.subr.mxu0 0.0
        %4435 = vmatpush1.msra.mxu0 %v4400
        %4436 = vmatprep.subr.mxu0 0.0
        %4437 = vmatpush1.msra.mxu0 %v4399
        %4438 = vmatprep.subr.mxu0 0.0
        %4439 = vmatpush2.msra.mxu0 0.0
        %4440 = vmatprep.subr.mxu0 0.0
        %4441 = vmatpush2.msra.mxu0 0.0
        %4442 = vmatprep.subr.mxu0 0.0
        %4443 = vmatpush2.msra.mxu0 0.0
        %4444 = vmatprep.subr.mxu0 0.0
        %4445 = vmatpush2.msra.mxu0 0.0
        %4446 = vmatprep.subr.mxu0 0.0
        %4447 = vmatpush2.msra.mxu0 0.0
        %4448 = vmatprep.subr.mxu0 0.0
        %4449 = vmatpush2.msra.mxu0 0.0
        %4450 = vmatprep.subr.mxu0 0.0
        %4451 = vmatpush2.msra.mxu0 0.0
        %4452 = vmatprep.subr.mxu0 0.0
        %4453 = vmatpush2.msra.mxu0 0.0
        %4454 = vmatprep.subr.mxu0 0.0
        %4455 = vmatpush2.msra.mxu0 0.0
        %4456 = vmatprep.subr.mxu0 0.0
        %4457 = vmatpush2.msra.mxu0 0.0
        %4458 = vmatprep.subr.mxu0 0.0
        %4459 = vmatpush2.msra.mxu0 0.0
        %4460 = vmatprep.subr.mxu0 0.0
        %4461 = vmatpush2.msra.mxu0 0.0
        %4462 = vmatprep.subr.mxu0 0.0
        %4463 = vmatpush2.msra.mxu0 0.0
        %4464 = vmatprep.subr.mxu0 0.0
        %4465 = vmatpush2.msra.mxu0 0.0
        %4466 = vmatprep.subr.mxu0 0.0
        %4467 = vmatpush2.msra.mxu0 0.0
        %4468 = vmatprep.subr.mxu0 0.0
        %4469 = vmatpush2.msra.mxu0 0.0
        %4470 = vmatprep.mubr.f32.mxu0 0.0
        %4471 = vmatmul.mubr.f32.gmra.mxu0 %v4404
        %v4472 = vpop.f32.mrf.mxu0
        %v4473 = vadd.f32 0.0, %v4472
        %v4474 = vpop.f32.mrf.mxu0
        %4475 = vdwg.mxu0
        %4476 = vst.msk [vmem:[%s323] sm:$0xff] %vm438, %v4473
        %s4477 = sand.u32 %s225, 1
        %s4478 = scalar_lea.sflag [#allocation3], %s4477
        %s4479 = sand.u32 %s225, 1
        %s4480 = smul.addr %s4479, 8
        %s4481 = scalar_lea.vmem [#allocation2], %s4480
        // Predicated region
        $region57: #{tpu_custom_call.1} parent=55 // pred_check
          %p4482 = pneg %p235
        $region58: #{tpu_custom_call.1} parent=55 // pred_check_branch
          %4484 = sbr.rel (%p4482) target = $region60
        $region59: #{tpu_custom_call.1} parent=55 // pred_region
          %s4486 = ssub.s32 128, 128
          %4487 = vsyncadd %s4478, %s4486
          %s4488 = smul.addr %s23, 128
          %s4489 = scalar_lea.hbm %s9, %s4488
          %s4491 = sshll.u32 %s4481, 4
          %s4492 = int_to_ptr.vmem [resolvable:$true] %s4491
          %4494 = dma.vmem_to_hbm [thread:$0]  %s4492, 128, %s4489, %s4478
        $region60: #{tpu_custom_call.1} parent=55 // pred_fallthru
          _
      $region56: #{tpu_custom_call.1} parent=5 // pred_fallthru
        _
      %p4495 = scmp.le.s32.totalorder 2, %s18
      // Predicated region
      $region61: #{tpu_custom_call.1} parent=5 // pred_check
        %p4496 = pneg %p4495
      $region62: #{tpu_custom_call.1} parent=5 // pred_check_branch
        %4498 = sbr.rel (%p4496) target = $region64
      $region63: #{tpu_custom_call.1} parent=5 // pred_region
        %s4499 = ssub.s32 %s18, 2
        // Predicated region
        $region65: #{tpu_custom_call.1} parent=63 // pred_check
          %p4500 = pneg %p241
        $region66: #{tpu_custom_call.1} parent=63 // pred_check_branch
          %4502 = sbr.rel (%p4500) target = $region68
        $region67: #{tpu_custom_call.1} parent=63 // pred_region
          %s4503 = sand.u32 %s226, 1
          %s4504 = scalar_lea.sflag [#allocation3], %s4503
          %s4505 = sand.u32 %s226, 1
          %s4506 = smul.addr %s4505, 8
          %s4507 = scalar_lea.vmem [#allocation2], %s4506
          %4508 = dma.done %s4504, 128
        $region68: #{tpu_custom_call.1} parent=63 // pred_fallthru
          _
      $region64: #{tpu_custom_call.1} parent=5 // pred_fallthru
        _
    $region6: #{tpu_custom_call.1} parent=1 // loop_footer
      %s22 = sadd.s32 1, %s18
    $region7: #{tpu_custom_call.1} parent=1 // loop_footer_branch
      %17 = sbr.rel target = $region3
    $region8: #{tpu_custom_call.1} parent=1 // loop_exit
      _
    %4509 = vsyncpa [#allocation3], 1
    %s4510 = scalar_lea.sflag [#allocation3], 1
    %4511 = vsyncpa %s4510, 1

</llo_original>
